<compile_context>
chip_gen: v7x
topology: tpu7x:2x2x1
jax: 0.10.0
libtpu: 0.0.40
codegen_flags: <defaults>
</compile_context>

<pallas_src>
import functools

import jax
import jax.numpy as jnp
from jax.experimental import pallas as pl
from jax.experimental.pallas import tpu as pltpu


def _round_up(x, m):
    return ((x + m - 1) // m) * m


# ----------------------------------------------------------------------------
# Kernel: conv1/conv2/conv3 (+eval-BN/ReLU) + running max over point tiles
# ----------------------------------------------------------------------------
def _make_frontend_kernel(*, final_relu, has_c, needs_mask, n_valid, tile_n,
                          split, chunks_per_split):
    def kernel(*refs):
        if has_c:
            (x_ref, c_ref, w1x_ref, w1c_ref, b1_ref,
             w2_ref, b2_ref, w3_ref, b3_ref, out_ref) = refs
        else:
            (x_ref, w1x_ref, b1_ref,
             w2_ref, b2_ref, w3_ref, b3_ref, out_ref) = refs
        # x_ref: (1, Nt, n) bf16            c_ref: (1, Nt, ne) bf16
        # w1x_ref: (1, n, 64) bf16          w1c_ref: (ne, 64) bf16
        # w2_ref: (64, 128) bf16            w3_ref: (128, 1024) bf16
        # bX_ref: (1, CoutX) f32            out_ref: (1, 1, 1024) f32 (resident acc)

        @pl.when(pl.program_id(1) == 0)
        def _():
            out_ref[...] = jnp.full_like(out_ref, -jnp.inf)

        # conv1: bf16 MXU dot(s) with f32 accumulation
        h = jnp.dot(x_ref[0], w1x_ref[0], preferred_element_type=jnp.float32)
        if has_c:
            h = h + jnp.dot(c_ref[0], w1c_ref[...],
                            preferred_element_type=jnp.float32)
        h = jnp.maximum(h + b1_ref[...], 0.0)                         # relu(bn1)
        h = jnp.dot(h.astype(w2_ref.dtype), w2_ref[...],
                    preferred_element_type=jnp.float32)               # conv2
        h = jnp.maximum(h + b2_ref[...], 0.0)                         # relu(bn2)
        h = jnp.dot(h.astype(w3_ref.dtype), w3_ref[...],
                    preferred_element_type=jnp.float32)               # conv3
        h = h + b3_ref[...]                                           # bn3
        if final_relu:
            h = jnp.maximum(h, 0.0)

        if needs_mask:
            # Padded point rows must be excluded from the max (relu(bias) is not
            # max-neutral).  Global point index = chunk * Nt + local row.
            if split == 1:
                chunk = pl.program_id(1)
            else:
                chunk = (pl.program_id(0) % split) * chunks_per_split + pl.program_id(1)
            row = jax.lax.broadcasted_iota(jnp.int32, (tile_n, 1), 0)
            valid = (chunk * tile_n + row) < n_valid
            h = jnp.where(valid, h, -jnp.inf)

        # running max (output block is resident across the chunk axis)
        out_ref[0] = jnp.maximum(out_ref[0], jnp.max(h, axis=0, keepdims=True))

    return kernel


# ----------------------------------------------------------------------------
# pallas_call wrapper
# ----------------------------------------------------------------------------
def _frontend_call(x, c, w1x, w1c, b1, w2, b2, w3, b3, *,
                   final_relu, per_batch_w1, tile_n, n_valid, split):
    B, n_pad, cx = x.shape
    nt = tile_n
    n_chunks = n_pad // nt
    cps = n_chunks // split
    cout = w3.shape[-1]
    has_c = c is not None
    needs_mask = n_pad != n_valid

    if split == 1:
        xmap = lambda p, t: (p, t, 0)
        w1x_map = (lambda p, t: (p, 0, 0)) if per_batch_w1 else (lambda p, t: (0, 0, 0))
    else:
        xmap = lambda p, t: (p // split, (p % split) * cps + t, 0)
        w1x_map = (lambda p, t: (p // split, 0, 0)) if per_batch_w1 else (lambda p, t: (0, 0, 0))

    def _const(arr):  # same block for every (p, chunk) -> stays VMEM resident
        return pl.BlockSpec(arr.shape, lambda p, t: (0,) * arr.ndim)

    in_specs = [pl.BlockSpec((1, nt, cx), xmap)]
    args = [x]
    if has_c:
        in_specs.append(pl.BlockSpec((1, nt, c.shape[-1]), xmap))
        args.append(c)
    in_specs.append(pl.BlockSpec((1, w1x.shape[-2], w1x.shape[-1]), w1x_map))
    args.append(w1x)
    if has_c:
        in_specs.append(_const(w1c))
        args.append(w1c)
    for arr in (b1, w2, b2, w3, b3):
        in_specs.append(_const(arr))
        args.append(arr)

    kernel = _make_frontend_kernel(
        final_relu=final_relu, has_c=has_c, needs_mask=needs_mask,
        n_valid=n_valid, tile_n=nt, split=split, chunks_per_split=cps)

    out = pl.pallas_call(
        kernel,
        out_shape=jax.ShapeDtypeStruct((B * split, 1, cout), jnp.float32),
        grid=(B * split, cps),
        in_specs=in_specs,
        out_specs=pl.BlockSpec((1, 1, cout), lambda p, t: (p, 0, 0)),
        compiler_params=pltpu.CompilerParams(
            dimension_semantics=("parallel", "arbitrary"),
            vmem_limit_bytes=32 * 1024 * 1024),
    )(*args)

    if split > 1:
        return jnp.max(out.reshape(B, split, cout), axis=1)
    return out.reshape(B, cout)


def _choose_tiling(N, B, tile_n=None, max_tile=2048):
    """Pick (tile, padded N, parallel split).  max_tile=2048 keeps the (Nt,1024) f32
    conv3 temp + double-buffered streams under ~20 MiB (fits 32 MiB scoped VMEM on
    v7x; on v5e/v6e a larger vmem limit allows sweeping Nt=4096)."""
    split = 2 if B < 2 else 1        # keep both v7x TensorCores busy when B == 1
    if tile_n is None:
        nt = min(max_tile, _round_up(N, 8))
    else:
        nt = _round_up(tile_n, 8)
    n_pad = _round_up(N, nt * split)
    return nt, n_pad, split


# ----------------------------------------------------------------------------
# STN backend (plain jnp -- B x 1024 -> n*n is far too small for its own kernel)
# ----------------------------------------------------------------------------
def _stn_backend(feat, p):
    h = jnp.maximum(feat @ p["stn_fc1"] + p["stn_bn4_b"], 0.0)   # relu(bn4(fc1))
    h = jnp.maximum(h @ p["stn_fc2"] + p["stn_bn5_b"], 0.0)      # relu(bn5(fc2))
    return h @ p["stn_fc3_w"] + p["stn_fc3_b"] + p["iden"]       # fc3 + bias + I


# ----------------------------------------------------------------------------
# Full forward (global_feat=True path): returns (global_feature, trans)
# ----------------------------------------------------------------------------
def pointnetfeat_forward(x, c, params, n=4, tile_n=None):
    # x: (B, n, N) ; c: (B, n_ensemble, N)   -- PyTorch NCW layout
    B, _, N = x.shape
    nt, n_pad, split = _choose_tiling(N, B, tile_n)

    # bf16 streams (halves HBM bytes; bf16 MXU for conv1), padded to tile multiple.
    x_bnc = jnp.transpose(x, (0, 2, 1)).astype(jnp.bfloat16)          # (B, N, n)
    c_bnc = jnp.transpose(c, (0, 2, 1)).astype(jnp.bfloat16)          # (B, N, ne)
    if n_pad != N:
        pad = ((0, 0), (0, n_pad - N), (0, 0))
        x_bnc = jnp.pad(x_bnc, pad)
        c_bnc = jnp.pad(c_bnc, pad)

    # ---- STN3d frontend (Pallas): consumes only x ----
    stn_feat = _frontend_call(
        x_bnc, None, params["stn_w1"], None, params["stn_b1"],
        params["stn_w2"], params["stn_b2"], params["stn_w3"], params["stn_b3"],
        final_relu=True, per_batch_w1=False,
        tile_n=nt, n_valid=N, split=split)                            # (B, 1024)
    trans = _stn_backend(stn_feat, params).reshape(B, n, n)

    # ---- main branch: fold bmm(x, trans) into a per-batch conv1 weight ----
    #   (x @ trans) @ W1x == x @ (trans @ W1x)   (exact)
    w1x_eff = jnp.einsum("bij,jk->bik", trans, params["w1x"]).astype(jnp.bfloat16)

    feat = _frontend_call(
        x_bnc, c_bnc, w1x_eff, params["w1c"], params["b1"],
        params["w2"], params["b2"], params["w3"], params["b3"],
        final_relu=False, per_batch_w1=True,
        tile_n=nt, n_valid=N, split=split)                            # (B, 1024)
    return feat, trans


# ----------------------------------------------------------------------------
# Parameters
# ----------------------------------------------------------------------------
def init_params(key, n=4, n_ensemble=20):
    """Raw (unfolded) parameters mirroring the PyTorch module, stored (Cin, Cout).
    BatchNorm stats are randomized (not the PyTorch gamma=1/beta=0 init) so that BN
    folding and the padded-row masking are actually exercised by the check."""
    keys = iter(jax.random.split(key, 64))

    def w(shape, fan_in):
        return jax.random.normal(next(keys), shape, jnp.float32) / jnp.sqrt(float(fan_in))

    p = {
        "stn_w1": w((n, 64), n),
        "stn_w2": w((64, 128), 64),
        "stn_w3": w((128, 1024), 128),
        "stn_fc1": w((1024, 512), 1024),
        "stn_fc2": w((512, 256), 512),
        "stn_fc3_w": w((256, n * n), 256) * 0.1,
        "stn_fc3_b": jnp.zeros((1, n * n), jnp.float32),
        "w1": w((n + n_ensemble, 64), n + n_ensemble),
        "w2": w((64, 128), 64),
        "w3": w((128, 1024), 128),
    }
    for name, ch in [("stn_bn1", 64), ("stn_bn2", 128), ("stn_bn3", 1024),
                     ("stn_bn4", 512), ("stn_bn5", 256),
                     ("bn1", 64), ("bn2", 128), ("bn3", 1024)]:
        p[name + "_g"] = 1.0 + 0.1 * jax.random.normal(next(keys), (ch,), jnp.float32)
        p[name + "_beta"] = 0.1 * jax.random.normal(next(keys), (ch,), jnp.float32)
        p[name + "_rm"] = 0.1 * jax.random.normal(next(keys), (ch,), jnp.float32)
        p[name + "_rv"] = 1.0 + 0.1 * jax.random.uniform(next(keys), (ch,), jnp.float32)
    return p


def prepare_params(raw, n=4, n_ensemble=20, mxu_dtype=jnp.bfloat16, eps=1e-5):
    """Fold eval-mode BN scales into weights and cast MXU operands to bf16."""
    def bn(name):
        scale = raw[name + "_g"] / jnp.sqrt(raw[name + "_rv"] + eps)
        bias = raw[name + "_beta"] - raw[name + "_rm"] * scale
        return scale, bias

    p = {}
    # ---- STN ----
    s1, b1 = bn("stn_bn1"); s2, b2 = bn("stn_bn2"); s3, b3 = bn("stn_bn3")
    s4, b4 = bn("stn_bn4"); s5, b5 = bn("stn_bn5")
    p["stn_w1"] = (raw["stn_w1"] * s1[None, :]).astype(mxu_dtype)[None]   # (1, n, 64)
    p["stn_b1"] = b1[None, :]
    p["stn_w2"] = (raw["stn_w2"] * s2[None, :]).astype(mxu_dtype)
    p["stn_b2"] = b2[None, :]
    p["stn_w3"] = (raw["stn_w3"] * s3[None, :]).astype(mxu_dtype)
    p["stn_b3"] = b3[None, :]
    p["stn_fc1"] = raw["stn_fc1"] * s4[None, :]
    p["stn_bn4_b"] = b4[None, :]
    p["stn_fc2"] = raw["stn_fc2"] * s5[None, :]
    p["stn_bn5_b"] = b5[None, :]
    p["stn_fc3_w"] = raw["stn_fc3_w"]
    p["stn_fc3_b"] = raw["stn_fc3_b"]
    p["iden"] = jnp.eye(n, dtype=jnp.float32).reshape(1, n * n)
    # ---- main branch ----
    t1, c1 = bn("bn1"); t2, c2 = bn("bn2"); t3, c3 = bn("bn3")
    w1f = raw["w1"] * t1[None, :]
    p["w1x"] = w1f[:n]                                 # f32; folded with trans per batch
    p["w1c"] = w1f[n:].astype(mxu_dtype)               # (ne, 64)
    p["b1"] = c1[None, :]
    p["w2"] = (raw["w2"] * t2[None, :]).astype(mxu_dtype)
    p["b2"] = c2[None, :]
    p["w3"] = (raw["w3"] * t3[None, :]).astype(mxu_dtype)
    p["b3"] = c3[None, :]
    return p


# ----------------------------------------------------------------------------
# Pure-f32 jnp reference (mirrors the PyTorch forward with eval-mode BN)
# ----------------------------------------------------------------------------
def reference_forward(x, c, raw, n=4, eps=1e-5):
    def bn(h, name):
        scale = raw[name + "_g"] / jnp.sqrt(raw[name + "_rv"] + eps)
        return (h - raw[name + "_rm"]) * scale + raw[name + "_beta"]

    B = x.shape[0]
    xb = jnp.transpose(x, (0, 2, 1))                                  # (B, N, n)
    cb = jnp.transpose(c, (0, 2, 1))                                  # (B, N, ne)
    # STN3d
    h = jax.nn.relu(bn(xb @ raw["stn_w1"], "stn_bn1"))
    h = jax.nn.relu(bn(h @ raw["stn_w2"], "stn_bn2"))
    h = jax.nn.relu(bn(h @ raw["stn_w3"], "stn_bn3"))
    g = jnp.max(h, axis=1)                                            # (B, 1024)
    g = jax.nn.relu(bn(g @ raw["stn_fc1"], "stn_bn4"))
    g = jax.nn.relu(bn(g @ raw["stn_fc2"], "stn_bn5"))
    trans = (g @ raw["stn_fc3_w"] + raw["stn_fc3_b"]
             + jnp.eye(n, dtype=jnp.float32).reshape(1, n * n)).reshape(B, n, n)
    # main branch
    xt = jnp.einsum("bnj,bjk->bnk", xb, trans)
    hc = jnp.concatenate([xt, cb], axis=-1)
    h = jax.nn.relu(bn(hc @ raw["w1"], "bn1"))
    h = jax.nn.relu(bn(h @ raw["w2"], "bn2"))
    h = bn(h @ raw["w3"], "bn3")
    return jnp.max(h, axis=1), trans


# ----------------------------------------------------------------------------
if __name__ == "__main__":
    B, n, n_ensemble, N = 2, 4, 20, 300   # N=300 exercises padding + -inf masking
    key = jax.random.PRNGKey(0)
    kx, kc, kp = jax.random.split(key, 3)

    x = jax.random.normal(kx, (B, n, N), jnp.float32)              # (B, n, n_pts)
    c = jax.random.normal(kc, (B, n_ensemble, N), jnp.float32)     # (B, n_ensemble, n_pts)
    raw = init_params(kp, n=n, n_ensemble=n_ensemble)
    params = prepare_params(raw, n=n, n_ensemble=n_ensemble)

    ref_feat, ref_trans = reference_forward(x, c, raw, n=n)

    # tile_n=128 exercises the multi-chunk running-max + masked-tail path (grid (2,3)).
    fwd_tiled = jax.jit(functools.partial(pointnetfeat_forward, n=n, tile_n=128))
    feat, trans = fwd_tiled(x, c, params)
    jax.block_until_ready((feat, trans))
    assert feat.shape == (B, 1024) and trans.shape == (B, n, n)
    assert bool(jnp.all(jnp.isfinite(feat))) and bool(jnp.all(jnp.isfinite(trans)))
    assert jnp.allclose(trans, ref_trans, rtol=0.1, atol=0.05), \
        float(jnp.max(jnp.abs(trans - ref_trans)))
    assert jnp.allclose(feat, ref_feat, rtol=0.1, atol=0.1), \
        float(jnp.max(jnp.abs(feat - ref_feat)))

    # Default (auto) tiling path: whole cloud in one padded tile of 304 points.
    fwd_auto = jax.jit(functools.partial(pointnetfeat_forward, n=n))
    feat2, trans2 = fwd_auto(x, c, params)
    jax.block_until_ready((feat2, trans2))
    assert jnp.allclose(trans2, ref_trans, rtol=0.1, atol=0.05)
    assert jnp.allclose(feat2, ref_feat, rtol=0.1, atol=0.1)

    print("KERNEL_OK")
</pallas_src>

<mosaic_0001>
module attributes {stable_mosaic.version = 11 : i64} {
  func.func @kernel(%arg0: i32, %arg1: i32, %arg2: memref<1x128x4xbf16, #tpu.memory_space<vmem>>, %arg3: memref<1x4x64xbf16, #tpu.memory_space<vmem>>, %arg4: memref<1x64xf32, #tpu.memory_space<vmem>>, %arg5: memref<64x128xbf16, #tpu.memory_space<vmem>>, %arg6: memref<1x128xf32, #tpu.memory_space<vmem>>, %arg7: memref<128x1024xbf16, #tpu.memory_space<vmem>>, %arg8: memref<1x1024xf32, #tpu.memory_space<vmem>>, %arg9: memref<1x1x1024xf32, #tpu.memory_space<vmem>>) attributes {dimension_semantics = [#tpu.dimension_semantics<parallel>, #tpu.dimension_semantics<arbitrary>], iteration_bounds = array<i64: 2, 3>, scalar_prefetch = 0 : i64, scratch_operands = 0 : i64, tpu.core_type = #tpu.core_type<tc>, window_params = [{transform_indices = @transform_0, window_bounds = array<i64: 1, 128, 4>}, {pipeline_mode = #tpu.pipeline_mode<synchronous>, transform_indices = @transform_1, window_bounds = array<i64: 1, 4, 64>}, {pipeline_mode = #tpu.pipeline_mode<synchronous>, transform_indices = @transform_2, window_bounds = array<i64: 1, 64>}, {pipeline_mode = #tpu.pipeline_mode<synchronous>, transform_indices = @transform_3, window_bounds = array<i64: 64, 128>}, {pipeline_mode = #tpu.pipeline_mode<synchronous>, transform_indices = @transform_4, window_bounds = array<i64: 1, 128>}, {pipeline_mode = #tpu.pipeline_mode<synchronous>, transform_indices = @transform_5, window_bounds = array<i64: 128, 1024>}, {pipeline_mode = #tpu.pipeline_mode<synchronous>, transform_indices = @transform_6, window_bounds = array<i64: 1, 1024>}, {transform_indices = @transform_7, window_bounds = array<i64: 1, 1, 1024>}]} {
    %c0_i32 = arith.constant 0 : i32
    %0 = arith.cmpi eq, %arg1, %c0_i32 : i32
    %1 = arith.extui %0 : i1 to i32
    %c0_i32_0 = arith.constant 0 : i32
    %2 = arith.cmpi ne, %1, %c0_i32_0 : i32
    scf.if %2 {
      %cst_29 = arith.constant 0xFF800000 : f32
      %47 = vector.broadcast %cst_29 : f32 to vector<1x1x1024xf32>
      %c0_30 = arith.constant 0 : index
      %c0_31 = arith.constant 0 : index
      %c0_32 = arith.constant 0 : index
      %48 = vector.load %arg9[%c0_30, %c0_31, %c0_32] : memref<1x1x1024xf32, #tpu.memory_space<vmem>>, vector<1x1x1024xf32>
      tpu.vector_store %arg9[%c0_30, %c0_31, %c0_32], %47 {strides = array<i32>} : memref<1x1x1024xf32, #tpu.memory_space<vmem>>, vector<1x1x1024xf32>,
    } else {
    }
    %c0 = arith.constant 0 : index
    %c0_1 = arith.constant 0 : index
    %c0_2 = arith.constant 0 : index
    %3 = vector.load %arg2[%c0, %c0_1, %c0_2] : memref<1x128x4xbf16, #tpu.memory_space<vmem>>, vector<1x128x4xbf16>
    %4 = vector.shape_cast %3 : vector<1x128x4xbf16> to vector<128x4xbf16>
    %c0_3 = arith.constant 0 : index
    %c0_4 = arith.constant 0 : index
    %c0_5 = arith.constant 0 : index
    %5 = vector.load %arg3[%c0_3, %c0_4, %c0_5] : memref<1x4x64xbf16, #tpu.memory_space<vmem>>, vector<1x4x64xbf16>
    %6 = vector.shape_cast %5 : vector<1x4x64xbf16> to vector<4x64xbf16>
    %cst = arith.constant dense<0.000000e+00> : vector<128x64xf32>
    %7 = tpu.matmul %4, %6, %cst {dimension_numbers = #tpu.dot_dimension_numbers<[1], [0], [0], [1], [0, 0, 1, 1], [], []>} : vector<128x4xbf16>, vector<4x64xbf16>, vector<128x64xf32> -> vector<128x64xf32>
    %c0_6 = arith.constant 0 : index
    %c0_7 = arith.constant 0 : index
    %8 = vector.load %arg4[%c0_6, %c0_7] : memref<1x64xf32, #tpu.memory_space<vmem>>, vector<1x64xf32>
    %9 = vector.broadcast %8 : vector<1x64xf32> to vector<128x64xf32>
    %10 = arith.addf %7, %9 : vector<128x64xf32>
    %cst_8 = arith.constant 0.000000e+00 : f32
    %11 = vector.broadcast %cst_8 : f32 to vector<128x64xf32>
    %12 = arith.maximumf %10, %11 : vector<128x64xf32>
    %13 = arith.truncf %12 : vector<128x64xf32> to vector<128x64xbf16>
    %c0_9 = arith.constant 0 : index
    %c0_10 = arith.constant 0 : index
    %14 = vector.load %arg5[%c0_9, %c0_10] : memref<64x128xbf16, #tpu.memory_space<vmem>>, vector<64x128xbf16>
    %cst_11 = arith.constant dense<0.000000e+00> : vector<128x128xf32>
    %15 = tpu.matmul %13, %14, %cst_11 {dimension_numbers = #tpu.dot_dimension_numbers<[1], [0], [0], [1], [0, 0, 1, 1], [], []>} : vector<128x64xbf16>, vector<64x128xbf16>, vector<128x128xf32> -> vector<128x128xf32>
    %c0_12 = arith.constant 0 : index
    %c0_13 = arith.constant 0 : index
    %16 = vector.load %arg6[%c0_12, %c0_13] : memref<1x128xf32, #tpu.memory_space<vmem>>, vector<1x128xf32>
    %17 = vector.broadcast %16 : vector<1x128xf32> to vector<128x128xf32>
    %18 = arith.addf %15, %17 : vector<128x128xf32>
    %cst_14 = arith.constant 0.000000e+00 : f32
    %19 = vector.broadcast %cst_14 : f32 to vector<128x128xf32>
    %20 = arith.maximumf %18, %19 : vector<128x128xf32>
    %21 = arith.truncf %20 : vector<128x128xf32> to vector<128x128xbf16>
    %c0_15 = arith.constant 0 : index
    %c0_16 = arith.constant 0 : index
    %22 = vector.load %arg7[%c0_15, %c0_16] : memref<128x1024xbf16, #tpu.memory_space<vmem>>, vector<128x1024xbf16>
    %cst_17 = arith.constant dense<0.000000e+00> : vector<128x1024xf32>
    %23 = tpu.matmul %21, %22, %cst_17 {dimension_numbers = #tpu.dot_dimension_numbers<[1], [0], [0], [1], [0, 0, 1, 1], [], []>} : vector<128x128xbf16>, vector<128x1024xbf16>, vector<128x1024xf32> -> vector<128x1024xf32>
    %c0_18 = arith.constant 0 : index
    %c0_19 = arith.constant 0 : index
    %24 = vector.load %arg8[%c0_18, %c0_19] : memref<1x1024xf32, #tpu.memory_space<vmem>>, vector<1x1024xf32>
    %25 = vector.broadcast %24 : vector<1x1024xf32> to vector<128x1024xf32>
    %26 = arith.addf %23, %25 : vector<128x1024xf32>
    %cst_20 = arith.constant 0.000000e+00 : f32
    %27 = vector.broadcast %cst_20 : f32 to vector<128x1024xf32>
    %28 = arith.maximumf %26, %27 : vector<128x1024xf32>
    %29 = tpu.iota {dimensions = array<i32: 0>} : vector<128x1xi32>
    %c128_i32 = arith.constant 128 : i32
    %30 = arith.muli %arg1, %c128_i32 : i32
    %31 = vector.broadcast %30 : i32 to vector<128x1xi32>
    %32 = arith.addi %31, %29 : vector<128x1xi32>
    %c300_i32 = arith.constant 300 : i32
    %33 = vector.broadcast %c300_i32 : i32 to vector<128x1xi32>
    %34 = arith.cmpi slt, %32, %33 : vector<128x1xi32>
    %cst_21 = arith.constant 0xFF800000 : f32
    %35 = vector.shape_cast %34 : vector<128x1xi1> to vector<128x1xi1>
    %36 = vector.broadcast %35 : vector<128x1xi1> to vector<128x1024xi1>
    %37 = vector.broadcast %cst_21 : f32 to vector<128x1024xf32>
    %38 = arith.select %36, %28, %37 : vector<128x1024xi1>, vector<128x1024xf32>
    %c0_22 = arith.constant 0 : index
    %c0_23 = arith.constant 0 : index
    %c0_24 = arith.constant 0 : index
    %39 = vector.load %arg9[%c0_22, %c0_23, %c0_24] : memref<1x1x1024xf32, #tpu.memory_space<vmem>>, vector<1x1x1024xf32>
    %40 = vector.shape_cast %39 : vector<1x1x1024xf32> to vector<1x1024xf32>
    %cst_25 = arith.constant dense<0xFF800000> : vector<1024xf32>
    %41 = vector.multi_reduction <maximumf>, %38, %cst_25 [0] : vector<128x1024xf32> to vector<1024xf32>
    %42 = vector.shape_cast %41 : vector<1024xf32> to vector<1x1024xf32>
    %43 = arith.maximumf %40, %42 : vector<1x1024xf32>
    %c0_26 = arith.constant 0 : index
    %c0_27 = arith.constant 0 : index
    %c0_28 = arith.constant 0 : index
    %44 = vector.load %arg9[%c0_26, %c0_27, %c0_28] : memref<1x1x1024xf32, #tpu.memory_space<vmem>>, vector<1x1x1024xf32>
    %45 = vector.shape_cast %44 : vector<1x1x1024xf32> to vector<1x1024xf32>
    %46 = vector.shape_cast %43 : vector<1x1024xf32> to vector<1x1x1024xf32>
    tpu.vector_store %arg9[%c0_26, %c0_27, %c0_28], %46 {strides = array<i32>} : memref<1x1x1024xf32, #tpu.memory_space<vmem>>, vector<1x1x1024xf32>,
    return
  }
  func.func @transform_0(%arg0: i32, %arg1: i32) -> (i32, i32, i32) {
    %c0_i32 = arith.constant 0 : i32
    %c0_i32_0 = arith.constant 0 : i32
    return %arg0, %arg1, %c0_i32 : i32, i32, i32
  }
  func.func @transform_1(%arg0: i32, %arg1: i32) -> (i32, i32, i32) {
    %c0_i32 = arith.constant 0 : i32
    %c0_i32_0 = arith.constant 0 : i32
    %c0_i32_1 = arith.constant 0 : i32
    %c0_i32_2 = arith.constant 0 : i32
    return %c0_i32, %c0_i32_0, %c0_i32_1 : i32, i32, i32
  }
  func.func @transform_2(%arg0: i32, %arg1: i32) -> (i32, i32) {
    %c0_i32 = arith.constant 0 : i32
    %c0_i32_0 = arith.constant 0 : i32
    %c0_i32_1 = arith.constant 0 : i32
    return %c0_i32, %c0_i32_0 : i32, i32
  }
  func.func @transform_3(%arg0: i32, %arg1: i32) -> (i32, i32) {
    %c0_i32 = arith.constant 0 : i32
    %c0_i32_0 = arith.constant 0 : i32
    %c0_i32_1 = arith.constant 0 : i32
    return %c0_i32, %c0_i32_0 : i32, i32
  }
  func.func @transform_4(%arg0: i32, %arg1: i32) -> (i32, i32) {
    %c0_i32 = arith.constant 0 : i32
    %c0_i32_0 = arith.constant 0 : i32
    %c0_i32_1 = arith.constant 0 : i32
    return %c0_i32, %c0_i32_0 : i32, i32
  }
  func.func @transform_5(%arg0: i32, %arg1: i32) -> (i32, i32) {
    %c0_i32 = arith.constant 0 : i32
    %c0_i32_0 = arith.constant 0 : i32
    %c0_i32_1 = arith.constant 0 : i32
    return %c0_i32, %c0_i32_0 : i32, i32
  }
  func.func @transform_6(%arg0: i32, %arg1: i32) -> (i32, i32) {
    %c0_i32 = arith.constant 0 : i32
    %c0_i32_0 = arith.constant 0 : i32
    %c0_i32_1 = arith.constant 0 : i32
    return %c0_i32, %c0_i32_0 : i32, i32
  }
  func.func @transform_7(%arg0: i32, %arg1: i32) -> (i32, i32, i32) {
    %c0_i32 = arith.constant 0 : i32
    %c0_i32_0 = arith.constant 0 : i32
    %c0_i32_1 = arith.constant 0 : i32
    return %arg0, %c0_i32, %c0_i32_0 : i32, i32, i32
  }
}

module attributes {stable_mosaic.version = 11 : i64} {
  func.func @kernel(%arg0: i32, %arg1: i32, %arg2: memref<1x128x4xbf16, #tpu.memory_space<vmem>>, %arg3: memref<1x128x20xbf16, #tpu.memory_space<vmem>>, %arg4: memref<1x4x64xbf16, #tpu.memory_space<vmem>>, %arg5: memref<20x64xbf16, #tpu.memory_space<vmem>>, %arg6: memref<1x64xf32, #tpu.memory_space<vmem>>, %arg7: memref<64x128xbf16, #tpu.memory_space<vmem>>, %arg8: memref<1x128xf32, #tpu.memory_space<vmem>>, %arg9: memref<128x1024xbf16, #tpu.memory_space<vmem>>, %arg10: memref<1x1024xf32, #tpu.memory_space<vmem>>, %arg11: memref<1x1x1024xf32, #tpu.memory_space<vmem>>) attributes {dimension_semantics = [#tpu.dimension_semantics<parallel>, #tpu.dimension_semantics<arbitrary>], iteration_bounds = array<i64: 2, 3>, scalar_prefetch = 0 : i64, scratch_operands = 0 : i64, tpu.core_type = #tpu.core_type<tc>, window_params = [{transform_indices = @transform_0, window_bounds = array<i64: 1, 128, 4>}, {transform_indices = @transform_1, window_bounds = array<i64: 1, 128, 20>}, {transform_indices = @transform_2, window_bounds = array<i64: 1, 4, 64>}, {pipeline_mode = #tpu.pipeline_mode<synchronous>, transform_indices = @transform_3, window_bounds = array<i64: 20, 64>}, {pipeline_mode = #tpu.pipeline_mode<synchronous>, transform_indices = @transform_4, window_bounds = array<i64: 1, 64>}, {pipeline_mode = #tpu.pipeline_mode<synchronous>, transform_indices = @transform_5, window_bounds = array<i64: 64, 128>}, {pipeline_mode = #tpu.pipeline_mode<synchronous>, transform_indices = @transform_6, window_bounds = array<i64: 1, 128>}, {pipeline_mode = #tpu.pipeline_mode<synchronous>, transform_indices = @transform_7, window_bounds = array<i64: 128, 1024>}, {pipeline_mode = #tpu.pipeline_mode<synchronous>, transform_indices = @transform_8, window_bounds = array<i64: 1, 1024>}, {transform_indices = @transform_9, window_bounds = array<i64: 1, 1, 1024>}]} {
    %c0_i32 = arith.constant 0 : i32
    %0 = arith.cmpi eq, %arg1, %c0_i32 : i32
    %1 = arith.extui %0 : i1 to i32
    %c0_i32_0 = arith.constant 0 : i32
    %2 = arith.cmpi ne, %1, %c0_i32_0 : i32
    scf.if %2 {
      %cst_34 = arith.constant 0xFF800000 : f32
      %50 = vector.broadcast %cst_34 : f32 to vector<1x1x1024xf32>
      %c0_35 = arith.constant 0 : index
      %c0_36 = arith.constant 0 : index
      %c0_37 = arith.constant 0 : index
      %51 = vector.load %arg11[%c0_35, %c0_36, %c0_37] : memref<1x1x1024xf32, #tpu.memory_space<vmem>>, vector<1x1x1024xf32>
      tpu.vector_store %arg11[%c0_35, %c0_36, %c0_37], %50 {strides = array<i32>} : memref<1x1x1024xf32, #tpu.memory_space<vmem>>, vector<1x1x1024xf32>,
    } else {
    }
    %c0 = arith.constant 0 : index
    %c0_1 = arith.constant 0 : index
    %c0_2 = arith.constant 0 : index
    %3 = vector.load %arg2[%c0, %c0_1, %c0_2] : memref<1x128x4xbf16, #tpu.memory_space<vmem>>, vector<1x128x4xbf16>
    %4 = vector.shape_cast %3 : vector<1x128x4xbf16> to vector<128x4xbf16>
    %c0_3 = arith.constant 0 : index
    %c0_4 = arith.constant 0 : index
    %c0_5 = arith.constant 0 : index
    %5 = vector.load %arg4[%c0_3, %c0_4, %c0_5] : memref<1x4x64xbf16, #tpu.memory_space<vmem>>, vector<1x4x64xbf16>
    %6 = vector.shape_cast %5 : vector<1x4x64xbf16> to vector<4x64xbf16>
    %cst = arith.constant dense<0.000000e+00> : vector<128x64xf32>
    %7 = tpu.matmul %4, %6, %cst {dimension_numbers = #tpu.dot_dimension_numbers<[1], [0], [0], [1], [0, 0, 1, 1], [], []>} : vector<128x4xbf16>, vector<4x64xbf16>, vector<128x64xf32> -> vector<128x64xf32>
    %c0_6 = arith.constant 0 : index
    %c0_7 = arith.constant 0 : index
    %c0_8 = arith.constant 0 : index
    %8 = vector.load %arg3[%c0_6, %c0_7, %c0_8] : memref<1x128x20xbf16, #tpu.memory_space<vmem>>, vector<1x128x20xbf16>
    %9 = vector.shape_cast %8 : vector<1x128x20xbf16> to vector<128x20xbf16>
    %c0_9 = arith.constant 0 : index
    %c0_10 = arith.constant 0 : index
    %10 = vector.load %arg5[%c0_9, %c0_10] : memref<20x64xbf16, #tpu.memory_space<vmem>>, vector<20x64xbf16>
    %cst_11 = arith.constant dense<0.000000e+00> : vector<128x64xf32>
    %11 = tpu.matmul %9, %10, %cst_11 {dimension_numbers = #tpu.dot_dimension_numbers<[1], [0], [0], [1], [0, 0, 1, 1], [], []>} : vector<128x20xbf16>, vector<20x64xbf16>, vector<128x64xf32> -> vector<128x64xf32>
    %12 = arith.addf %7, %11 : vector<128x64xf32>
    %c0_12 = arith.constant 0 : index
    %c0_13 = arith.constant 0 : index
    %13 = vector.load %arg6[%c0_12, %c0_13] : memref<1x64xf32, #tpu.memory_space<vmem>>, vector<1x64xf32>
    %14 = vector.broadcast %13 : vector<1x64xf32> to vector<128x64xf32>
    %15 = arith.addf %12, %14 : vector<128x64xf32>
    %cst_14 = arith.constant 0.000000e+00 : f32
    %16 = vector.broadcast %cst_14 : f32 to vector<128x64xf32>
    %17 = arith.maximumf %15, %16 : vector<128x64xf32>
    %18 = arith.truncf %17 : vector<128x64xf32> to vector<128x64xbf16>
    %c0_15 = arith.constant 0 : index
    %c0_16 = arith.constant 0 : index
    %19 = vector.load %arg7[%c0_15, %c0_16] : memref<64x128xbf16, #tpu.memory_space<vmem>>, vector<64x128xbf16>
    %cst_17 = arith.constant dense<0.000000e+00> : vector<128x128xf32>
    %20 = tpu.matmul %18, %19, %cst_17 {dimension_numbers = #tpu.dot_dimension_numbers<[1], [0], [0], [1], [0, 0, 1, 1], [], []>} : vector<128x64xbf16>, vector<64x128xbf16>, vector<128x128xf32> -> vector<128x128xf32>
    %c0_18 = arith.constant 0 : index
    %c0_19 = arith.constant 0 : index
    %21 = vector.load %arg8[%c0_18, %c0_19] : memref<1x128xf32, #tpu.memory_space<vmem>>, vector<1x128xf32>
    %22 = vector.broadcast %21 : vector<1x128xf32> to vector<128x128xf32>
    %23 = arith.addf %20, %22 : vector<128x128xf32>
    %cst_20 = arith.constant 0.000000e+00 : f32
    %24 = vector.broadcast %cst_20 : f32 to vector<128x128xf32>
    %25 = arith.maximumf %23, %24 : vector<128x128xf32>
    %26 = arith.truncf %25 : vector<128x128xf32> to vector<128x128xbf16>
    %c0_21 = arith.constant 0 : index
    %c0_22 = arith.constant 0 : index
    %27 = vector.load %arg9[%c0_21, %c0_22] : memref<128x1024xbf16, #tpu.memory_space<vmem>>, vector<128x1024xbf16>
    %cst_23 = arith.constant dense<0.000000e+00> : vector<128x1024xf32>
    %28 = tpu.matmul %26, %27, %cst_23 {dimension_numbers = #tpu.dot_dimension_numbers<[1], [0], [0], [1], [0, 0, 1, 1], [], []>} : vector<128x128xbf16>, vector<128x1024xbf16>, vector<128x1024xf32> -> vector<128x1024xf32>
    %c0_24 = arith.constant 0 : index
    %c0_25 = arith.constant 0 : index
    %29 = vector.load %arg10[%c0_24, %c0_25] : memref<1x1024xf32, #tpu.memory_space<vmem>>, vector<1x1024xf32>
    %30 = vector.broadcast %29 : vector<1x1024xf32> to vector<128x1024xf32>
    %31 = arith.addf %28, %30 : vector<128x1024xf32>
    %32 = tpu.iota {dimensions = array<i32: 0>} : vector<128x1xi32>
    %c128_i32 = arith.constant 128 : i32
    %33 = arith.muli %arg1, %c128_i32 : i32
    %34 = vector.broadcast %33 : i32 to vector<128x1xi32>
    %35 = arith.addi %34, %32 : vector<128x1xi32>
    %c300_i32 = arith.constant 300 : i32
    %36 = vector.broadcast %c300_i32 : i32 to vector<128x1xi32>
    %37 = arith.cmpi slt, %35, %36 : vector<128x1xi32>
    %cst_26 = arith.constant 0xFF800000 : f32
    %38 = vector.shape_cast %37 : vector<128x1xi1> to vector<128x1xi1>
    %39 = vector.broadcast %38 : vector<128x1xi1> to vector<128x1024xi1>
    %40 = vector.broadcast %cst_26 : f32 to vector<128x1024xf32>
    %41 = arith.select %39, %31, %40 : vector<128x1024xi1>, vector<128x1024xf32>
    %c0_27 = arith.constant 0 : index
    %c0_28 = arith.constant 0 : index
    %c0_29 = arith.constant 0 : index
    %42 = vector.load %arg11[%c0_27, %c0_28, %c0_29] : memref<1x1x1024xf32, #tpu.memory_space<vmem>>, vector<1x1x1024xf32>
    %43 = vector.shape_cast %42 : vector<1x1x1024xf32> to vector<1x1024xf32>
    %cst_30 = arith.constant dense<0xFF800000> : vector<1024xf32>
    %44 = vector.multi_reduction <maximumf>, %41, %cst_30 [0] : vector<128x1024xf32> to vector<1024xf32>
    %45 = vector.shape_cast %44 : vector<1024xf32> to vector<1x1024xf32>
    %46 = arith.maximumf %43, %45 : vector<1x1024xf32>
    %c0_31 = arith.constant 0 : index
    %c0_32 = arith.constant 0 : index
    %c0_33 = arith.constant 0 : index
    %47 = vector.load %arg11[%c0_31, %c0_32, %c0_33] : memref<1x1x1024xf32, #tpu.memory_space<vmem>>, vector<1x1x1024xf32>
    %48 = vector.shape_cast %47 : vector<1x1x1024xf32> to vector<1x1024xf32>
    %49 = vector.shape_cast %46 : vector<1x1024xf32> to vector<1x1x1024xf32>
    tpu.vector_store %arg11[%c0_31, %c0_32, %c0_33], %49 {strides = array<i32>} : memref<1x1x1024xf32, #tpu.memory_space<vmem>>, vector<1x1x1024xf32>,
    return
  }
  func.func @transform_0(%arg0: i32, %arg1: i32) -> (i32, i32, i32) {
    %c0_i32 = arith.constant 0 : i32
    %c0_i32_0 = arith.constant 0 : i32
    return %arg0, %arg1, %c0_i32 : i32, i32, i32
  }
  func.func @transform_1(%arg0: i32, %arg1: i32) -> (i32, i32, i32) {
    %c0_i32 = arith.constant 0 : i32
    %c0_i32_0 = arith.constant 0 : i32
    return %arg0, %arg1, %c0_i32 : i32, i32, i32
  }
  func.func @transform_2(%arg0: i32, %arg1: i32) -> (i32, i32, i32) {
    %c0_i32 = arith.constant 0 : i32
    %c0_i32_0 = arith.constant 0 : i32
    %c0_i32_1 = arith.constant 0 : i32
    return %arg0, %c0_i32, %c0_i32_0 : i32, i32, i32
  }
  func.func @transform_3(%arg0: i32, %arg1: i32) -> (i32, i32) {
    %c0_i32 = arith.constant 0 : i32
    %c0_i32_0 = arith.constant 0 : i32
    %c0_i32_1 = arith.constant 0 : i32
    return %c0_i32, %c0_i32_0 : i32, i32
  }
  func.func @transform_4(%arg0: i32, %arg1: i32) -> (i32, i32) {
    %c0_i32 = arith.constant 0 : i32
    %c0_i32_0 = arith.constant 0 : i32
    %c0_i32_1 = arith.constant 0 : i32
    return %c0_i32, %c0_i32_0 : i32, i32
  }
  func.func @transform_5(%arg0: i32, %arg1: i32) -> (i32, i32) {
    %c0_i32 = arith.constant 0 : i32
    %c0_i32_0 = arith.constant 0 : i32
    %c0_i32_1 = arith.constant 0 : i32
    return %c0_i32, %c0_i32_0 : i32, i32
  }
  func.func @transform_6(%arg0: i32, %arg1: i32) -> (i32, i32) {
    %c0_i32 = arith.constant 0 : i32
    %c0_i32_0 = arith.constant 0 : i32
    %c0_i32_1 = arith.constant 0 : i32
    return %c0_i32, %c0_i32_0 : i32, i32
  }
  func.func @transform_7(%arg0: i32, %arg1: i32) -> (i32, i32) {
    %c0_i32 = arith.constant 0 : i32
    %c0_i32_0 = arith.constant 0 : i32
    %c0_i32_1 = arith.constant 0 : i32
    return %c0_i32, %c0_i32_0 : i32, i32
  }
  func.func @transform_8(%arg0: i32, %arg1: i32) -> (i32, i32) {
    %c0_i32 = arith.constant 0 : i32
    %c0_i32_0 = arith.constant 0 : i32
    %c0_i32_1 = arith.constant 0 : i32
    return %c0_i32, %c0_i32_0 : i32, i32
  }
  func.func @transform_9(%arg0: i32, %arg1: i32) -> (i32, i32, i32) {
    %c0_i32 = arith.constant 0 : i32
    %c0_i32_0 = arith.constant 0 : i32
    %c0_i32_1 = arith.constant 0 : i32
    return %arg0, %c0_i32, %c0_i32_0 : i32, i32, i32
  }
}

</mosaic_0001>

<llo_original>
// kernel: pointnetfeat_forward.3
$region0: #{pointnetfeat_forward.3}
  #allocation0 [shape = 'u32[]', space=smem, size = 0x4, offset = 0x4, fixed_abs, tag = 'smem constant byte address 0x4 - core index']
  #allocation1 [shape = 'u32[144,128]{1,0:T(1,128)}', space=vmem, size = 0x12000, scoped, tag = 'internal scratch']
  %s0 = inlined_call_operand.vmem [shape: bf16[2,384,4], index: 0, kind: input, shape index: {}]
  %s1 = inlined_call_operand.vmem [shape: bf16[2,384,20], index: 1, kind: input, shape index: {}]
  %s2 = inlined_call_operand.vmem [shape: bf16[2,4,64], index: 2, kind: input, shape index: {}]
  %s3 = inlined_call_operand.vmem [shape: bf16[20,64], index: 3, kind: input, shape index: {}]
  %s4 = inlined_call_operand.vmem [shape: f32[1,64], index: 4, kind: input, shape index: {}]
  %s5 = inlined_call_operand.vmem [shape: bf16[64,128], index: 5, kind: input, shape index: {}]
  %s6 = inlined_call_operand.vmem [shape: f32[1,128], index: 6, kind: input, shape index: {}]
  %s7 = inlined_call_operand.vmem [shape: bf16[128,1024], index: 7, kind: input, shape index: {}]
  %s8 = inlined_call_operand.vmem [shape: f32[1,1024], index: 8, kind: input, shape index: {}]
  %s9 = inlined_call_operand.vmem [shape: f32[2,1,1024], index: 9, kind: output, shape index: {}]
  %s10 = sld [smem:[#allocation0]]
  $region73: #{pointnetfeat_forward.3} parent=0
    _
  %s12 = ssub.s32 1, %s10
  %s13 = scalar_select 0, %s12, %s10
  loop: start=0, step=1, limit=8
  $region2: #{pointnetfeat_forward.3} parent=0 // loop_pre_header
    _
  $region3: #{pointnetfeat_forward.3} parent=0 // loop_header
    %s15 = sphi 0, %s19
    %p16 = scmp.ge.s32.totalorder %s15, 8
    %s22 = sphi 0, %s34
    %s23 = sphi 0, %s30
    %s24 = sphi 0, %s22
    %s25 = sphi 0, %s23
    %s26 = sphi 0, %s24
    %s27 = sphi 0, %s25
    %s39 = sphi 0, %s41
    %s42 = sphi 0, %s39
    %s43 = sphi 0, %s42
    %s59 = sphi 0, %s43
    %s67 = sphi 0, %s69
    %s70 = sphi 0, %s67
    %s71 = sphi 0, %s70
    %s87 = sphi 0, %s71
    %s93 = sphi 0, %s95
    %s96 = sphi 0, %s93
    %s97 = sphi 0, %s96
    %s113 = sphi 0, %s97
    %s117 = sphi 0, %s117
    %s119 = sphi 0, %s117
    %s120 = sphi 0, %s119
    %s134 = sphi 0, %s120
    %s138 = sphi 0, %s138
    %s140 = sphi 0, %s138
    %s141 = sphi 0, %s140
    %s155 = sphi 0, %s141
    %s159 = sphi 0, %s159
    %s161 = sphi 0, %s159
    %s162 = sphi 0, %s161
    %s176 = sphi 0, %s162
    %s180 = sphi 0, %s180
    %s182 = sphi 0, %s180
    %s183 = sphi 0, %s182
    %s197 = sphi 0, %s183
    %s201 = sphi 0, %s201
    %s203 = sphi 0, %s201
    %s204 = sphi 0, %s203
    %s218 = sphi 0, %s204
    %s222 = sphi 0, %s222
    %s224 = sphi 0, %s222
    %s225 = sphi 0, %s224
    %s239 = sphi 0, %s225
    %s245 = sphi 0, %s247
    %s248 = sphi 0, %s245
    %s249 = sphi 0, %s248
    %s265 = sphi 0, %s249
  $region4: #{pointnetfeat_forward.3} parent=0 // loop_header_branch
    %18 = sbr.rel (%p16) target = $region8
  $region5: #{pointnetfeat_forward.3} parent=0 // loop_body
    %s20 = ssub.s32 %s15, 1
    %s21 = ssub.s32 %s15, 2
    %s28 = sadd.s32 1, %s23
    %p29 = scmp.ge.s32.totalorder %s28, 3
    %s30 = scalar_select %p29, 0, %s28
    %s31 = sadd.s32 1, %s22
    %s32 = scalar_select %p29, %s31, %s22
    %p33 = scmp.ge.s32.totalorder %s32, 2
    %s34 = scalar_select %p33, 0, %s32
    %s35 = ssub.s32 %s22, %s34
    %s36 = ssub.s32 %s23, %s30
    %s37 = sor.u32 %s35, %s36
    %p38 = scmp.eq.s32.totalorder %s37, 0
    %s40 = sadd.s32 %s39, 1
    %s41 = scalar_select %p38, %s39, %s40
    %p44 = pneg %p38
    %p45 = scmp.eq.s32.totalorder %s15, 5
    %p46 = por %p44, %p45
    %p47 = scmp.ne.s32.totalorder %s39, %s42
    %p48 = scmp.eq.s32.totalorder %s15, 0
    %p49 = por %p47, %p48
    %p50 = scmp.ne.s32.totalorder %s39, %s42
    %p51 = scmp.eq.s32.totalorder %s20, 5
    %p52 = por %p50, %p51
    %p53 = scmp.ne.s32.totalorder %s42, %s43
    %p54 = scmp.eq.s32.totalorder %s20, 0
    %p55 = por %p53, %p54
    %p56 = scmp.ne.s32.totalorder %s42, %s43
    %p57 = scmp.eq.s32.totalorder %s21, 5
    %p58 = por %p56, %p57
    %p60 = scmp.ne.s32.totalorder %s43, %s59
    %p61 = scmp.eq.s32.totalorder %s21, 0
    %p62 = por %p60, %p61
    %s63 = ssub.s32 %s22, %s34
    %s64 = ssub.s32 %s23, %s30
    %s65 = sor.u32 %s63, %s64
    %p66 = scmp.eq.s32.totalorder %s65, 0
    %s68 = sadd.s32 %s67, 1
    %s69 = scalar_select %p66, %s67, %s68
    %p72 = pneg %p66
    %p73 = scmp.eq.s32.totalorder %s15, 5
    %p74 = por %p72, %p73
    %p75 = scmp.ne.s32.totalorder %s67, %s70
    %p76 = scmp.eq.s32.totalorder %s15, 0
    %p77 = por %p75, %p76
    %p78 = scmp.ne.s32.totalorder %s67, %s70
    %p79 = scmp.eq.s32.totalorder %s20, 5
    %p80 = por %p78, %p79
    %p81 = scmp.ne.s32.totalorder %s70, %s71
    %p82 = scmp.eq.s32.totalorder %s20, 0
    %p83 = por %p81, %p82
    %p84 = scmp.ne.s32.totalorder %s70, %s71
    %p85 = scmp.eq.s32.totalorder %s21, 5
    %p86 = por %p84, %p85
    %p88 = scmp.ne.s32.totalorder %s71, %s87
    %p89 = scmp.eq.s32.totalorder %s21, 0
    %p90 = por %p88, %p89
    %s91 = ssub.s32 %s22, %s34
    %p92 = scmp.eq.s32.totalorder %s91, 0
    %s94 = sadd.s32 %s93, 1
    %s95 = scalar_select %p92, %s93, %s94
    %p98 = pneg %p92
    %p99 = scmp.eq.s32.totalorder %s15, 5
    %p100 = por %p98, %p99
    %p101 = scmp.ne.s32.totalorder %s93, %s96
    %p102 = scmp.eq.s32.totalorder %s15, 0
    %p103 = por %p101, %p102
    %p104 = scmp.ne.s32.totalorder %s93, %s96
    %p105 = scmp.eq.s32.totalorder %s20, 5
    %p106 = por %p104, %p105
    %p107 = scmp.ne.s32.totalorder %s96, %s97
    %p108 = scmp.eq.s32.totalorder %s20, 0
    %p109 = por %p107, %p108
    %p110 = scmp.ne.s32.totalorder %s96, %s97
    %p111 = scmp.eq.s32.totalorder %s21, 5
    %p112 = por %p110, %p111
    %p114 = scmp.ne.s32.totalorder %s97, %s113
    %p115 = scmp.eq.s32.totalorder %s21, 0
    %p116 = por %p114, %p115
    %s118 = sadd.s32 %s117, 1
    %p121 = scmp.eq.s32.totalorder %s15, 5
    %p122 = scmp.ne.s32.totalorder %s117, %s119
    %p123 = scmp.eq.s32.totalorder %s15, 0
    %p124 = por %p122, %p123
    %p125 = scmp.ne.s32.totalorder %s117, %s119
    %p126 = scmp.eq.s32.totalorder %s20, 5
    %p127 = por %p125, %p126
    %p128 = scmp.ne.s32.totalorder %s119, %s120
    %p129 = scmp.eq.s32.totalorder %s20, 0
    %p130 = por %p128, %p129
    %p131 = scmp.ne.s32.totalorder %s119, %s120
    %p132 = scmp.eq.s32.totalorder %s21, 5
    %p133 = por %p131, %p132
    %p135 = scmp.ne.s32.totalorder %s120, %s134
    %p136 = scmp.eq.s32.totalorder %s21, 0
    %p137 = por %p135, %p136
    %s139 = sadd.s32 %s138, 1
    %p142 = scmp.eq.s32.totalorder %s15, 5
    %p143 = scmp.ne.s32.totalorder %s138, %s140
    %p144 = scmp.eq.s32.totalorder %s15, 0
    %p145 = por %p143, %p144
    %p146 = scmp.ne.s32.totalorder %s138, %s140
    %p147 = scmp.eq.s32.totalorder %s20, 5
    %p148 = por %p146, %p147
    %p149 = scmp.ne.s32.totalorder %s140, %s141
    %p150 = scmp.eq.s32.totalorder %s20, 0
    %p151 = por %p149, %p150
    %p152 = scmp.ne.s32.totalorder %s140, %s141
    %p153 = scmp.eq.s32.totalorder %s21, 5
    %p154 = por %p152, %p153
    %p156 = scmp.ne.s32.totalorder %s141, %s155
    %p157 = scmp.eq.s32.totalorder %s21, 0
    %p158 = por %p156, %p157
    %s160 = sadd.s32 %s159, 1
    %p163 = scmp.eq.s32.totalorder %s15, 5
    %p164 = scmp.ne.s32.totalorder %s159, %s161
    %p165 = scmp.eq.s32.totalorder %s15, 0
    %p166 = por %p164, %p165
    %p167 = scmp.ne.s32.totalorder %s159, %s161
    %p168 = scmp.eq.s32.totalorder %s20, 5
    %p169 = por %p167, %p168
    %p170 = scmp.ne.s32.totalorder %s161, %s162
    %p171 = scmp.eq.s32.totalorder %s20, 0
    %p172 = por %p170, %p171
    %p173 = scmp.ne.s32.totalorder %s161, %s162
    %p174 = scmp.eq.s32.totalorder %s21, 5
    %p175 = por %p173, %p174
    %p177 = scmp.ne.s32.totalorder %s162, %s176
    %p178 = scmp.eq.s32.totalorder %s21, 0
    %p179 = por %p177, %p178
    %s181 = sadd.s32 %s180, 1
    %p184 = scmp.eq.s32.totalorder %s15, 5
    %p185 = scmp.ne.s32.totalorder %s180, %s182
    %p186 = scmp.eq.s32.totalorder %s15, 0
    %p187 = por %p185, %p186
    %p188 = scmp.ne.s32.totalorder %s180, %s182
    %p189 = scmp.eq.s32.totalorder %s20, 5
    %p190 = por %p188, %p189
    %p191 = scmp.ne.s32.totalorder %s182, %s183
    %p192 = scmp.eq.s32.totalorder %s20, 0
    %p193 = por %p191, %p192
    %p194 = scmp.ne.s32.totalorder %s182, %s183
    %p195 = scmp.eq.s32.totalorder %s21, 5
    %p196 = por %p194, %p195
    %p198 = scmp.ne.s32.totalorder %s183, %s197
    %p199 = scmp.eq.s32.totalorder %s21, 0
    %p200 = por %p198, %p199
    %s202 = sadd.s32 %s201, 1
    %p205 = scmp.eq.s32.totalorder %s15, 5
    %p206 = scmp.ne.s32.totalorder %s201, %s203
    %p207 = scmp.eq.s32.totalorder %s15, 0
    %p208 = por %p206, %p207
    %p209 = scmp.ne.s32.totalorder %s201, %s203
    %p210 = scmp.eq.s32.totalorder %s20, 5
    %p211 = por %p209, %p210
    %p212 = scmp.ne.s32.totalorder %s203, %s204
    %p213 = scmp.eq.s32.totalorder %s20, 0
    %p214 = por %p212, %p213
    %p215 = scmp.ne.s32.totalorder %s203, %s204
    %p216 = scmp.eq.s32.totalorder %s21, 5
    %p217 = por %p215, %p216
    %p219 = scmp.ne.s32.totalorder %s204, %s218
    %p220 = scmp.eq.s32.totalorder %s21, 0
    %p221 = por %p219, %p220
    %s223 = sadd.s32 %s222, 1
    %p226 = scmp.eq.s32.totalorder %s15, 5
    %p227 = scmp.ne.s32.totalorder %s222, %s224
    %p228 = scmp.eq.s32.totalorder %s15, 0
    %p229 = por %p227, %p228
    %p230 = scmp.ne.s32.totalorder %s222, %s224
    %p231 = scmp.eq.s32.totalorder %s20, 5
    %p232 = por %p230, %p231
    %p233 = scmp.ne.s32.totalorder %s224, %s225
    %p234 = scmp.eq.s32.totalorder %s20, 0
    %p235 = por %p233, %p234
    %p236 = scmp.ne.s32.totalorder %s224, %s225
    %p237 = scmp.eq.s32.totalorder %s21, 5
    %p238 = por %p236, %p237
    %p240 = scmp.ne.s32.totalorder %s225, %s239
    %p241 = scmp.eq.s32.totalorder %s21, 0
    %p242 = por %p240, %p241
    %s243 = ssub.s32 %s22, %s34
    %p244 = scmp.eq.s32.totalorder %s243, 0
    %s246 = sadd.s32 %s245, 1
    %s247 = scalar_select %p244, %s245, %s246
    %p250 = pneg %p244
    %p251 = scmp.eq.s32.totalorder %s15, 5
    %p252 = por %p250, %p251
    %p253 = scmp.ne.s32.totalorder %s245, %s248
    %p254 = scmp.eq.s32.totalorder %s15, 0
    %p255 = por %p253, %p254
    %p256 = scmp.ne.s32.totalorder %s245, %s248
    %p257 = scmp.eq.s32.totalorder %s20, 5
    %p258 = por %p256, %p257
    %p259 = scmp.ne.s32.totalorder %s248, %s249
    %p260 = scmp.eq.s32.totalorder %s20, 0
    %p261 = por %p259, %p260
    %p262 = scmp.ne.s32.totalorder %s248, %s249
    %p263 = scmp.eq.s32.totalorder %s21, 5
    %p264 = por %p262, %p263
    %p266 = scmp.ne.s32.totalorder %s249, %s265
    %p267 = scmp.eq.s32.totalorder %s21, 0
    %p268 = por %p266, %p267
    %p269 = scmp.le.s32.totalorder 1, %s15
    %p270 = scmp.lt.s32.totalorder %s15, 7
    %p271 = pnand %p269, %p270
    %p272 = pneg %p271
    // Predicated region
    $region9: #{pointnetfeat_forward.3} parent=5 // pred_check
      _
    $region10: #{pointnetfeat_forward.3} parent=5 // pred_check_branch
      %274 = sbr.rel (%p271) target = $region12
    $region11: #{pointnetfeat_forward.3} parent=5 // pred_region
      %s275 = ssub.s32 %s15, 1
      // Predicated region
      $region13: #{pointnetfeat_forward.3} parent=11 // pred_check
        %p276 = pneg %p130
      $region14: #{pointnetfeat_forward.3} parent=11 // pred_check_branch
        %278 = sbr.rel (%p276) target = $region16
      $region15: #{pointnetfeat_forward.3} parent=11 // pred_region
        _
      $region16: #{pointnetfeat_forward.3} parent=11 // pred_fallthru
        _
      // Predicated region
      $region17: #{pointnetfeat_forward.3} parent=11 // pred_check
        %p279 = pneg %p151
      $region18: #{pointnetfeat_forward.3} parent=11 // pred_check_branch
        %281 = sbr.rel (%p279) target = $region20
      $region19: #{pointnetfeat_forward.3} parent=11 // pred_region
        _
      $region20: #{pointnetfeat_forward.3} parent=11 // pred_fallthru
        _
      // Predicated region
      $region21: #{pointnetfeat_forward.3} parent=11 // pred_check
        %p282 = pneg %p172
      $region22: #{pointnetfeat_forward.3} parent=11 // pred_check_branch
        %284 = sbr.rel (%p282) target = $region24
      $region23: #{pointnetfeat_forward.3} parent=11 // pred_region
        _
      $region24: #{pointnetfeat_forward.3} parent=11 // pred_fallthru
        _
      // Predicated region
      $region25: #{pointnetfeat_forward.3} parent=11 // pred_check
        %p285 = pneg %p193
      $region26: #{pointnetfeat_forward.3} parent=11 // pred_check_branch
        %287 = sbr.rel (%p285) target = $region28
      $region27: #{pointnetfeat_forward.3} parent=11 // pred_region
        _
      $region28: #{pointnetfeat_forward.3} parent=11 // pred_fallthru
        _
      // Predicated region
      $region29: #{pointnetfeat_forward.3} parent=11 // pred_check
        %p288 = pneg %p214
      $region30: #{pointnetfeat_forward.3} parent=11 // pred_check_branch
        %290 = sbr.rel (%p288) target = $region32
      $region31: #{pointnetfeat_forward.3} parent=11 // pred_region
        _
      $region32: #{pointnetfeat_forward.3} parent=11 // pred_fallthru
        _
      // Predicated region
      $region33: #{pointnetfeat_forward.3} parent=11 // pred_check
        %p291 = pneg %p235
      $region34: #{pointnetfeat_forward.3} parent=11 // pred_check_branch
        %293 = sbr.rel (%p291) target = $region36
      $region35: #{pointnetfeat_forward.3} parent=11 // pred_region
        _
      $region36: #{pointnetfeat_forward.3} parent=11 // pred_fallthru
        _
    $region12: #{pointnetfeat_forward.3} parent=5 // pred_fallthru
      _
    %p294 = scmp.lt.s32.totalorder %s15, 6
    // Predicated region
    $region37: #{pointnetfeat_forward.3} parent=5 // pred_check
      %p295 = pneg %p294
    $region38: #{pointnetfeat_forward.3} parent=5 // pred_check_branch
      %297 = sbr.rel (%p295) target = $region40
    $region39: #{pointnetfeat_forward.3} parent=5 // pred_region
      // Predicated region
      $region41: #{pointnetfeat_forward.3} parent=39 // pred_check
        %p298 = pneg %p49
      $region42: #{pointnetfeat_forward.3} parent=39 // pred_check_branch
        %300 = sbr.rel (%p298) target = $region44
      $region43: #{pointnetfeat_forward.3} parent=39 // pred_region
        %s301 = smul.u32 16, %s23
        %p302 = scmp.lt.s32.totalorder %s22, 1
        %s303 = scalar_select %p302, %s22, 1
        %p304 = scmp.lt.s32.totalorder %s301, 47
        %s305 = scalar_select %p304, %s301, 47
        %s306 = smul.addr %s303, 48
        %s307 = sadd.s32 %s305, %s306
        %s308 = smul.addr %s307, 4
        %s309 = scalar_lea.vmem %s0, %s308
        %s310 = smul.u32 16, %s23
      $region44: #{pointnetfeat_forward.3} parent=39 // pred_fallthru
        _
      // Predicated region
      $region45: #{pointnetfeat_forward.3} parent=39 // pred_check
        %p311 = pneg %p77
      $region46: #{pointnetfeat_forward.3} parent=39 // pred_check_branch
        %313 = sbr.rel (%p311) target = $region48
      $region47: #{pointnetfeat_forward.3} parent=39 // pred_region
        %s314 = smul.u32 16, %s23
        %p315 = scmp.lt.s32.totalorder %s22, 1
        %s316 = scalar_select %p315, %s22, 1
        %p317 = scmp.lt.s32.totalorder %s314, 47
        %s318 = scalar_select %p317, %s314, 47
        %s319 = smul.addr %s316, 48
        %s320 = sadd.s32 %s318, %s319
        %s321 = smul.addr %s320, 4
        %s322 = scalar_lea.vmem %s1, %s321
        %s323 = smul.u32 16, %s23
      $region48: #{pointnetfeat_forward.3} parent=39 // pred_fallthru
        _
      // Predicated region
      $region49: #{pointnetfeat_forward.3} parent=39 // pred_check
        %p324 = pneg %p103
      $region50: #{pointnetfeat_forward.3} parent=39 // pred_check_branch
        %326 = sbr.rel (%p324) target = $region52
      $region51: #{pointnetfeat_forward.3} parent=39 // pred_region
        %p327 = scmp.lt.s32.totalorder %s22, 1
        %s328 = scalar_select %p327, %s22, 1
        %s329 = smul.addr %s328, 2
        %s330 = scalar_lea.vmem %s2, %s329
      $region52: #{pointnetfeat_forward.3} parent=39 // pred_fallthru
        _
    $region40: #{pointnetfeat_forward.3} parent=5 // pred_fallthru
      _
    %p331 = scmp.le.s32.totalorder 1, %s15
    %p332 = scmp.lt.s32.totalorder %s15, 7
    %p333 = pnand %p331, %p332
    %p334 = pneg %p333
    // Predicated region
    $region53: #{pointnetfeat_forward.3} parent=5 // pred_check
      _
    $region54: #{pointnetfeat_forward.3} parent=5 // pred_check_branch
      %336 = sbr.rel (%p333) target = $region56
    $region55: #{pointnetfeat_forward.3} parent=5 // pred_region
      %s337 = ssub.s32 %s15, 1
      %s338 = smul.u32 16, %s25
      %p339 = scmp.lt.s32.totalorder %s24, 1
      %s340 = scalar_select %p339, %s24, 1
      %p341 = scmp.lt.s32.totalorder %s338, 47
      %s342 = scalar_select %p341, %s338, 47
      %s343 = smul.addr %s340, 48
      %s344 = sadd.s32 %s342, %s343
      %s345 = smul.addr %s344, 4
      %s346 = scalar_lea.vmem %s0, %s345
      %p347 = pneg %p55
      %p348 = pneg %p52
      %s349 = smul.u32 16, %s25
      %p350 = scmp.lt.s32.totalorder %s24, 1
      %s351 = scalar_select %p350, %s24, 1
      %p352 = scmp.lt.s32.totalorder %s349, 47
      %s353 = scalar_select %p352, %s349, 47
      %s354 = smul.addr %s351, 48
      %s355 = sadd.s32 %s353, %s354
      %s356 = smul.addr %s355, 4
      %s357 = scalar_lea.vmem %s1, %s356
      %p358 = pneg %p83
      %p359 = pneg %p80
      %p360 = scmp.lt.s32.totalorder %s24, 1
      %s361 = scalar_select %p360, %s24, 1
      %s362 = smul.addr %s361, 2
      %s363 = scalar_lea.vmem %s2, %s362
      %p364 = pneg %p109
      %p365 = pneg %p106
      %p366 = pneg %p130
      %p367 = pneg %p127
      %p368 = pneg %p151
      %p369 = pneg %p148
      %p370 = pneg %p172
      %p371 = pneg %p169
      %p372 = pneg %p193
      %p373 = pneg %p190
      %p374 = pneg %p214
      %p375 = pneg %p211
      %p376 = pneg %p235
      %p377 = pneg %p232
      %p378 = pneg %p261
      %p379 = pneg %p258
      %p380 = scmp.lt.s32.totalorder %s24, 1
      %s381 = scalar_select %p380, %s24, 1
      %s382 = smul.addr %s381, 8
      %s383 = scalar_lea.vmem %s9, %s382
      %s384 = smul.u32 16, %s25
      %p385 = scmp.lt.s32.totalorder %s24, 1
      %s386 = scalar_select %p385, %s24, 1
      %p387 = scmp.lt.s32.totalorder %s384, 47
      %s388 = scalar_select %p387, %s384, 47
      %s389 = smul.addr %s386, 48
      %s390 = sadd.s32 %s388, %s389
      %s391 = smul.addr %s390, 4
      %s392 = scalar_lea.vmem %s0, %s391
      %s393 = smul.u32 16, %s25
      %s394 = smul.u32 16, %s25
      %p395 = scmp.lt.s32.totalorder %s24, 1
      %s396 = scalar_select %p395, %s24, 1
      %p397 = scmp.lt.s32.totalorder %s394, 47
      %s398 = scalar_select %p397, %s394, 47
      %s399 = smul.addr %s396, 48
      %s400 = sadd.s32 %s398, %s399
      %s401 = smul.addr %s400, 4
      %s402 = scalar_lea.vmem %s1, %s401
      %s403 = smul.u32 16, %s25
      %p404 = scmp.lt.s32.totalorder %s24, 1
      %s405 = scalar_select %p404, %s24, 1
      %s406 = smul.addr %s405, 2
      %s407 = scalar_lea.vmem %s2, %s406
      %p408 = scmp.lt.s32.totalorder %s24, 1
      %s409 = scalar_select %p408, %s24, 1
      %s410 = smul.addr %s409, 8
      %s411 = scalar_lea.vmem %s9, %s410
      %p413 = scmp.eq.s32.totalorder %s25, 0
      // Predicated region
      $region57: #{pointnetfeat_forward.3} parent=55 // pred_check
        %p414 = pneg %p413
      $region58: #{pointnetfeat_forward.3} parent=55 // pred_check_branch
        %416 = sbr.rel (%p414) target = $region60
      $region59: #{pointnetfeat_forward.3} parent=55 // pred_region
        %417 = vst [vmem:[%s411] sm:$0xff] -inf
      $region60: #{pointnetfeat_forward.3} parent=55 // pred_fallthru
        _
      %v418 = vld [vmem:[%s392] sm:$0xf]
      %v419 = vld [vmem:[%s392 + $0x4] sm:$0xf]
      %v420 = vld [vmem:[%s392 + $0x8] sm:$0xf]
      %v421 = vld [vmem:[%s392 + $0xc] sm:$0xf]
      %v422 = vld [vmem:[%s392 + $0x10] sm:$0xf]
      %v423 = vld [vmem:[%s392 + $0x14] sm:$0xf]
      %v424 = vld [vmem:[%s392 + $0x18] sm:$0xf]
      %v425 = vld [vmem:[%s392 + $0x1c] sm:$0xf]
      %v426 = vld [vmem:[%s392 + $0x20] sm:$0xf]
      %v427 = vld [vmem:[%s392 + $0x24] sm:$0xf]
      %v428 = vld [vmem:[%s392 + $0x28] sm:$0xf]
      %v429 = vld [vmem:[%s392 + $0x2c] sm:$0xf]
      %v430 = vld [vmem:[%s392 + $0x30] sm:$0xf]
      %v431 = vld [vmem:[%s392 + $0x34] sm:$0xf]
      %v432 = vld [vmem:[%s392 + $0x38] sm:$0xf]
      %v433 = vld [vmem:[%s392 + $0x3c] sm:$0xf]
      %v434 = vld [vmem:[%s407] sm:$0x3]
      %v435 = vld [vmem:[%s402] sm:$0xf]
      %v436 = vld [vmem:[%s402 + $0x4] sm:$0xf]
      %v437 = vld [vmem:[%s402 + $0x8] sm:$0xf]
      %v438 = vld [vmem:[%s402 + $0xc] sm:$0xf]
      %v439 = vld [vmem:[%s402 + $0x10] sm:$0xf]
      %v440 = vld [vmem:[%s402 + $0x14] sm:$0xf]
      %v441 = vld [vmem:[%s402 + $0x18] sm:$0xf]
      %v442 = vld [vmem:[%s402 + $0x1c] sm:$0xf]
      %v443 = vld [vmem:[%s402 + $0x20] sm:$0xf]
      %v444 = vld [vmem:[%s402 + $0x24] sm:$0xf]
      %v445 = vld [vmem:[%s402 + $0x28] sm:$0xf]
      %v446 = vld [vmem:[%s402 + $0x2c] sm:$0xf]
      %v447 = vld [vmem:[%s402 + $0x30] sm:$0xf]
      %v448 = vld [vmem:[%s402 + $0x34] sm:$0xf]
      %v449 = vld [vmem:[%s402 + $0x38] sm:$0xf]
      %v450 = vld [vmem:[%s402 + $0x3c] sm:$0xf]
      %v451 = vld [vmem:[%s3] sm:$0xf]
      %v452 = vld [vmem:[%s3 + $0x4] sm:$0xf]
      %v453 = vld [vmem:[%s3 + $0x8] sm:$0x3]
      %v470 = vunpack.c.l.b16 %v435
      %v471 = vunpack.c.l.b16 %v436
      %v472 = vunpack.c.l.b16 %v437
      %v473 = vunpack.c.l.b16 %v438
      %v474 = vunpack.c.l.b16 %v439
      %v475 = vunpack.c.l.b16 %v440
      %v476 = vunpack.c.l.b16 %v441
      %v477 = vunpack.c.l.b16 %v442
      %v478 = vunpack.c.l.b16 %v443
      %v479 = vunpack.c.l.b16 %v444
      %v480 = vunpack.c.l.b16 %v445
      %v481 = vunpack.c.l.b16 %v446
      %v482 = vunpack.c.l.b16 %v447
      %v483 = vunpack.c.l.b16 %v448
      %v484 = vunpack.c.l.b16 %v449
      %v485 = vunpack.c.l.b16 %v450
      %v486 = vpack.c.b16 %v471, %v470
      %v487 = vpack.c.b16 %v473, %v472
      %v488 = vpack.c.b16 %v475, %v474
      %v489 = vpack.c.b16 %v477, %v476
      %v490 = vpack.c.b16 %v479, %v478
      %v491 = vpack.c.b16 %v481, %v480
      %v492 = vpack.c.b16 %v483, %v482
      %v493 = vpack.c.b16 %v485, %v484
      %v497 = vunpack.c.l.b16 %v451
      %v498 = vunpack.c.l.b16 %v452
      %v499 = vunpack.c.l.b16 %v453
      %v500 = vpack.c.b16 %v498, %v497
      %v501 = vpack.c.b16 %v499, %v499
      %vm503 = vcmask 162816
      %v505 = vsel %vm503, %v486, 0
      %v508 = vsel %vm503, %v487, 0
      %v511 = vsel %vm503, %v488, 0
      %v514 = vsel %vm503, %v489, 0
      %v517 = vsel %vm503, %v490, 0
      %v520 = vsel %vm503, %v491, 0
      %v523 = vsel %vm503, %v492, 0
      %v526 = vsel %vm503, %v493, 0
      %vm528 = vcmask 1041408
      %v530 = vsel %vm528, %v501, 0
      %532 = vmatprep.subr.bf16.mxu0 0
      %533 = vmatpush1.bf16.msra.mxu0 %v500
      %534 = vmatprep.subr.bf16.mxu0 0
      %535 = vmatpush1.bf16.msra.mxu0 %v530
      %536 = vmatprep.subr.bf16.mxu0 0
      %537 = vmatpush1.bf16.msra.mxu0 0
      %538 = vmatprep.subr.bf16.mxu0 0
      %539 = vmatpush1.bf16.msra.mxu0 0
      %540 = vmatprep.subr.bf16.mxu0 0
      %541 = vmatpush1.bf16.msra.mxu0 0
      %542 = vmatprep.subr.bf16.mxu0 0
      %543 = vmatpush1.bf16.msra.mxu0 0
      %544 = vmatprep.subr.bf16.mxu0 0
      %545 = vmatpush1.bf16.msra.mxu0 0
      %546 = vmatprep.subr.bf16.mxu0 0
      %547 = vmatpush1.bf16.msra.mxu0 0
      %548 = vmatprep.subr.bf16.mxu0 0
      %549 = vmatpush1.bf16.msra.mxu0 0
      %550 = vmatprep.subr.bf16.mxu0 0
      %551 = vmatpush1.bf16.msra.mxu0 0
      %552 = vmatprep.subr.bf16.mxu0 0
      %553 = vmatpush1.bf16.msra.mxu0 0
      %554 = vmatprep.subr.bf16.mxu0 0
      %555 = vmatpush1.bf16.msra.mxu0 0
      %556 = vmatprep.subr.bf16.mxu0 0
      %557 = vmatpush1.bf16.msra.mxu0 0
      %558 = vmatprep.subr.bf16.mxu0 0
      %559 = vmatpush1.bf16.msra.mxu0 0
      %560 = vmatprep.subr.bf16.mxu0 0
      %561 = vmatpush1.bf16.msra.mxu0 0
      %562 = vmatprep.subr.bf16.mxu0 0
      %563 = vmatpush1.bf16.msra.mxu0 0
      %564 = vmatprep.mubr.bf16.mxu0 0
      %565 = vmatmul.mubr.bf16.gmra.mrb[0].mxu0 %v505
      %v566 = vpop.f32.mrb[0].mxu0
      %v567 = vadd.f32 0.0, %v566
      %v568 = vpop.f32.mrb[0].mxu0
      %v569 = vpop.f32.mrb[0].mxu0
      %v570 = vadd.f32 0.0, %v569
      %v571 = vpop.f32.mrb[0].mxu0
      %572 = vmatprep.mubr.bf16.mxu0 0
      %573 = vmatmul.mubr.bf16.gmra.mrb[0].mxu0 %v508
      %v574 = vpop.f32.mrb[0].mxu0
      %v575 = vadd.f32 0.0, %v574
      %v576 = vpop.f32.mrb[0].mxu0
      %v577 = vpop.f32.mrb[0].mxu0
      %v578 = vadd.f32 0.0, %v577
      %v579 = vpop.f32.mrb[0].mxu0
      %580 = vmatprep.mubr.bf16.mxu0 0
      %581 = vmatmul.mubr.bf16.gmra.mrb[0].mxu0 %v511
      %v582 = vpop.f32.mrb[0].mxu0
      %v583 = vadd.f32 0.0, %v582
      %v584 = vpop.f32.mrb[0].mxu0
      %v585 = vpop.f32.mrb[0].mxu0
      %v586 = vadd.f32 0.0, %v585
      %v587 = vpop.f32.mrb[0].mxu0
      %588 = vmatprep.mubr.bf16.mxu0 0
      %589 = vmatmul.mubr.bf16.gmra.mrb[0].mxu0 %v514
      %v590 = vpop.f32.mrb[0].mxu0
      %v591 = vadd.f32 0.0, %v590
      %v592 = vpop.f32.mrb[0].mxu0
      %v593 = vpop.f32.mrb[0].mxu0
      %v594 = vadd.f32 0.0, %v593
      %v595 = vpop.f32.mrb[0].mxu0
      %596 = vmatprep.mubr.bf16.mxu0 0
      %597 = vmatmul.mubr.bf16.gmra.mrb[0].mxu0 %v517
      %v598 = vpop.f32.mrb[0].mxu0
      %v599 = vadd.f32 0.0, %v598
      %v600 = vpop.f32.mrb[0].mxu0
      %v601 = vpop.f32.mrb[0].mxu0
      %v602 = vadd.f32 0.0, %v601
      %v603 = vpop.f32.mrb[0].mxu0
      %604 = vmatprep.mubr.bf16.mxu0 0
      %605 = vmatmul.mubr.bf16.gmra.mrb[0].mxu0 %v520
      %v606 = vpop.f32.mrb[0].mxu0
      %v607 = vadd.f32 0.0, %v606
      %v608 = vpop.f32.mrb[0].mxu0
      %v609 = vpop.f32.mrb[0].mxu0
      %v610 = vadd.f32 0.0, %v609
      %v611 = vpop.f32.mrb[0].mxu0
      %612 = vmatprep.mubr.bf16.mxu0 0
      %613 = vmatmul.mubr.bf16.gmra.mrb[0].mxu0 %v523
      %v614 = vpop.f32.mrb[0].mxu0
      %v615 = vadd.f32 0.0, %v614
      %v616 = vpop.f32.mrb[0].mxu0
      %v617 = vpop.f32.mrb[0].mxu0
      %v618 = vadd.f32 0.0, %v617
      %v619 = vpop.f32.mrb[0].mxu0
      %620 = vmatprep.mubr.bf16.mxu0 0
      %621 = vmatmul.mubr.bf16.gmra.mrb[0].mxu0 %v526
      %v622 = vpop.f32.mrb[0].mxu0
      %v623 = vadd.f32 0.0, %v622
      %v624 = vpop.f32.mrb[0].mxu0
      %v625 = vpop.f32.mrb[0].mxu0
      %v626 = vadd.f32 0.0, %v625
      %v627 = vpop.f32.mrb[0].mxu0
      %628 = vdwg.mxu0
      %v645 = vunpack.c.l.b16 %v418
      %v646 = vunpack.c.l.b16 %v419
      %v647 = vunpack.c.l.b16 %v420
      %v648 = vunpack.c.l.b16 %v421
      %v649 = vunpack.c.l.b16 %v422
      %v650 = vunpack.c.l.b16 %v423
      %v651 = vunpack.c.l.b16 %v424
      %v652 = vunpack.c.l.b16 %v425
      %v653 = vunpack.c.l.b16 %v426
      %v654 = vunpack.c.l.b16 %v427
      %v655 = vunpack.c.l.b16 %v428
      %v656 = vunpack.c.l.b16 %v429
      %v657 = vunpack.c.l.b16 %v430
      %v658 = vunpack.c.l.b16 %v431
      %v659 = vunpack.c.l.b16 %v432
      %v660 = vunpack.c.l.b16 %v433
      %v661 = vpack.c.b16 %v646, %v645
      %v662 = vpack.c.b16 %v648, %v647
      %v663 = vpack.c.b16 %v650, %v649
      %v664 = vpack.c.b16 %v652, %v651
      %v665 = vpack.c.b16 %v654, %v653
      %v666 = vpack.c.b16 %v656, %v655
      %v667 = vpack.c.b16 %v658, %v657
      %v668 = vpack.c.b16 %v660, %v659
      %vm669 = vcmask 31744
      %v671 = vsel %vm669, %v661, 0
      %v674 = vsel %vm669, %v662, 0
      %v677 = vsel %vm669, %v663, 0
      %v680 = vsel %vm669, %v664, 0
      %v683 = vsel %vm669, %v665, 0
      %v686 = vsel %vm669, %v666, 0
      %v689 = vsel %vm669, %v667, 0
      %v692 = vsel %vm669, %v668, 0
      %v695 = vsel %vm528, %v434, 0
      %697 = vmatprep.subr.bf16.mxu0 0
      %698 = vmatpush1.bf16.msra.mxu0 %v695
      %699 = vmatprep.subr.bf16.mxu0 0
      %700 = vmatpush1.bf16.msra.mxu0 0
      %701 = vmatprep.subr.bf16.mxu0 0
      %702 = vmatpush1.bf16.msra.mxu0 0
      %703 = vmatprep.subr.bf16.mxu0 0
      %704 = vmatpush1.bf16.msra.mxu0 0
      %705 = vmatprep.subr.bf16.mxu0 0
      %706 = vmatpush1.bf16.msra.mxu0 0
      %707 = vmatprep.subr.bf16.mxu0 0
      %708 = vmatpush1.bf16.msra.mxu0 0
      %709 = vmatprep.subr.bf16.mxu0 0
      %710 = vmatpush1.bf16.msra.mxu0 0
      %711 = vmatprep.subr.bf16.mxu0 0
      %712 = vmatpush1.bf16.msra.mxu0 0
      %713 = vmatprep.subr.bf16.mxu0 0
      %714 = vmatpush1.bf16.msra.mxu0 0
      %715 = vmatprep.subr.bf16.mxu0 0
      %716 = vmatpush1.bf16.msra.mxu0 0
      %717 = vmatprep.subr.bf16.mxu0 0
      %718 = vmatpush1.bf16.msra.mxu0 0
      %719 = vmatprep.subr.bf16.mxu0 0
      %720 = vmatpush1.bf16.msra.mxu0 0
      %721 = vmatprep.subr.bf16.mxu0 0
      %722 = vmatpush1.bf16.msra.mxu0 0
      %723 = vmatprep.subr.bf16.mxu0 0
      %724 = vmatpush1.bf16.msra.mxu0 0
      %725 = vmatprep.subr.bf16.mxu0 0
      %726 = vmatpush1.bf16.msra.mxu0 0
      %727 = vmatprep.subr.bf16.mxu0 0
      %728 = vmatpush1.bf16.msra.mxu0 0
      %729 = vmatprep.mubr.bf16.mxu0 0
      %730 = vmatmul.mubr.bf16.gmra.mrb[0].mxu0 %v671
      %v731 = vpop.f32.mrb[0].mxu0
      %v732 = vadd.f32 %v567, %v731
      %v733 = vpop.f32.mrb[0].mxu0
      %v734 = vpop.f32.mrb[0].mxu0
      %v735 = vadd.f32 %v570, %v734
      %v736 = vpop.f32.mrb[0].mxu0
      %737 = vmatprep.mubr.bf16.mxu0 0
      %738 = vmatmul.mubr.bf16.gmra.mrb[0].mxu0 %v674
      %v739 = vpop.f32.mrb[0].mxu0
      %v740 = vadd.f32 %v575, %v739
      %v741 = vpop.f32.mrb[0].mxu0
      %v742 = vpop.f32.mrb[0].mxu0
      %v743 = vadd.f32 %v578, %v742
      %v744 = vpop.f32.mrb[0].mxu0
      %745 = vmatprep.mubr.bf16.mxu0 0
      %746 = vmatmul.mubr.bf16.gmra.mrb[0].mxu0 %v677
      %v747 = vpop.f32.mrb[0].mxu0
      %v748 = vadd.f32 %v583, %v747
      %v749 = vpop.f32.mrb[0].mxu0
      %v750 = vpop.f32.mrb[0].mxu0
      %v751 = vadd.f32 %v586, %v750
      %v752 = vpop.f32.mrb[0].mxu0
      %753 = vmatprep.mubr.bf16.mxu0 0
      %754 = vmatmul.mubr.bf16.gmra.mrb[0].mxu0 %v680
      %v755 = vpop.f32.mrb[0].mxu0
      %v756 = vadd.f32 %v591, %v755
      %v757 = vpop.f32.mrb[0].mxu0
      %v758 = vpop.f32.mrb[0].mxu0
      %v759 = vadd.f32 %v594, %v758
      %v760 = vpop.f32.mrb[0].mxu0
      %761 = vmatprep.mubr.bf16.mxu0 0
      %762 = vmatmul.mubr.bf16.gmra.mrb[0].mxu0 %v683
      %v763 = vpop.f32.mrb[0].mxu0
      %v764 = vadd.f32 %v599, %v763
      %v765 = vpop.f32.mrb[0].mxu0
      %v766 = vpop.f32.mrb[0].mxu0
      %v767 = vadd.f32 %v602, %v766
      %v768 = vpop.f32.mrb[0].mxu0
      %769 = vmatprep.mubr.bf16.mxu0 0
      %770 = vmatmul.mubr.bf16.gmra.mrb[0].mxu0 %v686
      %v771 = vpop.f32.mrb[0].mxu0
      %v772 = vadd.f32 %v607, %v771
      %v773 = vpop.f32.mrb[0].mxu0
      %v774 = vpop.f32.mrb[0].mxu0
      %v775 = vadd.f32 %v610, %v774
      %v776 = vpop.f32.mrb[0].mxu0
      %777 = vmatprep.mubr.bf16.mxu0 0
      %778 = vmatmul.mubr.bf16.gmra.mrb[0].mxu0 %v689
      %v779 = vpop.f32.mrb[0].mxu0
      %v780 = vadd.f32 %v615, %v779
      %v781 = vpop.f32.mrb[0].mxu0
      %v782 = vpop.f32.mrb[0].mxu0
      %v783 = vadd.f32 %v618, %v782
      %v784 = vpop.f32.mrb[0].mxu0
      %785 = vmatprep.mubr.bf16.mxu0 0
      %786 = vmatmul.mubr.bf16.gmra.mrb[0].mxu0 %v692
      %v787 = vpop.f32.mrb[0].mxu0
      %v788 = vadd.f32 %v623, %v787
      %v789 = vpop.f32.mrb[0].mxu0
      %v790 = vpop.f32.mrb[0].mxu0
      %v791 = vadd.f32 %v626, %v790
      %v792 = vpop.f32.mrb[0].mxu0
      %793 = vdwg.mxu0
      %v794 = vld [vmem:[%s4] sm:$0x1]
      %v796 = vlaneseq
      %v797 = vshrl.u32 %v796, 7
      %v798 = vsub.s32 0, %v797
      %v799 = vrot.slane %v794, %v798
      %v801 = vadd.f32 %v732, %v799
      %v802 = vadd.f32 %v735, %v799
      %v803 = vadd.f32 %v740, %v799
      %v804 = vadd.f32 %v743, %v799
      %v805 = vadd.f32 %v748, %v799
      %v806 = vadd.f32 %v751, %v799
      %v807 = vadd.f32 %v756, %v799
      %v808 = vadd.f32 %v759, %v799
      %v809 = vadd.f32 %v764, %v799
      %v810 = vadd.f32 %v767, %v799
      %v811 = vadd.f32 %v772, %v799
      %v812 = vadd.f32 %v775, %v799
      %v813 = vadd.f32 %v780, %v799
      %v814 = vadd.f32 %v783, %v799
      %v815 = vadd.f32 %v788, %v799
      %v816 = vadd.f32 %v791, %v799
      %v817 = vmax.f32 %v801, 0.0
      %v818 = vmax.f32 %v802, 0.0
      %v819 = vmax.f32 %v803, 0.0
      %v820 = vmax.f32 %v804, 0.0
      %v821 = vmax.f32 %v805, 0.0
      %v822 = vmax.f32 %v806, 0.0
      %v823 = vmax.f32 %v807, 0.0
      %v824 = vmax.f32 %v808, 0.0
      %v825 = vmax.f32 %v809, 0.0
      %v826 = vmax.f32 %v810, 0.0
      %v827 = vmax.f32 %v811, 0.0
      %v828 = vmax.f32 %v812, 0.0
      %v829 = vmax.f32 %v813, 0.0
      %v830 = vmax.f32 %v814, 0.0
      %v831 = vmax.f32 %v815, 0.0
      %v832 = vmax.f32 %v816, 0.0
      %v833 = vpack.c.bf16 %v818, %v817
      %v834 = vpack.c.bf16 %v820, %v819
      %v835 = vpack.c.bf16 %v822, %v821
      %v836 = vpack.c.bf16 %v824, %v823
      %v837 = vpack.c.bf16 %v826, %v825
      %v838 = vpack.c.bf16 %v828, %v827
      %v839 = vpack.c.bf16 %v830, %v829
      %v840 = vpack.c.bf16 %v832, %v831
      %v841 = vld [vmem:[%s5] sm:$0xf]
      %v842 = vld [vmem:[%s5 + $0x4] sm:$0xf]
      %v843 = vld [vmem:[%s5 + $0x8] sm:$0xf]
      %v844 = vld [vmem:[%s5 + $0xc] sm:$0xf]
      %v845 = vld [vmem:[%s5 + $0x10] sm:$0xf]
      %v846 = vld [vmem:[%s5 + $0x14] sm:$0xf]
      %v847 = vld [vmem:[%s5 + $0x18] sm:$0xf]
      %v848 = vld [vmem:[%s5 + $0x1c] sm:$0xf]
      %v849 = vld [vmem:[%s6] sm:$0x1]
      %v851 = vlaneseq
      %v852 = vshrl.u32 %v851, 7
      %v853 = vsub.s32 0, %v852
      %v854 = vrot.slane %v849, %v853
      %v864 = vunpack.c.l.b16 %v841
      %v865 = vunpack.c.l.b16 %v842
      %v866 = vunpack.c.l.b16 %v843
      %v867 = vunpack.c.l.b16 %v844
      %v868 = vunpack.c.l.b16 %v845
      %v869 = vunpack.c.l.b16 %v846
      %v870 = vunpack.c.l.b16 %v847
      %v871 = vunpack.c.l.b16 %v848
      %v872 = vpack.c.b16 %v865, %v864
      %v873 = vpack.c.b16 %v867, %v866
      %v874 = vpack.c.b16 %v869, %v868
      %v875 = vpack.c.b16 %v871, %v870
      %vm880 = vcmask 523264
      %v882 = vsel %vm880, %v833, 0
      %v885 = vsel %vm880, %v834, 0
      %v888 = vsel %vm880, %v835, 0
      %v891 = vsel %vm880, %v836, 0
      %v894 = vsel %vm880, %v837, 0
      %v897 = vsel %vm880, %v838, 0
      %v900 = vsel %vm880, %v839, 0
      %v903 = vsel %vm880, %v840, 0
      %905 = vmatprep.subr.bf16.mxu0 0
      %906 = vmatpush1.bf16.msra.mxu0 %v872
      %907 = vmatprep.subr.bf16.mxu0 0
      %908 = vmatpush1.bf16.msra.mxu0 %v873
      %909 = vmatprep.subr.bf16.mxu0 0
      %910 = vmatpush1.bf16.msra.mxu0 %v874
      %911 = vmatprep.subr.bf16.mxu0 0
      %912 = vmatpush1.bf16.msra.mxu0 %v875
      %913 = vmatprep.subr.bf16.mxu0 0
      %914 = vmatpush1.bf16.msra.mxu0 0
      %915 = vmatprep.subr.bf16.mxu0 0
      %916 = vmatpush1.bf16.msra.mxu0 0
      %917 = vmatprep.subr.bf16.mxu0 0
      %918 = vmatpush1.bf16.msra.mxu0 0
      %919 = vmatprep.subr.bf16.mxu0 0
      %920 = vmatpush1.bf16.msra.mxu0 0
      %921 = vmatprep.subr.bf16.mxu0 0
      %922 = vmatpush1.bf16.msra.mxu0 0
      %923 = vmatprep.subr.bf16.mxu0 0
      %924 = vmatpush1.bf16.msra.mxu0 0
      %925 = vmatprep.subr.bf16.mxu0 0
      %926 = vmatpush1.bf16.msra.mxu0 0
      %927 = vmatprep.subr.bf16.mxu0 0
      %928 = vmatpush1.bf16.msra.mxu0 0
      %929 = vmatprep.subr.bf16.mxu0 0
      %930 = vmatpush1.bf16.msra.mxu0 0
      %931 = vmatprep.subr.bf16.mxu0 0
      %932 = vmatpush1.bf16.msra.mxu0 0
      %933 = vmatprep.subr.bf16.mxu0 0
      %934 = vmatpush1.bf16.msra.mxu0 0
      %935 = vmatprep.subr.bf16.mxu0 0
      %936 = vmatpush1.bf16.msra.mxu0 0
      %937 = vmatprep.mubr.bf16.mxu0 0
      %938 = vmatmul.mubr.bf16.gmra.mrb[0].mxu0 %v882
      %v939 = vpop.f32.mrb[0].mxu0
      %v940 = vadd.f32 %v854, %v939
      %v941 = vpop.f32.mrb[0].mxu0
      %v942 = vpop.f32.mrb[0].mxu0
      %v943 = vadd.f32 %v854, %v942
      %v944 = vpop.f32.mrb[0].mxu0
      %945 = vmatprep.mubr.bf16.mxu0 0
      %946 = vmatmul.mubr.bf16.gmra.mrb[0].mxu0 %v885
      %v947 = vpop.f32.mrb[0].mxu0
      %v948 = vadd.f32 %v854, %v947
      %v949 = vpop.f32.mrb[0].mxu0
      %v950 = vpop.f32.mrb[0].mxu0
      %v951 = vadd.f32 %v854, %v950
      %v952 = vpop.f32.mrb[0].mxu0
      %953 = vmatprep.mubr.bf16.mxu0 0
      %954 = vmatmul.mubr.bf16.gmra.mrb[0].mxu0 %v888
      %v955 = vpop.f32.mrb[0].mxu0
      %v956 = vadd.f32 %v854, %v955
      %v957 = vpop.f32.mrb[0].mxu0
      %v958 = vpop.f32.mrb[0].mxu0
      %v959 = vadd.f32 %v854, %v958
      %v960 = vpop.f32.mrb[0].mxu0
      %961 = vmatprep.mubr.bf16.mxu0 0
      %962 = vmatmul.mubr.bf16.gmra.mrb[0].mxu0 %v891
      %v963 = vpop.f32.mrb[0].mxu0
      %v964 = vadd.f32 %v854, %v963
      %v965 = vpop.f32.mrb[0].mxu0
      %v966 = vpop.f32.mrb[0].mxu0
      %v967 = vadd.f32 %v854, %v966
      %v968 = vpop.f32.mrb[0].mxu0
      %969 = vmatprep.mubr.bf16.mxu0 0
      %970 = vmatmul.mubr.bf16.gmra.mrb[0].mxu0 %v894
      %v971 = vpop.f32.mrb[0].mxu0
      %v972 = vadd.f32 %v854, %v971
      %v973 = vpop.f32.mrb[0].mxu0
      %v974 = vpop.f32.mrb[0].mxu0
      %v975 = vadd.f32 %v854, %v974
      %v976 = vpop.f32.mrb[0].mxu0
      %977 = vmatprep.mubr.bf16.mxu0 0
      %978 = vmatmul.mubr.bf16.gmra.mrb[0].mxu0 %v897
      %v979 = vpop.f32.mrb[0].mxu0
      %v980 = vadd.f32 %v854, %v979
      %v981 = vpop.f32.mrb[0].mxu0
      %v982 = vpop.f32.mrb[0].mxu0
      %v983 = vadd.f32 %v854, %v982
      %v984 = vpop.f32.mrb[0].mxu0
      %985 = vmatprep.mubr.bf16.mxu0 0
      %986 = vmatmul.mubr.bf16.gmra.mrb[0].mxu0 %v900
      %v987 = vpop.f32.mrb[0].mxu0
      %v988 = vadd.f32 %v854, %v987
      %v989 = vpop.f32.mrb[0].mxu0
      %v990 = vpop.f32.mrb[0].mxu0
      %v991 = vadd.f32 %v854, %v990
      %v992 = vpop.f32.mrb[0].mxu0
      %993 = vmatprep.mubr.bf16.mxu0 0
      %994 = vmatmul.mubr.bf16.gmra.mrb[0].mxu0 %v903
      %v995 = vpop.f32.mrb[0].mxu0
      %v996 = vadd.f32 %v854, %v995
      %v997 = vpop.f32.mrb[0].mxu0
      %v998 = vpop.f32.mrb[0].mxu0
      %v999 = vadd.f32 %v854, %v998
      %v1000 = vpop.f32.mrb[0].mxu0
      %1001 = vdwg.mxu0
      %v1002 = vmax.f32 %v940, 0.0
      %v1003 = vmax.f32 %v943, 0.0
      %v1004 = vmax.f32 %v948, 0.0
      %v1005 = vmax.f32 %v951, 0.0
      %v1006 = vmax.f32 %v956, 0.0
      %v1007 = vmax.f32 %v959, 0.0
      %v1008 = vmax.f32 %v964, 0.0
      %v1009 = vmax.f32 %v967, 0.0
      %v1010 = vmax.f32 %v972, 0.0
      %v1011 = vmax.f32 %v975, 0.0
      %v1012 = vmax.f32 %v980, 0.0
      %v1013 = vmax.f32 %v983, 0.0
      %v1014 = vmax.f32 %v988, 0.0
      %v1015 = vmax.f32 %v991, 0.0
      %v1016 = vmax.f32 %v996, 0.0
      %v1017 = vmax.f32 %v999, 0.0
      %v1018 = vpack.c.bf16 %v1003, %v1002
      %v1019 = vpack.c.bf16 %v1005, %v1004
      %v1020 = vpack.c.bf16 %v1007, %v1006
      %v1021 = vpack.c.bf16 %v1009, %v1008
      %v1022 = vpack.c.bf16 %v1011, %v1010
      %v1023 = vpack.c.bf16 %v1013, %v1012
      %v1024 = vpack.c.bf16 %v1015, %v1014
      %v1025 = vpack.c.bf16 %v1017, %v1016
      %v1026 = vld [vmem:[%s7] sm:$0xff]
      %v1027 = vld [vmem:[%s7 + $0x8] sm:$0xff]
      %v1028 = vld [vmem:[%s7 + $0x10] sm:$0xff]
      %v1029 = vld [vmem:[%s7 + $0x18] sm:$0xff]
      %v1030 = vld [vmem:[%s7 + $0x20] sm:$0xff]
      %v1031 = vld [vmem:[%s7 + $0x28] sm:$0xff]
      %v1032 = vld [vmem:[%s7 + $0x30] sm:$0xff]
      %v1033 = vld [vmem:[%s7 + $0x38] sm:$0xff]
      %v1034 = vld [vmem:[%s7 + $0x40] sm:$0xff]
      %v1035 = vld [vmem:[%s7 + $0x48] sm:$0xff]
      %v1036 = vld [vmem:[%s7 + $0x50] sm:$0xff]
      %v1037 = vld [vmem:[%s7 + $0x58] sm:$0xff]
      %v1038 = vld [vmem:[%s7 + $0x60] sm:$0xff]
      %v1039 = vld [vmem:[%s7 + $0x68] sm:$0xff]
      %v1040 = vld [vmem:[%s7 + $0x70] sm:$0xff]
      %v1041 = vld [vmem:[%s7 + $0x78] sm:$0xff]
      %v1042 = vld [vmem:[%s7 + $0x80] sm:$0xff]
      %v1043 = vld [vmem:[%s7 + $0x88] sm:$0xff]
      %v1044 = vld [vmem:[%s7 + $0x90] sm:$0xff]
      %v1045 = vld [vmem:[%s7 + $0x98] sm:$0xff]
      %v1046 = vld [vmem:[%s7 + $0xa0] sm:$0xff]
      %v1047 = vld [vmem:[%s7 + $0xa8] sm:$0xff]
      %v1048 = vld [vmem:[%s7 + $0xb0] sm:$0xff]
      %v1049 = vld [vmem:[%s7 + $0xb8] sm:$0xff]
      %v1050 = vld [vmem:[%s7 + $0xc0] sm:$0xff]
      %v1051 = vld [vmem:[%s7 + $0xc8] sm:$0xff]
      %v1052 = vld [vmem:[%s7 + $0xd0] sm:$0xff]
      %v1053 = vld [vmem:[%s7 + $0xd8] sm:$0xff]
      %v1054 = vld [vmem:[%s7 + $0xe0] sm:$0xff]
      %v1055 = vld [vmem:[%s7 + $0xe8] sm:$0xff]
      %v1056 = vld [vmem:[%s7 + $0xf0] sm:$0xff]
      %v1057 = vld [vmem:[%s7 + $0xf8] sm:$0xff]
      %v1058 = vld [vmem:[%s7 + $0x100] sm:$0xff]
      %v1059 = vld [vmem:[%s7 + $0x108] sm:$0xff]
      %v1060 = vld [vmem:[%s7 + $0x110] sm:$0xff]
      %v1061 = vld [vmem:[%s7 + $0x118] sm:$0xff]
      %v1062 = vld [vmem:[%s7 + $0x120] sm:$0xff]
      %v1063 = vld [vmem:[%s7 + $0x128] sm:$0xff]
      %v1064 = vld [vmem:[%s7 + $0x130] sm:$0xff]
      %v1065 = vld [vmem:[%s7 + $0x138] sm:$0xff]
      %v1066 = vld [vmem:[%s7 + $0x140] sm:$0xff]
      %v1067 = vld [vmem:[%s7 + $0x148] sm:$0xff]
      %v1068 = vld [vmem:[%s7 + $0x150] sm:$0xff]
      %v1069 = vld [vmem:[%s7 + $0x158] sm:$0xff]
      %v1070 = vld [vmem:[%s7 + $0x160] sm:$0xff]
      %v1071 = vld [vmem:[%s7 + $0x168] sm:$0xff]
      %v1072 = vld [vmem:[%s7 + $0x170] sm:$0xff]
      %v1073 = vld [vmem:[%s7 + $0x178] sm:$0xff]
      %v1074 = vld [vmem:[%s7 + $0x180] sm:$0xff]
      %v1075 = vld [vmem:[%s7 + $0x188] sm:$0xff]
      %v1076 = vld [vmem:[%s7 + $0x190] sm:$0xff]
      %v1077 = vld [vmem:[%s7 + $0x198] sm:$0xff]
      %v1078 = vld [vmem:[%s7 + $0x1a0] sm:$0xff]
      %v1079 = vld [vmem:[%s7 + $0x1a8] sm:$0xff]
      %v1080 = vld [vmem:[%s7 + $0x1b0] sm:$0xff]
      %v1081 = vld [vmem:[%s7 + $0x1b8] sm:$0xff]
      %v1082 = vld [vmem:[%s7 + $0x1c0] sm:$0xff]
      %v1083 = vld [vmem:[%s7 + $0x1c8] sm:$0xff]
      %v1084 = vld [vmem:[%s7 + $0x1d0] sm:$0xff]
      %v1085 = vld [vmem:[%s7 + $0x1d8] sm:$0xff]
      %v1086 = vld [vmem:[%s7 + $0x1e0] sm:$0xff]
      %v1087 = vld [vmem:[%s7 + $0x1e8] sm:$0xff]
      %v1088 = vld [vmem:[%s7 + $0x1f0] sm:$0xff]
      %v1089 = vld [vmem:[%s7 + $0x1f8] sm:$0xff]
      %v1090 = vld [vmem:[%s8] sm:$0xff]
      %v1092 = vlaneseq
      %v1093 = vshrl.u32 %v1092, 7
      %v1094 = vsub.s32 0, %v1093
      %v1095 = vrot.slane %v1090, %v1094
      %v1096 = vlaneseq
      %v1097 = vshrl.u32 %v1096, 7
      %v1098 = vsub.s32 1, %v1097
      %v1099 = vrot.slane %v1090, %v1098
      %v1100 = vlaneseq
      %v1101 = vshrl.u32 %v1100, 7
      %v1102 = vsub.s32 2, %v1101
      %v1103 = vrot.slane %v1090, %v1102
      %v1104 = vlaneseq
      %v1105 = vshrl.u32 %v1104, 7
      %v1106 = vsub.s32 3, %v1105
      %v1107 = vrot.slane %v1090, %v1106
      %v1108 = vlaneseq
      %v1109 = vshrl.u32 %v1108, 7
      %v1110 = vsub.s32 4, %v1109
      %v1111 = vrot.slane %v1090, %v1110
      %v1112 = vlaneseq
      %v1113 = vshrl.u32 %v1112, 7
      %v1114 = vsub.s32 5, %v1113
      %v1115 = vrot.slane %v1090, %v1114
      %v1116 = vlaneseq
      %v1117 = vshrl.u32 %v1116, 7
      %v1118 = vsub.s32 6, %v1117
      %v1119 = vrot.slane %v1090, %v1118
      %v1120 = vlaneseq
      %v1121 = vshrl.u32 %v1120, 7
      %v1122 = vsub.s32 7, %v1121
      %v1123 = vrot.slane %v1090, %v1122
      %v1196 = vunpack.c.l.b16 %v1026
      %v1197 = vunpack.c.h.b16 %v1026
      %v1198 = vunpack.c.l.b16 %v1027
      %v1199 = vunpack.c.h.b16 %v1027
      %v1200 = vunpack.c.l.b16 %v1028
      %v1201 = vunpack.c.h.b16 %v1028
      %v1202 = vunpack.c.l.b16 %v1029
      %v1203 = vunpack.c.h.b16 %v1029
      %v1204 = vunpack.c.l.b16 %v1030
      %v1205 = vunpack.c.h.b16 %v1030
      %v1206 = vunpack.c.l.b16 %v1031
      %v1207 = vunpack.c.h.b16 %v1031
      %v1208 = vunpack.c.l.b16 %v1032
      %v1209 = vunpack.c.h.b16 %v1032
      %v1210 = vunpack.c.l.b16 %v1033
      %v1211 = vunpack.c.h.b16 %v1033
      %v1212 = vunpack.c.l.b16 %v1034
      %v1213 = vunpack.c.h.b16 %v1034
      %v1214 = vunpack.c.l.b16 %v1035
      %v1215 = vunpack.c.h.b16 %v1035
      %v1216 = vunpack.c.l.b16 %v1036
      %v1217 = vunpack.c.h.b16 %v1036
      %v1218 = vunpack.c.l.b16 %v1037
      %v1219 = vunpack.c.h.b16 %v1037
      %v1220 = vunpack.c.l.b16 %v1038
      %v1221 = vunpack.c.h.b16 %v1038
      %v1222 = vunpack.c.l.b16 %v1039
      %v1223 = vunpack.c.h.b16 %v1039
      %v1224 = vunpack.c.l.b16 %v1040
      %v1225 = vunpack.c.h.b16 %v1040
      %v1226 = vunpack.c.l.b16 %v1041
      %v1227 = vunpack.c.h.b16 %v1041
      %v1228 = vunpack.c.l.b16 %v1042
      %v1229 = vunpack.c.h.b16 %v1042
      %v1230 = vunpack.c.l.b16 %v1043
      %v1231 = vunpack.c.h.b16 %v1043
      %v1232 = vunpack.c.l.b16 %v1044
      %v1233 = vunpack.c.h.b16 %v1044
      %v1234 = vunpack.c.l.b16 %v1045
      %v1235 = vunpack.c.h.b16 %v1045
      %v1236 = vunpack.c.l.b16 %v1046
      %v1237 = vunpack.c.h.b16 %v1046
      %v1238 = vunpack.c.l.b16 %v1047
      %v1239 = vunpack.c.h.b16 %v1047
      %v1240 = vunpack.c.l.b16 %v1048
      %v1241 = vunpack.c.h.b16 %v1048
      %v1242 = vunpack.c.l.b16 %v1049
      %v1243 = vunpack.c.h.b16 %v1049
      %v1244 = vunpack.c.l.b16 %v1050
      %v1245 = vunpack.c.h.b16 %v1050
      %v1246 = vunpack.c.l.b16 %v1051
      %v1247 = vunpack.c.h.b16 %v1051
      %v1248 = vunpack.c.l.b16 %v1052
      %v1249 = vunpack.c.h.b16 %v1052
      %v1250 = vunpack.c.l.b16 %v1053
      %v1251 = vunpack.c.h.b16 %v1053
      %v1252 = vunpack.c.l.b16 %v1054
      %v1253 = vunpack.c.h.b16 %v1054
      %v1254 = vunpack.c.l.b16 %v1055
      %v1255 = vunpack.c.h.b16 %v1055
      %v1256 = vunpack.c.l.b16 %v1056
      %v1257 = vunpack.c.h.b16 %v1056
      %v1258 = vunpack.c.l.b16 %v1057
      %v1259 = vunpack.c.h.b16 %v1057
      %v1260 = vunpack.c.l.b16 %v1058
      %v1261 = vunpack.c.h.b16 %v1058
      %v1262 = vunpack.c.l.b16 %v1059
      %v1263 = vunpack.c.h.b16 %v1059
      %v1264 = vunpack.c.l.b16 %v1060
      %v1265 = vunpack.c.h.b16 %v1060
      %v1266 = vunpack.c.l.b16 %v1061
      %v1267 = vunpack.c.h.b16 %v1061
      %v1268 = vunpack.c.l.b16 %v1062
      %v1269 = vunpack.c.h.b16 %v1062
      %v1270 = vunpack.c.l.b16 %v1063
      %v1271 = vunpack.c.h.b16 %v1063
      %v1272 = vunpack.c.l.b16 %v1064
      %v1273 = vunpack.c.h.b16 %v1064
      %v1274 = vunpack.c.l.b16 %v1065
      %v1275 = vunpack.c.h.b16 %v1065
      %v1276 = vunpack.c.l.b16 %v1066
      %v1277 = vunpack.c.h.b16 %v1066
      %v1278 = vunpack.c.l.b16 %v1067
      %v1279 = vunpack.c.h.b16 %v1067
      %v1280 = vunpack.c.l.b16 %v1068
      %v1281 = vunpack.c.h.b16 %v1068
      %v1282 = vunpack.c.l.b16 %v1069
      %v1283 = vunpack.c.h.b16 %v1069
      %v1284 = vunpack.c.l.b16 %v1070
      %v1285 = vunpack.c.h.b16 %v1070
      %v1286 = vunpack.c.l.b16 %v1071
      %v1287 = vunpack.c.h.b16 %v1071
      %v1288 = vunpack.c.l.b16 %v1072
      %v1289 = vunpack.c.h.b16 %v1072
      %v1290 = vunpack.c.l.b16 %v1073
      %v1291 = vunpack.c.h.b16 %v1073
      %v1292 = vunpack.c.l.b16 %v1074
      %v1293 = vunpack.c.h.b16 %v1074
      %v1294 = vunpack.c.l.b16 %v1075
      %v1295 = vunpack.c.h.b16 %v1075
      %v1296 = vunpack.c.l.b16 %v1076
      %v1297 = vunpack.c.h.b16 %v1076
      %v1298 = vunpack.c.l.b16 %v1077
      %v1299 = vunpack.c.h.b16 %v1077
      %v1300 = vunpack.c.l.b16 %v1078
      %v1301 = vunpack.c.h.b16 %v1078
      %v1302 = vunpack.c.l.b16 %v1079
      %v1303 = vunpack.c.h.b16 %v1079
      %v1304 = vunpack.c.l.b16 %v1080
      %v1305 = vunpack.c.h.b16 %v1080
      %v1306 = vunpack.c.l.b16 %v1081
      %v1307 = vunpack.c.h.b16 %v1081
      %v1308 = vunpack.c.l.b16 %v1082
      %v1309 = vunpack.c.h.b16 %v1082
      %v1310 = vunpack.c.l.b16 %v1083
      %v1311 = vunpack.c.h.b16 %v1083
      %v1312 = vunpack.c.l.b16 %v1084
      %v1313 = vunpack.c.h.b16 %v1084
      %v1314 = vunpack.c.l.b16 %v1085
      %v1315 = vunpack.c.h.b16 %v1085
      %v1316 = vunpack.c.l.b16 %v1086
      %v1317 = vunpack.c.h.b16 %v1086
      %v1318 = vunpack.c.l.b16 %v1087
      %v1319 = vunpack.c.h.b16 %v1087
      %v1320 = vunpack.c.l.b16 %v1088
      %v1321 = vunpack.c.h.b16 %v1088
      %v1322 = vunpack.c.l.b16 %v1089
      %v1323 = vunpack.c.h.b16 %v1089
      %v1324 = vpack.c.b16 %v1204, %v1196
      %v1325 = vpack.c.b16 %v1205, %v1197
      %v1326 = vpack.c.b16 %v1206, %v1198
      %v1327 = vpack.c.b16 %v1207, %v1199
      %v1328 = vpack.c.b16 %v1208, %v1200
      %v1329 = vpack.c.b16 %v1209, %v1201
      %v1330 = vpack.c.b16 %v1210, %v1202
      %v1331 = vpack.c.b16 %v1211, %v1203
      %v1332 = vpack.c.b16 %v1220, %v1212
      %v1333 = vpack.c.b16 %v1221, %v1213
      %v1334 = vpack.c.b16 %v1222, %v1214
      %v1335 = vpack.c.b16 %v1223, %v1215
      %v1336 = vpack.c.b16 %v1224, %v1216
      %v1337 = vpack.c.b16 %v1225, %v1217
      %v1338 = vpack.c.b16 %v1226, %v1218
      %v1339 = vpack.c.b16 %v1227, %v1219
      %v1340 = vpack.c.b16 %v1236, %v1228
      %v1341 = vpack.c.b16 %v1237, %v1229
      %v1342 = vpack.c.b16 %v1238, %v1230
      %v1343 = vpack.c.b16 %v1239, %v1231
      %v1344 = vpack.c.b16 %v1240, %v1232
      %v1345 = vpack.c.b16 %v1241, %v1233
      %v1346 = vpack.c.b16 %v1242, %v1234
      %v1347 = vpack.c.b16 %v1243, %v1235
      %v1348 = vpack.c.b16 %v1252, %v1244
      %v1349 = vpack.c.b16 %v1253, %v1245
      %v1350 = vpack.c.b16 %v1254, %v1246
      %v1351 = vpack.c.b16 %v1255, %v1247
      %v1352 = vpack.c.b16 %v1256, %v1248
      %v1353 = vpack.c.b16 %v1257, %v1249
      %v1354 = vpack.c.b16 %v1258, %v1250
      %v1355 = vpack.c.b16 %v1259, %v1251
      %v1356 = vpack.c.b16 %v1268, %v1260
      %v1357 = vpack.c.b16 %v1269, %v1261
      %v1358 = vpack.c.b16 %v1270, %v1262
      %v1359 = vpack.c.b16 %v1271, %v1263
      %v1360 = vpack.c.b16 %v1272, %v1264
      %v1361 = vpack.c.b16 %v1273, %v1265
      %v1362 = vpack.c.b16 %v1274, %v1266
      %v1363 = vpack.c.b16 %v1275, %v1267
      %v1364 = vpack.c.b16 %v1284, %v1276
      %v1365 = vpack.c.b16 %v1285, %v1277
      %v1366 = vpack.c.b16 %v1286, %v1278
      %v1367 = vpack.c.b16 %v1287, %v1279
      %v1368 = vpack.c.b16 %v1288, %v1280
      %v1369 = vpack.c.b16 %v1289, %v1281
      %v1370 = vpack.c.b16 %v1290, %v1282
      %v1371 = vpack.c.b16 %v1291, %v1283
      %v1372 = vpack.c.b16 %v1300, %v1292
      %v1373 = vpack.c.b16 %v1301, %v1293
      %v1374 = vpack.c.b16 %v1302, %v1294
      %v1375 = vpack.c.b16 %v1303, %v1295
      %v1376 = vpack.c.b16 %v1304, %v1296
      %v1377 = vpack.c.b16 %v1305, %v1297
      %v1378 = vpack.c.b16 %v1306, %v1298
      %v1379 = vpack.c.b16 %v1307, %v1299
      %v1380 = vpack.c.b16 %v1316, %v1308
      %v1381 = vpack.c.b16 %v1317, %v1309
      %v1382 = vpack.c.b16 %v1318, %v1310
      %v1383 = vpack.c.b16 %v1319, %v1311
      %v1384 = vpack.c.b16 %v1320, %v1312
      %v1385 = vpack.c.b16 %v1321, %v1313
      %v1386 = vpack.c.b16 %v1322, %v1314
      %v1387 = vpack.c.b16 %v1323, %v1315
      %1452 = vmatprep.subr.bf16.mxu0 %v1325
      %1453 = vmatpush1.bf16.msra.mxu0 %v1324
      %1454 = vmatprep.subr.bf16.mxu0 %v1333
      %1455 = vmatpush1.bf16.msra.mxu0 %v1332
      %1456 = vmatprep.subr.bf16.mxu0 %v1341
      %1457 = vmatpush1.bf16.msra.mxu0 %v1340
      %1458 = vmatprep.subr.bf16.mxu0 %v1349
      %1459 = vmatpush1.bf16.msra.mxu0 %v1348
      %1460 = vmatprep.subr.bf16.mxu0 %v1357
      %1461 = vmatpush1.bf16.msra.mxu0 %v1356
      %1462 = vmatprep.subr.bf16.mxu0 %v1365
      %1463 = vmatpush1.bf16.msra.mxu0 %v1364
      %1464 = vmatprep.subr.bf16.mxu0 %v1373
      %1465 = vmatpush1.bf16.msra.mxu0 %v1372
      %1466 = vmatprep.subr.bf16.mxu0 %v1381
      %1467 = vmatpush1.bf16.msra.mxu0 %v1380
      %1468 = vmatprep.subr.bf16.mxu0 0
      %1469 = vmatpush1.bf16.msra.mxu0 0
      %1470 = vmatprep.subr.bf16.mxu0 0
      %1471 = vmatpush1.bf16.msra.mxu0 0
      %1472 = vmatprep.subr.bf16.mxu0 0
      %1473 = vmatpush1.bf16.msra.mxu0 0
      %1474 = vmatprep.subr.bf16.mxu0 0
      %1475 = vmatpush1.bf16.msra.mxu0 0
      %1476 = vmatprep.subr.bf16.mxu0 0
      %1477 = vmatpush1.bf16.msra.mxu0 0
      %1478 = vmatprep.subr.bf16.mxu0 0
      %1479 = vmatpush1.bf16.msra.mxu0 0
      %1480 = vmatprep.subr.bf16.mxu0 0
      %1481 = vmatpush1.bf16.msra.mxu0 0
      %1482 = vmatprep.subr.bf16.mxu0 0
      %1483 = vmatpush1.bf16.msra.mxu0 0
      %1484 = vmatprep.mubr.bf16.mxu0 0
      %1485 = vmatmul.mubr.bf16.gmra.mrb[0].mxu0 %v1018
      %v1486 = vpop.f32.mrb[0].mxu0
      %v1487 = vadd.f32 %v1095, %v1486
      %v1488 = vpop.f32.mrb[0].mxu0
      %v1489 = vadd.f32 %v1099, %v1488
      %v1490 = vpop.f32.mrb[0].mxu0
      %v1491 = vadd.f32 %v1095, %v1490
      %v1492 = vpop.f32.mrb[0].mxu0
      %v1493 = vadd.f32 %v1099, %v1492
      %1494 = vmatprep.mubr.bf16.mxu0 0
      %1495 = vmatmul.mubr.bf16.gmra.mrb[0].mxu0 %v1019
      %v1496 = vpop.f32.mrb[0].mxu0
      %v1497 = vadd.f32 %v1095, %v1496
      %v1498 = vpop.f32.mrb[0].mxu0
      %v1499 = vadd.f32 %v1099, %v1498
      %v1500 = vpop.f32.mrb[0].mxu0
      %v1501 = vadd.f32 %v1095, %v1500
      %v1502 = vpop.f32.mrb[0].mxu0
      %v1503 = vadd.f32 %v1099, %v1502
      %1504 = vmatprep.mubr.bf16.mxu0 0
      %1505 = vmatmul.mubr.bf16.gmra.mrb[0].mxu0 %v1020
      %v1506 = vpop.f32.mrb[0].mxu0
      %v1507 = vadd.f32 %v1095, %v1506
      %v1508 = vpop.f32.mrb[0].mxu0
      %v1509 = vadd.f32 %v1099, %v1508
      %v1510 = vpop.f32.mrb[0].mxu0
      %v1511 = vadd.f32 %v1095, %v1510
      %v1512 = vpop.f32.mrb[0].mxu0
      %v1513 = vadd.f32 %v1099, %v1512
      %1514 = vmatprep.mubr.bf16.mxu0 0
      %1515 = vmatmul.mubr.bf16.gmra.mrb[0].mxu0 %v1021
      %v1516 = vpop.f32.mrb[0].mxu0
      %v1517 = vadd.f32 %v1095, %v1516
      %v1518 = vpop.f32.mrb[0].mxu0
      %v1519 = vadd.f32 %v1099, %v1518
      %v1520 = vpop.f32.mrb[0].mxu0
      %v1521 = vadd.f32 %v1095, %v1520
      %v1522 = vpop.f32.mrb[0].mxu0
      %v1523 = vadd.f32 %v1099, %v1522
      %1524 = vmatprep.mubr.bf16.mxu0 0
      %1525 = vmatmul.mubr.bf16.gmra.mrb[0].mxu0 %v1022
      %v1526 = vpop.f32.mrb[0].mxu0
      %v1527 = vadd.f32 %v1095, %v1526
      %v1528 = vpop.f32.mrb[0].mxu0
      %v1529 = vadd.f32 %v1099, %v1528
      %v1530 = vpop.f32.mrb[0].mxu0
      %v1531 = vadd.f32 %v1095, %v1530
      %v1532 = vpop.f32.mrb[0].mxu0
      %v1533 = vadd.f32 %v1099, %v1532
      %1534 = vmatprep.mubr.bf16.mxu0 0
      %1535 = vmatmul.mubr.bf16.gmra.mrb[0].mxu0 %v1023
      %v1536 = vpop.f32.mrb[0].mxu0
      %v1537 = vadd.f32 %v1095, %v1536
      %v1538 = vpop.f32.mrb[0].mxu0
      %v1539 = vadd.f32 %v1099, %v1538
      %v1540 = vpop.f32.mrb[0].mxu0
      %v1541 = vadd.f32 %v1095, %v1540
      %v1542 = vpop.f32.mrb[0].mxu0
      %v1543 = vadd.f32 %v1099, %v1542
      %1544 = vmatprep.mubr.bf16.mxu0 0
      %1545 = vmatmul.mubr.bf16.gmra.mrb[0].mxu0 %v1024
      %v1546 = vpop.f32.mrb[0].mxu0
      %v1547 = vadd.f32 %v1095, %v1546
      %v1548 = vpop.f32.mrb[0].mxu0
      %v1549 = vadd.f32 %v1099, %v1548
      %v1550 = vpop.f32.mrb[0].mxu0
      %v1551 = vadd.f32 %v1095, %v1550
      %v1552 = vpop.f32.mrb[0].mxu0
      %v1553 = vadd.f32 %v1099, %v1552
      %1554 = vmatprep.mubr.bf16.mxu0 0
      %1555 = vmatmul.mubr.bf16.gmra.mrb[0].mxu0 %v1025
      %v1556 = vpop.f32.mrb[0].mxu0
      %v1557 = vadd.f32 %v1095, %v1556
      %v1558 = vpop.f32.mrb[0].mxu0
      %v1559 = vadd.f32 %v1099, %v1558
      %v1560 = vpop.f32.mrb[0].mxu0
      %v1561 = vadd.f32 %v1095, %v1560
      %v1562 = vpop.f32.mrb[0].mxu0
      %v1563 = vadd.f32 %v1099, %v1562
      %1564 = vdwg.mxu0
      %1565 = vmatprep.subr.bf16.mxu0 %v1327
      %1566 = vmatpush1.bf16.msra.mxu0 %v1326
      %1567 = vmatprep.subr.bf16.mxu0 %v1335
      %1568 = vmatpush1.bf16.msra.mxu0 %v1334
      %1569 = vmatprep.subr.bf16.mxu0 %v1343
      %1570 = vmatpush1.bf16.msra.mxu0 %v1342
      %1571 = vmatprep.subr.bf16.mxu0 %v1351
      %1572 = vmatpush1.bf16.msra.mxu0 %v1350
      %1573 = vmatprep.subr.bf16.mxu0 %v1359
      %1574 = vmatpush1.bf16.msra.mxu0 %v1358
      %1575 = vmatprep.subr.bf16.mxu0 %v1367
      %1576 = vmatpush1.bf16.msra.mxu0 %v1366
      %1577 = vmatprep.subr.bf16.mxu0 %v1375
      %1578 = vmatpush1.bf16.msra.mxu0 %v1374
      %1579 = vmatprep.subr.bf16.mxu0 %v1383
      %1580 = vmatpush1.bf16.msra.mxu0 %v1382
      %1581 = vmatprep.subr.bf16.mxu0 0
      %1582 = vmatpush1.bf16.msra.mxu0 0
      %1583 = vmatprep.subr.bf16.mxu0 0
      %1584 = vmatpush1.bf16.msra.mxu0 0
      %1585 = vmatprep.subr.bf16.mxu0 0
      %1586 = vmatpush1.bf16.msra.mxu0 0
      %1587 = vmatprep.subr.bf16.mxu0 0
      %1588 = vmatpush1.bf16.msra.mxu0 0
      %1589 = vmatprep.subr.bf16.mxu0 0
      %1590 = vmatpush1.bf16.msra.mxu0 0
      %1591 = vmatprep.subr.bf16.mxu0 0
      %1592 = vmatpush1.bf16.msra.mxu0 0
      %1593 = vmatprep.subr.bf16.mxu0 0
      %1594 = vmatpush1.bf16.msra.mxu0 0
      %1595 = vmatprep.subr.bf16.mxu0 0
      %1596 = vmatpush1.bf16.msra.mxu0 0
      %1597 = vmatprep.mubr.bf16.mxu0 0
      %1598 = vmatmul.mubr.bf16.gmra.mrb[0].mxu0 %v1018
      %v1599 = vpop.f32.mrb[0].mxu0
      %v1600 = vadd.f32 %v1103, %v1599
      %v1601 = vpop.f32.mrb[0].mxu0
      %v1602 = vadd.f32 %v1107, %v1601
      %v1603 = vpop.f32.mrb[0].mxu0
      %v1604 = vadd.f32 %v1103, %v1603
      %v1605 = vpop.f32.mrb[0].mxu0
      %v1606 = vadd.f32 %v1107, %v1605
      %1607 = vmatprep.mubr.bf16.mxu0 0
      %1608 = vmatmul.mubr.bf16.gmra.mrb[0].mxu0 %v1019
      %v1609 = vpop.f32.mrb[0].mxu0
      %v1610 = vadd.f32 %v1103, %v1609
      %v1611 = vpop.f32.mrb[0].mxu0
      %v1612 = vadd.f32 %v1107, %v1611
      %v1613 = vpop.f32.mrb[0].mxu0
      %v1614 = vadd.f32 %v1103, %v1613
      %v1615 = vpop.f32.mrb[0].mxu0
      %v1616 = vadd.f32 %v1107, %v1615
      %1617 = vmatprep.mubr.bf16.mxu0 0
      %1618 = vmatmul.mubr.bf16.gmra.mrb[0].mxu0 %v1020
      %v1619 = vpop.f32.mrb[0].mxu0
      %v1620 = vadd.f32 %v1103, %v1619
      %v1621 = vpop.f32.mrb[0].mxu0
      %v1622 = vadd.f32 %v1107, %v1621
      %v1623 = vpop.f32.mrb[0].mxu0
      %v1624 = vadd.f32 %v1103, %v1623
      %v1625 = vpop.f32.mrb[0].mxu0
      %v1626 = vadd.f32 %v1107, %v1625
      %1627 = vmatprep.mubr.bf16.mxu0 0
      %1628 = vmatmul.mubr.bf16.gmra.mrb[0].mxu0 %v1021
      %v1629 = vpop.f32.mrb[0].mxu0
      %v1630 = vadd.f32 %v1103, %v1629
      %v1631 = vpop.f32.mrb[0].mxu0
      %v1632 = vadd.f32 %v1107, %v1631
      %v1633 = vpop.f32.mrb[0].mxu0
      %v1634 = vadd.f32 %v1103, %v1633
      %v1635 = vpop.f32.mrb[0].mxu0
      %v1636 = vadd.f32 %v1107, %v1635
      %1637 = vmatprep.mubr.bf16.mxu0 0
      %1638 = vmatmul.mubr.bf16.gmra.mrb[0].mxu0 %v1022
      %v1639 = vpop.f32.mrb[0].mxu0
      %v1640 = vadd.f32 %v1103, %v1639
      %v1641 = vpop.f32.mrb[0].mxu0
      %v1642 = vadd.f32 %v1107, %v1641
      %v1643 = vpop.f32.mrb[0].mxu0
      %v1644 = vadd.f32 %v1103, %v1643
      %v1645 = vpop.f32.mrb[0].mxu0
      %v1646 = vadd.f32 %v1107, %v1645
      %1647 = vmatprep.mubr.bf16.mxu0 0
      %1648 = vmatmul.mubr.bf16.gmra.mrb[0].mxu0 %v1023
      %v1649 = vpop.f32.mrb[0].mxu0
      %v1650 = vadd.f32 %v1103, %v1649
      %v1651 = vpop.f32.mrb[0].mxu0
      %v1652 = vadd.f32 %v1107, %v1651
      %v1653 = vpop.f32.mrb[0].mxu0
      %v1654 = vadd.f32 %v1103, %v1653
      %v1655 = vpop.f32.mrb[0].mxu0
      %v1656 = vadd.f32 %v1107, %v1655
      %1657 = vmatprep.mubr.bf16.mxu0 0
      %1658 = vmatmul.mubr.bf16.gmra.mrb[0].mxu0 %v1024
      %v1659 = vpop.f32.mrb[0].mxu0
      %v1660 = vadd.f32 %v1103, %v1659
      %v1661 = vpop.f32.mrb[0].mxu0
      %v1662 = vadd.f32 %v1107, %v1661
      %v1663 = vpop.f32.mrb[0].mxu0
      %v1664 = vadd.f32 %v1103, %v1663
      %v1665 = vpop.f32.mrb[0].mxu0
      %v1666 = vadd.f32 %v1107, %v1665
      %1667 = vmatprep.mubr.bf16.mxu0 0
      %1668 = vmatmul.mubr.bf16.gmra.mrb[0].mxu0 %v1025
      %v1669 = vpop.f32.mrb[0].mxu0
      %v1670 = vadd.f32 %v1103, %v1669
      %v1671 = vpop.f32.mrb[0].mxu0
      %v1672 = vadd.f32 %v1107, %v1671
      %v1673 = vpop.f32.mrb[0].mxu0
      %v1674 = vadd.f32 %v1103, %v1673
      %v1675 = vpop.f32.mrb[0].mxu0
      %v1676 = vadd.f32 %v1107, %v1675
      %1677 = vdwg.mxu0
      %1678 = vmatprep.subr.bf16.mxu0 %v1329
      %1679 = vmatpush1.bf16.msra.mxu0 %v1328
      %1680 = vmatprep.subr.bf16.mxu0 %v1337
      %1681 = vmatpush1.bf16.msra.mxu0 %v1336
      %1682 = vmatprep.subr.bf16.mxu0 %v1345
      %1683 = vmatpush1.bf16.msra.mxu0 %v1344
      %1684 = vmatprep.subr.bf16.mxu0 %v1353
      %1685 = vmatpush1.bf16.msra.mxu0 %v1352
      %1686 = vmatprep.subr.bf16.mxu0 %v1361
      %1687 = vmatpush1.bf16.msra.mxu0 %v1360
      %1688 = vmatprep.subr.bf16.mxu0 %v1369
      %1689 = vmatpush1.bf16.msra.mxu0 %v1368
      %1690 = vmatprep.subr.bf16.mxu0 %v1377
      %1691 = vmatpush1.bf16.msra.mxu0 %v1376
      %1692 = vmatprep.subr.bf16.mxu0 %v1385
      %1693 = vmatpush1.bf16.msra.mxu0 %v1384
      %1694 = vmatprep.subr.bf16.mxu0 0
      %1695 = vmatpush1.bf16.msra.mxu0 0
      %1696 = vmatprep.subr.bf16.mxu0 0
      %1697 = vmatpush1.bf16.msra.mxu0 0
      %1698 = vmatprep.subr.bf16.mxu0 0
      %1699 = vmatpush1.bf16.msra.mxu0 0
      %1700 = vmatprep.subr.bf16.mxu0 0
      %1701 = vmatpush1.bf16.msra.mxu0 0
      %1702 = vmatprep.subr.bf16.mxu0 0
      %1703 = vmatpush1.bf16.msra.mxu0 0
      %1704 = vmatprep.subr.bf16.mxu0 0
      %1705 = vmatpush1.bf16.msra.mxu0 0
      %1706 = vmatprep.subr.bf16.mxu0 0
      %1707 = vmatpush1.bf16.msra.mxu0 0
      %1708 = vmatprep.subr.bf16.mxu0 0
      %1709 = vmatpush1.bf16.msra.mxu0 0
      %1710 = vmatprep.mubr.bf16.mxu0 0
      %1711 = vmatmul.mubr.bf16.gmra.mrb[0].mxu0 %v1018
      %v1712 = vpop.f32.mrb[0].mxu0
      %v1713 = vadd.f32 %v1111, %v1712
      %v1714 = vpop.f32.mrb[0].mxu0
      %v1715 = vadd.f32 %v1115, %v1714
      %v1716 = vpop.f32.mrb[0].mxu0
      %v1717 = vadd.f32 %v1111, %v1716
      %v1718 = vpop.f32.mrb[0].mxu0
      %v1719 = vadd.f32 %v1115, %v1718
      %1720 = vmatprep.mubr.bf16.mxu0 0
      %1721 = vmatmul.mubr.bf16.gmra.mrb[0].mxu0 %v1019
      %v1722 = vpop.f32.mrb[0].mxu0
      %v1723 = vadd.f32 %v1111, %v1722
      %v1724 = vpop.f32.mrb[0].mxu0
      %v1725 = vadd.f32 %v1115, %v1724
      %v1726 = vpop.f32.mrb[0].mxu0
      %v1727 = vadd.f32 %v1111, %v1726
      %v1728 = vpop.f32.mrb[0].mxu0
      %v1729 = vadd.f32 %v1115, %v1728
      %1730 = vmatprep.mubr.bf16.mxu0 0
      %1731 = vmatmul.mubr.bf16.gmra.mrb[0].mxu0 %v1020
      %v1732 = vpop.f32.mrb[0].mxu0
      %v1733 = vadd.f32 %v1111, %v1732
      %v1734 = vpop.f32.mrb[0].mxu0
      %v1735 = vadd.f32 %v1115, %v1734
      %v1736 = vpop.f32.mrb[0].mxu0
      %v1737 = vadd.f32 %v1111, %v1736
      %v1738 = vpop.f32.mrb[0].mxu0
      %v1739 = vadd.f32 %v1115, %v1738
      %1740 = vmatprep.mubr.bf16.mxu0 0
      %1741 = vmatmul.mubr.bf16.gmra.mrb[0].mxu0 %v1021
      %v1742 = vpop.f32.mrb[0].mxu0
      %v1743 = vadd.f32 %v1111, %v1742
      %v1744 = vpop.f32.mrb[0].mxu0
      %v1745 = vadd.f32 %v1115, %v1744
      %v1746 = vpop.f32.mrb[0].mxu0
      %v1747 = vadd.f32 %v1111, %v1746
      %v1748 = vpop.f32.mrb[0].mxu0
      %v1749 = vadd.f32 %v1115, %v1748
      %1750 = vmatprep.mubr.bf16.mxu0 0
      %1751 = vmatmul.mubr.bf16.gmra.mrb[0].mxu0 %v1022
      %v1752 = vpop.f32.mrb[0].mxu0
      %v1753 = vadd.f32 %v1111, %v1752
      %v1754 = vpop.f32.mrb[0].mxu0
      %v1755 = vadd.f32 %v1115, %v1754
      %v1756 = vpop.f32.mrb[0].mxu0
      %v1757 = vadd.f32 %v1111, %v1756
      %v1758 = vpop.f32.mrb[0].mxu0
      %v1759 = vadd.f32 %v1115, %v1758
      %1760 = vmatprep.mubr.bf16.mxu0 0
      %1761 = vmatmul.mubr.bf16.gmra.mrb[0].mxu0 %v1023
      %v1762 = vpop.f32.mrb[0].mxu0
      %v1763 = vadd.f32 %v1111, %v1762
      %v1764 = vpop.f32.mrb[0].mxu0
      %v1765 = vadd.f32 %v1115, %v1764
      %v1766 = vpop.f32.mrb[0].mxu0
      %v1767 = vadd.f32 %v1111, %v1766
      %v1768 = vpop.f32.mrb[0].mxu0
      %v1769 = vadd.f32 %v1115, %v1768
      %1770 = vmatprep.mubr.bf16.mxu0 0
      %1771 = vmatmul.mubr.bf16.gmra.mrb[0].mxu0 %v1024
      %v1772 = vpop.f32.mrb[0].mxu0
      %v1773 = vadd.f32 %v1111, %v1772
      %v1774 = vpop.f32.mrb[0].mxu0
      %v1775 = vadd.f32 %v1115, %v1774
      %v1776 = vpop.f32.mrb[0].mxu0
      %v1777 = vadd.f32 %v1111, %v1776
      %v1778 = vpop.f32.mrb[0].mxu0
      %v1779 = vadd.f32 %v1115, %v1778
      %1780 = vmatprep.mubr.bf16.mxu0 0
      %1781 = vmatmul.mubr.bf16.gmra.mrb[0].mxu0 %v1025
      %v1782 = vpop.f32.mrb[0].mxu0
      %v1783 = vadd.f32 %v1111, %v1782
      %v1784 = vpop.f32.mrb[0].mxu0
      %v1785 = vadd.f32 %v1115, %v1784
      %v1786 = vpop.f32.mrb[0].mxu0
      %v1787 = vadd.f32 %v1111, %v1786
      %v1788 = vpop.f32.mrb[0].mxu0
      %v1789 = vadd.f32 %v1115, %v1788
      %1790 = vdwg.mxu0
      %1791 = vmatprep.subr.bf16.mxu0 %v1331
      %1792 = vmatpush1.bf16.msra.mxu0 %v1330
      %1793 = vmatprep.subr.bf16.mxu0 %v1339
      %1794 = vmatpush1.bf16.msra.mxu0 %v1338
      %1795 = vmatprep.subr.bf16.mxu0 %v1347
      %1796 = vmatpush1.bf16.msra.mxu0 %v1346
      %1797 = vmatprep.subr.bf16.mxu0 %v1355
      %1798 = vmatpush1.bf16.msra.mxu0 %v1354
      %1799 = vmatprep.subr.bf16.mxu0 %v1363
      %1800 = vmatpush1.bf16.msra.mxu0 %v1362
      %1801 = vmatprep.subr.bf16.mxu0 %v1371
      %1802 = vmatpush1.bf16.msra.mxu0 %v1370
      %1803 = vmatprep.subr.bf16.mxu0 %v1379
      %1804 = vmatpush1.bf16.msra.mxu0 %v1378
      %1805 = vmatprep.subr.bf16.mxu0 %v1387
      %1806 = vmatpush1.bf16.msra.mxu0 %v1386
      %1807 = vmatprep.subr.bf16.mxu0 0
      %1808 = vmatpush1.bf16.msra.mxu0 0
      %1809 = vmatprep.subr.bf16.mxu0 0
      %1810 = vmatpush1.bf16.msra.mxu0 0
      %1811 = vmatprep.subr.bf16.mxu0 0
      %1812 = vmatpush1.bf16.msra.mxu0 0
      %1813 = vmatprep.subr.bf16.mxu0 0
      %1814 = vmatpush1.bf16.msra.mxu0 0
      %1815 = vmatprep.subr.bf16.mxu0 0
      %1816 = vmatpush1.bf16.msra.mxu0 0
      %1817 = vmatprep.subr.bf16.mxu0 0
      %1818 = vmatpush1.bf16.msra.mxu0 0
      %1819 = vmatprep.subr.bf16.mxu0 0
      %1820 = vmatpush1.bf16.msra.mxu0 0
      %1821 = vmatprep.subr.bf16.mxu0 0
      %1822 = vmatpush1.bf16.msra.mxu0 0
      %1823 = vmatprep.mubr.bf16.mxu0 0
      %1824 = vmatmul.mubr.bf16.gmra.mrb[0].mxu0 %v1018
      %v1825 = vpop.f32.mrb[0].mxu0
      %v1826 = vadd.f32 %v1119, %v1825
      %v1827 = vpop.f32.mrb[0].mxu0
      %v1828 = vadd.f32 %v1123, %v1827
      %v1829 = vpop.f32.mrb[0].mxu0
      %v1830 = vadd.f32 %v1119, %v1829
      %v1831 = vpop.f32.mrb[0].mxu0
      %v1832 = vadd.f32 %v1123, %v1831
      %1833 = vmatprep.mubr.bf16.mxu0 0
      %1834 = vmatmul.mubr.bf16.gmra.mrb[0].mxu0 %v1019
      %v1835 = vpop.f32.mrb[0].mxu0
      %v1836 = vadd.f32 %v1119, %v1835
      %v1837 = vpop.f32.mrb[0].mxu0
      %v1838 = vadd.f32 %v1123, %v1837
      %v1839 = vpop.f32.mrb[0].mxu0
      %v1840 = vadd.f32 %v1119, %v1839
      %v1841 = vpop.f32.mrb[0].mxu0
      %v1842 = vadd.f32 %v1123, %v1841
      %1843 = vmatprep.mubr.bf16.mxu0 0
      %1844 = vmatmul.mubr.bf16.gmra.mrb[0].mxu0 %v1020
      %v1845 = vpop.f32.mrb[0].mxu0
      %v1846 = vadd.f32 %v1119, %v1845
      %v1847 = vpop.f32.mrb[0].mxu0
      %v1848 = vadd.f32 %v1123, %v1847
      %v1849 = vpop.f32.mrb[0].mxu0
      %v1850 = vadd.f32 %v1119, %v1849
      %v1851 = vpop.f32.mrb[0].mxu0
      %v1852 = vadd.f32 %v1123, %v1851
      %1853 = vmatprep.mubr.bf16.mxu0 0
      %1854 = vmatmul.mubr.bf16.gmra.mrb[0].mxu0 %v1021
      %v1855 = vpop.f32.mrb[0].mxu0
      %v1856 = vadd.f32 %v1119, %v1855
      %v1857 = vpop.f32.mrb[0].mxu0
      %v1858 = vadd.f32 %v1123, %v1857
      %v1859 = vpop.f32.mrb[0].mxu0
      %v1860 = vadd.f32 %v1119, %v1859
      %v1861 = vpop.f32.mrb[0].mxu0
      %v1862 = vadd.f32 %v1123, %v1861
      %1863 = vmatprep.mubr.bf16.mxu0 0
      %1864 = vmatmul.mubr.bf16.gmra.mrb[0].mxu0 %v1022
      %v1865 = vpop.f32.mrb[0].mxu0
      %v1866 = vadd.f32 %v1119, %v1865
      %v1867 = vpop.f32.mrb[0].mxu0
      %v1868 = vadd.f32 %v1123, %v1867
      %v1869 = vpop.f32.mrb[0].mxu0
      %v1870 = vadd.f32 %v1119, %v1869
      %v1871 = vpop.f32.mrb[0].mxu0
      %v1872 = vadd.f32 %v1123, %v1871
      %1873 = vmatprep.mubr.bf16.mxu0 0
      %1874 = vmatmul.mubr.bf16.gmra.mrb[0].mxu0 %v1023
      %v1875 = vpop.f32.mrb[0].mxu0
      %v1876 = vadd.f32 %v1119, %v1875
      %v1877 = vpop.f32.mrb[0].mxu0
      %v1878 = vadd.f32 %v1123, %v1877
      %v1879 = vpop.f32.mrb[0].mxu0
      %v1880 = vadd.f32 %v1119, %v1879
      %v1881 = vpop.f32.mrb[0].mxu0
      %v1882 = vadd.f32 %v1123, %v1881
      %1883 = vmatprep.mubr.bf16.mxu0 0
      %1884 = vmatmul.mubr.bf16.gmra.mrb[0].mxu0 %v1024
      %v1885 = vpop.f32.mrb[0].mxu0
      %v1886 = vadd.f32 %v1119, %v1885
      %v1887 = vpop.f32.mrb[0].mxu0
      %v1888 = vadd.f32 %v1123, %v1887
      %v1889 = vpop.f32.mrb[0].mxu0
      %v1890 = vadd.f32 %v1119, %v1889
      %v1891 = vpop.f32.mrb[0].mxu0
      %v1892 = vadd.f32 %v1123, %v1891
      %1893 = vmatprep.mubr.bf16.mxu0 0
      %1894 = vmatmul.mubr.bf16.gmra.mrb[0].mxu0 %v1025
      %v1895 = vpop.f32.mrb[0].mxu0
      %v1896 = vadd.f32 %v1119, %v1895
      %v1897 = vpop.f32.mrb[0].mxu0
      %v1898 = vadd.f32 %v1123, %v1897
      %v1899 = vpop.f32.mrb[0].mxu0
      %v1900 = vadd.f32 %v1119, %v1899
      %v1901 = vpop.f32.mrb[0].mxu0
      %v1902 = vadd.f32 %v1123, %v1901
      %1903 = vdwg.mxu0
      %v1904 = vlaneseq
      %v1905 = vshrl.u32 %v1904, 7
      %v1906 = vadd.s32 %v1905, 8
      %v1907 = vadd.s32 %v1905, 16
      %v1908 = vadd.s32 %v1905, 24
      %v1909 = vadd.s32 %v1905, 32
      %v1910 = vadd.s32 %v1905, 40
      %v1911 = vadd.s32 %v1905, 48
      %v1912 = vadd.s32 %v1905, 56
      %v1913 = vadd.s32 %v1905, 64
      %v1914 = vadd.s32 %v1905, 72
      %v1915 = vadd.s32 %v1905, 80
      %v1916 = vadd.s32 %v1905, 88
      %v1917 = vadd.s32 %v1905, 96
      %v1918 = vadd.s32 %v1905, 104
      %v1919 = vadd.s32 %v1905, 112
      %v1920 = vadd.s32 %v1905, 120
      %s1921 = smul.u32 %s25, 128
      %v1922 = vstv %s1921
      %v1923 = vadd.s32 %v1922, %v1905
      %v1924 = vadd.s32 %v1922, %v1906
      %v1925 = vadd.s32 %v1922, %v1907
      %v1926 = vadd.s32 %v1922, %v1908
      %v1927 = vadd.s32 %v1922, %v1909
      %v1928 = vadd.s32 %v1922, %v1910
      %v1929 = vadd.s32 %v1922, %v1911
      %v1930 = vadd.s32 %v1922, %v1912
      %v1931 = vadd.s32 %v1922, %v1913
      %v1932 = vadd.s32 %v1922, %v1914
      %v1933 = vadd.s32 %v1922, %v1915
      %v1934 = vadd.s32 %v1922, %v1916
      %v1935 = vadd.s32 %v1922, %v1917
      %v1936 = vadd.s32 %v1922, %v1918
      %v1937 = vadd.s32 %v1922, %v1919
      %v1938 = vadd.s32 %v1922, %v1920
      %vm1939 = vcmp.lt.s32.totalorder %v1923, 300
      %vm1940 = vcmp.lt.s32.totalorder %v1924, 300
      %vm1941 = vcmp.lt.s32.totalorder %v1925, 300
      %vm1942 = vcmp.lt.s32.totalorder %v1926, 300
      %vm1943 = vcmp.lt.s32.totalorder %v1927, 300
      %vm1944 = vcmp.lt.s32.totalorder %v1928, 300
      %vm1945 = vcmp.lt.s32.totalorder %v1929, 300
      %vm1946 = vcmp.lt.s32.totalorder %v1930, 300
      %vm1947 = vcmp.lt.s32.totalorder %v1931, 300
      %vm1948 = vcmp.lt.s32.totalorder %v1932, 300
      %vm1949 = vcmp.lt.s32.totalorder %v1933, 300
      %vm1950 = vcmp.lt.s32.totalorder %v1934, 300
      %vm1951 = vcmp.lt.s32.totalorder %v1935, 300
      %vm1952 = vcmp.lt.s32.totalorder %v1936, 300
      %vm1953 = vcmp.lt.s32.totalorder %v1937, 300
      %vm1954 = vcmp.lt.s32.totalorder %v1938, 300
      %v1955 = vsel %vm1939, 1, 0
      %v1956 = vsel %vm1940, 1, 0
      %v1957 = vsel %vm1941, 1, 0
      %v1958 = vsel %vm1942, 1, 0
      %v1959 = vsel %vm1943, 1, 0
      %v1960 = vsel %vm1944, 1, 0
      %v1961 = vsel %vm1945, 1, 0
      %v1962 = vsel %vm1946, 1, 0
      %v1963 = vsel %vm1947, 1, 0
      %v1964 = vsel %vm1948, 1, 0
      %v1965 = vsel %vm1949, 1, 0
      %v1966 = vsel %vm1950, 1, 0
      %v1967 = vsel %vm1951, 1, 0
      %v1968 = vsel %vm1952, 1, 0
      %v1969 = vsel %vm1953, 1, 0
      %v1970 = vsel %vm1954, 1, 0
      %vm1971 = vcmp.eq.s32.totalorder %v1955, 1
      %vm1972 = vcmp.eq.s32.totalorder %v1956, 1
      %vm1973 = vcmp.eq.s32.totalorder %v1957, 1
      %vm1974 = vcmp.eq.s32.totalorder %v1958, 1
      %vm1975 = vcmp.eq.s32.totalorder %v1959, 1
      %vm1976 = vcmp.eq.s32.totalorder %v1960, 1
      %vm1977 = vcmp.eq.s32.totalorder %v1961, 1
      %vm1978 = vcmp.eq.s32.totalorder %v1962, 1
      %vm1979 = vcmp.eq.s32.totalorder %v1963, 1
      %vm1980 = vcmp.eq.s32.totalorder %v1964, 1
      %vm1981 = vcmp.eq.s32.totalorder %v1965, 1
      %vm1982 = vcmp.eq.s32.totalorder %v1966, 1
      %vm1983 = vcmp.eq.s32.totalorder %v1967, 1
      %vm1984 = vcmp.eq.s32.totalorder %v1968, 1
      %vm1985 = vcmp.eq.s32.totalorder %v1969, 1
      %vm1986 = vcmp.eq.s32.totalorder %v1970, 1
      %v1987 = vsel %vm1971, %v1487, -inf
      %v1988 = vsel %vm1971, %v1489, -inf
      %v1989 = vsel %vm1971, %v1600, -inf
      %v1990 = vsel %vm1971, %v1602, -inf
      %v1991 = vsel %vm1971, %v1713, -inf
      %v1992 = vsel %vm1971, %v1715, -inf
      %v1993 = vsel %vm1971, %v1826, -inf
      %v1994 = vsel %vm1971, %v1828, -inf
      %v1995 = vsel %vm1972, %v1491, -inf
      %v1996 = vsel %vm1972, %v1493, -inf
      %v1997 = vsel %vm1972, %v1604, -inf
      %v1998 = vsel %vm1972, %v1606, -inf
      %v1999 = vsel %vm1972, %v1717, -inf
      %v2000 = vsel %vm1972, %v1719, -inf
      %v2001 = vsel %vm1972, %v1830, -inf
      %v2002 = vsel %vm1972, %v1832, -inf
      %v2003 = vsel %vm1973, %v1497, -inf
      %v2004 = vsel %vm1973, %v1499, -inf
      %v2005 = vsel %vm1973, %v1610, -inf
      %v2006 = vsel %vm1973, %v1612, -inf
      %v2007 = vsel %vm1973, %v1723, -inf
      %v2008 = vsel %vm1973, %v1725, -inf
      %v2009 = vsel %vm1973, %v1836, -inf
      %v2010 = vsel %vm1973, %v1838, -inf
      %v2011 = vsel %vm1974, %v1501, -inf
      %v2012 = vsel %vm1974, %v1503, -inf
      %v2013 = vsel %vm1974, %v1614, -inf
      %v2014 = vsel %vm1974, %v1616, -inf
      %v2015 = vsel %vm1974, %v1727, -inf
      %v2016 = vsel %vm1974, %v1729, -inf
      %v2017 = vsel %vm1974, %v1840, -inf
      %v2018 = vsel %vm1974, %v1842, -inf
      %v2019 = vsel %vm1975, %v1507, -inf
      %v2020 = vsel %vm1975, %v1509, -inf
      %v2021 = vsel %vm1975, %v1620, -inf
      %v2022 = vsel %vm1975, %v1622, -inf
      %v2023 = vsel %vm1975, %v1733, -inf
      %v2024 = vsel %vm1975, %v1735, -inf
      %v2025 = vsel %vm1975, %v1846, -inf
      %v2026 = vsel %vm1975, %v1848, -inf
      %v2027 = vsel %vm1976, %v1511, -inf
      %v2028 = vsel %vm1976, %v1513, -inf
      %v2029 = vsel %vm1976, %v1624, -inf
      %v2030 = vsel %vm1976, %v1626, -inf
      %v2031 = vsel %vm1976, %v1737, -inf
      %v2032 = vsel %vm1976, %v1739, -inf
      %v2033 = vsel %vm1976, %v1850, -inf
      %v2034 = vsel %vm1976, %v1852, -inf
      %v2035 = vsel %vm1977, %v1517, -inf
      %v2036 = vsel %vm1977, %v1519, -inf
      %v2037 = vsel %vm1977, %v1630, -inf
      %v2038 = vsel %vm1977, %v1632, -inf
      %v2039 = vsel %vm1977, %v1743, -inf
      %v2040 = vsel %vm1977, %v1745, -inf
      %v2041 = vsel %vm1977, %v1856, -inf
      %v2042 = vsel %vm1977, %v1858, -inf
      %v2043 = vsel %vm1978, %v1521, -inf
      %v2044 = vsel %vm1978, %v1523, -inf
      %v2045 = vsel %vm1978, %v1634, -inf
      %v2046 = vsel %vm1978, %v1636, -inf
      %v2047 = vsel %vm1978, %v1747, -inf
      %v2048 = vsel %vm1978, %v1749, -inf
      %v2049 = vsel %vm1978, %v1860, -inf
      %v2050 = vsel %vm1978, %v1862, -inf
      %v2051 = vsel %vm1979, %v1527, -inf
      %v2052 = vsel %vm1979, %v1529, -inf
      %v2053 = vsel %vm1979, %v1640, -inf
      %v2054 = vsel %vm1979, %v1642, -inf
      %v2055 = vsel %vm1979, %v1753, -inf
      %v2056 = vsel %vm1979, %v1755, -inf
      %v2057 = vsel %vm1979, %v1866, -inf
      %v2058 = vsel %vm1979, %v1868, -inf
      %v2059 = vsel %vm1980, %v1531, -inf
      %v2060 = vsel %vm1980, %v1533, -inf
      %v2061 = vsel %vm1980, %v1644, -inf
      %v2062 = vsel %vm1980, %v1646, -inf
      %v2063 = vsel %vm1980, %v1757, -inf
      %v2064 = vsel %vm1980, %v1759, -inf
      %v2065 = vsel %vm1980, %v1870, -inf
      %v2066 = vsel %vm1980, %v1872, -inf
      %v2067 = vsel %vm1981, %v1537, -inf
      %v2068 = vsel %vm1981, %v1539, -inf
      %v2069 = vsel %vm1981, %v1650, -inf
      %v2070 = vsel %vm1981, %v1652, -inf
      %v2071 = vsel %vm1981, %v1763, -inf
      %v2072 = vsel %vm1981, %v1765, -inf
      %v2073 = vsel %vm1981, %v1876, -inf
      %v2074 = vsel %vm1981, %v1878, -inf
      %v2075 = vsel %vm1982, %v1541, -inf
      %v2076 = vsel %vm1982, %v1543, -inf
      %v2077 = vsel %vm1982, %v1654, -inf
      %v2078 = vsel %vm1982, %v1656, -inf
      %v2079 = vsel %vm1982, %v1767, -inf
      %v2080 = vsel %vm1982, %v1769, -inf
      %v2081 = vsel %vm1982, %v1880, -inf
      %v2082 = vsel %vm1982, %v1882, -inf
      %v2083 = vsel %vm1983, %v1547, -inf
      %v2084 = vsel %vm1983, %v1549, -inf
      %v2085 = vsel %vm1983, %v1660, -inf
      %v2086 = vsel %vm1983, %v1662, -inf
      %v2087 = vsel %vm1983, %v1773, -inf
      %v2088 = vsel %vm1983, %v1775, -inf
      %v2089 = vsel %vm1983, %v1886, -inf
      %v2090 = vsel %vm1983, %v1888, -inf
      %v2091 = vsel %vm1984, %v1551, -inf
      %v2092 = vsel %vm1984, %v1553, -inf
      %v2093 = vsel %vm1984, %v1664, -inf
      %v2094 = vsel %vm1984, %v1666, -inf
      %v2095 = vsel %vm1984, %v1777, -inf
      %v2096 = vsel %vm1984, %v1779, -inf
      %v2097 = vsel %vm1984, %v1890, -inf
      %v2098 = vsel %vm1984, %v1892, -inf
      %v2099 = vsel %vm1985, %v1557, -inf
      %v2100 = vsel %vm1985, %v1559, -inf
      %v2101 = vsel %vm1985, %v1670, -inf
      %v2102 = vsel %vm1985, %v1672, -inf
      %v2103 = vsel %vm1985, %v1783, -inf
      %v2104 = vsel %vm1985, %v1785, -inf
      %v2105 = vsel %vm1985, %v1896, -inf
      %v2106 = vsel %vm1985, %v1898, -inf
      %v2107 = vsel %vm1986, %v1561, -inf
      %v2108 = vsel %vm1986, %v1563, -inf
      %v2109 = vsel %vm1986, %v1674, -inf
      %v2110 = vsel %vm1986, %v1676, -inf
      %v2111 = vsel %vm1986, %v1787, -inf
      %v2112 = vsel %vm1986, %v1789, -inf
      %v2113 = vsel %vm1986, %v1900, -inf
      %v2114 = vsel %vm1986, %v1902, -inf
      %v2115 = vld [vmem:[%s411] sm:$0xff]
      %v2116 = vmax.f32 %v1987, %v1995
      %v2117 = vmax.f32 %v2116, %v2003
      %v2118 = vmax.f32 %v2117, %v2011
      %v2119 = vmax.f32 %v2118, %v2019
      %v2120 = vmax.f32 %v2119, %v2027
      %v2121 = vmax.f32 %v2120, %v2035
      %v2122 = vmax.f32 %v2121, %v2043
      %v2123 = vmax.f32 %v2122, %v2051
      %v2124 = vmax.f32 %v2123, %v2059
      %v2125 = vmax.f32 %v2124, %v2067
      %v2126 = vmax.f32 %v2125, %v2075
      %v2127 = vmax.f32 %v2126, %v2083
      %v2128 = vmax.f32 %v2127, %v2091
      %v2129 = vmax.f32 %v2128, %v2099
      %v2130 = vmax.f32 %v2129, %v2107
      %v2131 = vrot.slane %v2130, 4
      %v2132 = vmax.f32 %v2130, %v2131
      %v2133 = vrot.slane %v2132, 2
      %v2134 = vmax.f32 %v2132, %v2133
      %v2135 = vrot.slane %v2134, 1
      %v2136 = vmax.f32 %v2134, %v2135
      %v2137 = vmax.f32 %v1988, %v1996
      %v2138 = vmax.f32 %v2137, %v2004
      %v2139 = vmax.f32 %v2138, %v2012
      %v2140 = vmax.f32 %v2139, %v2020
      %v2141 = vmax.f32 %v2140, %v2028
      %v2142 = vmax.f32 %v2141, %v2036
      %v2143 = vmax.f32 %v2142, %v2044
      %v2144 = vmax.f32 %v2143, %v2052
      %v2145 = vmax.f32 %v2144, %v2060
      %v2146 = vmax.f32 %v2145, %v2068
      %v2147 = vmax.f32 %v2146, %v2076
      %v2148 = vmax.f32 %v2147, %v2084
      %v2149 = vmax.f32 %v2148, %v2092
      %v2150 = vmax.f32 %v2149, %v2100
      %v2151 = vmax.f32 %v2150, %v2108
      %v2152 = vrot.slane %v2151, 4
      %v2153 = vmax.f32 %v2151, %v2152
      %v2154 = vrot.slane %v2153, 2
      %v2155 = vmax.f32 %v2153, %v2154
      %v2156 = vrot.slane %v2155, 1
      %v2157 = vmax.f32 %v2155, %v2156
      %v2158 = vmax.f32 %v1989, %v1997
      %v2159 = vmax.f32 %v2158, %v2005
      %v2160 = vmax.f32 %v2159, %v2013
      %v2161 = vmax.f32 %v2160, %v2021
      %v2162 = vmax.f32 %v2161, %v2029
      %v2163 = vmax.f32 %v2162, %v2037
      %v2164 = vmax.f32 %v2163, %v2045
      %v2165 = vmax.f32 %v2164, %v2053
      %v2166 = vmax.f32 %v2165, %v2061
      %v2167 = vmax.f32 %v2166, %v2069
      %v2168 = vmax.f32 %v2167, %v2077
      %v2169 = vmax.f32 %v2168, %v2085
      %v2170 = vmax.f32 %v2169, %v2093
      %v2171 = vmax.f32 %v2170, %v2101
      %v2172 = vmax.f32 %v2171, %v2109
      %v2173 = vrot.slane %v2172, 4
      %v2174 = vmax.f32 %v2172, %v2173
      %v2175 = vrot.slane %v2174, 2
      %v2176 = vmax.f32 %v2174, %v2175
      %v2177 = vrot.slane %v2176, 1
      %v2178 = vmax.f32 %v2176, %v2177
      %v2179 = vmax.f32 %v1990, %v1998
      %v2180 = vmax.f32 %v2179, %v2006
      %v2181 = vmax.f32 %v2180, %v2014
      %v2182 = vmax.f32 %v2181, %v2022
      %v2183 = vmax.f32 %v2182, %v2030
      %v2184 = vmax.f32 %v2183, %v2038
      %v2185 = vmax.f32 %v2184, %v2046
      %v2186 = vmax.f32 %v2185, %v2054
      %v2187 = vmax.f32 %v2186, %v2062
      %v2188 = vmax.f32 %v2187, %v2070
      %v2189 = vmax.f32 %v2188, %v2078
      %v2190 = vmax.f32 %v2189, %v2086
      %v2191 = vmax.f32 %v2190, %v2094
      %v2192 = vmax.f32 %v2191, %v2102
      %v2193 = vmax.f32 %v2192, %v2110
      %v2194 = vrot.slane %v2193, 4
      %v2195 = vmax.f32 %v2193, %v2194
      %v2196 = vrot.slane %v2195, 2
      %v2197 = vmax.f32 %v2195, %v2196
      %v2198 = vrot.slane %v2197, 1
      %v2199 = vmax.f32 %v2197, %v2198
      %v2200 = vmax.f32 %v1991, %v1999
      %v2201 = vmax.f32 %v2200, %v2007
      %v2202 = vmax.f32 %v2201, %v2015
      %v2203 = vmax.f32 %v2202, %v2023
      %v2204 = vmax.f32 %v2203, %v2031
      %v2205 = vmax.f32 %v2204, %v2039
      %v2206 = vmax.f32 %v2205, %v2047
      %v2207 = vmax.f32 %v2206, %v2055
      %v2208 = vmax.f32 %v2207, %v2063
      %v2209 = vmax.f32 %v2208, %v2071
      %v2210 = vmax.f32 %v2209, %v2079
      %v2211 = vmax.f32 %v2210, %v2087
      %v2212 = vmax.f32 %v2211, %v2095
      %v2213 = vmax.f32 %v2212, %v2103
      %v2214 = vmax.f32 %v2213, %v2111
      %v2215 = vrot.slane %v2214, 4
      %v2216 = vmax.f32 %v2214, %v2215
      %v2217 = vrot.slane %v2216, 2
      %v2218 = vmax.f32 %v2216, %v2217
      %v2219 = vrot.slane %v2218, 1
      %v2220 = vmax.f32 %v2218, %v2219
      %v2221 = vmax.f32 %v1992, %v2000
      %v2222 = vmax.f32 %v2221, %v2008
      %v2223 = vmax.f32 %v2222, %v2016
      %v2224 = vmax.f32 %v2223, %v2024
      %v2225 = vmax.f32 %v2224, %v2032
      %v2226 = vmax.f32 %v2225, %v2040
      %v2227 = vmax.f32 %v2226, %v2048
      %v2228 = vmax.f32 %v2227, %v2056
      %v2229 = vmax.f32 %v2228, %v2064
      %v2230 = vmax.f32 %v2229, %v2072
      %v2231 = vmax.f32 %v2230, %v2080
      %v2232 = vmax.f32 %v2231, %v2088
      %v2233 = vmax.f32 %v2232, %v2096
      %v2234 = vmax.f32 %v2233, %v2104
      %v2235 = vmax.f32 %v2234, %v2112
      %v2236 = vrot.slane %v2235, 4
      %v2237 = vmax.f32 %v2235, %v2236
      %v2238 = vrot.slane %v2237, 2
      %v2239 = vmax.f32 %v2237, %v2238
      %v2240 = vrot.slane %v2239, 1
      %v2241 = vmax.f32 %v2239, %v2240
      %v2242 = vmax.f32 %v1993, %v2001
      %v2243 = vmax.f32 %v2242, %v2009
      %v2244 = vmax.f32 %v2243, %v2017
      %v2245 = vmax.f32 %v2244, %v2025
      %v2246 = vmax.f32 %v2245, %v2033
      %v2247 = vmax.f32 %v2246, %v2041
      %v2248 = vmax.f32 %v2247, %v2049
      %v2249 = vmax.f32 %v2248, %v2057
      %v2250 = vmax.f32 %v2249, %v2065
      %v2251 = vmax.f32 %v2250, %v2073
      %v2252 = vmax.f32 %v2251, %v2081
      %v2253 = vmax.f32 %v2252, %v2089
      %v2254 = vmax.f32 %v2253, %v2097
      %v2255 = vmax.f32 %v2254, %v2105
      %v2256 = vmax.f32 %v2255, %v2113
      %v2257 = vrot.slane %v2256, 4
      %v2258 = vmax.f32 %v2256, %v2257
      %v2259 = vrot.slane %v2258, 2
      %v2260 = vmax.f32 %v2258, %v2259
      %v2261 = vrot.slane %v2260, 1
      %v2262 = vmax.f32 %v2260, %v2261
      %v2263 = vmax.f32 %v1994, %v2002
      %v2264 = vmax.f32 %v2263, %v2010
      %v2265 = vmax.f32 %v2264, %v2018
      %v2266 = vmax.f32 %v2265, %v2026
      %v2267 = vmax.f32 %v2266, %v2034
      %v2268 = vmax.f32 %v2267, %v2042
      %v2269 = vmax.f32 %v2268, %v2050
      %v2270 = vmax.f32 %v2269, %v2058
      %v2271 = vmax.f32 %v2270, %v2066
      %v2272 = vmax.f32 %v2271, %v2074
      %v2273 = vmax.f32 %v2272, %v2082
      %v2274 = vmax.f32 %v2273, %v2090
      %v2275 = vmax.f32 %v2274, %v2098
      %v2276 = vmax.f32 %v2275, %v2106
      %v2277 = vmax.f32 %v2276, %v2114
      %v2278 = vrot.slane %v2277, 4
      %v2279 = vmax.f32 %v2277, %v2278
      %v2280 = vrot.slane %v2279, 2
      %v2281 = vmax.f32 %v2279, %v2280
      %v2282 = vrot.slane %v2281, 1
      %v2283 = vmax.f32 %v2281, %v2282
      %v2292 = vcombine.low %v2136, %v2157
      %v2293 = vcombine.low %v2178, %v2199
      %v2294 = vcombine.low %v2220, %v2241
      %v2295 = vcombine.low %v2262, %v2283
      %v2297 = vunpack.c.l.s4 1966171168
      %v2298 = vunpack.c.0.s8 %v2297
      %v2299 = vlaneseq
      %v2300 = vshrl.u32 %v2299, 7
      %v2301 = vsub.s32 %v2298, %v2300
      %v2302 = vrot.slane %v2292, %v2301
      %v2304 = vunpack.c.l.s4 1966171168
      %v2305 = vunpack.c.0.s8 %v2304
      %v2306 = vlaneseq
      %v2307 = vshrl.u32 %v2306, 7
      %v2308 = vsub.s32 %v2305, %v2307
      %v2309 = vrot.slane %v2293, %v2308
      %v2311 = vunpack.c.l.s4 1966171168
      %v2312 = vunpack.c.0.s8 %v2311
      %v2313 = vlaneseq
      %v2314 = vshrl.u32 %v2313, 7
      %v2315 = vsub.s32 %v2312, %v2314
      %v2316 = vrot.slane %v2294, %v2315
      %v2318 = vunpack.c.l.s4 1966171168
      %v2319 = vunpack.c.0.s8 %v2318
      %v2320 = vlaneseq
      %v2321 = vshrl.u32 %v2320, 7
      %v2322 = vsub.s32 %v2319, %v2321
      %v2323 = vrot.slane %v2295, %v2322
      %v2324 = vcombine.low %v2302, %v2309
      %v2325 = vcombine.low %v2316, %v2323
      %v2327 = vunpack.c.l.s4 1966171168
      %v2328 = vunpack.c.0.s8 %v2327
      %v2329 = vlaneseq
      %v2330 = vshrl.u32 %v2329, 7
      %v2331 = vsub.s32 %v2328, %v2330
      %v2332 = vrot.slane %v2324, %v2331
      %v2334 = vunpack.c.l.s4 1966171168
      %v2335 = vunpack.c.0.s8 %v2334
      %v2336 = vlaneseq
      %v2337 = vshrl.u32 %v2336, 7
      %v2338 = vsub.s32 %v2335, %v2337
      %v2339 = vrot.slane %v2325, %v2338
      %v2340 = vcombine.low %v2332, %v2339
      %v2342 = vmax.f32 %v2115, %v2340
      %2343 = vst [vmem:[%s411] sm:$0xff] %v2342
      %p2344 = scmp.lt.s32.totalorder %s24, 1
      %s2345 = scalar_select %p2344, %s24, 1
      %s2346 = smul.addr %s2345, 8
      %s2347 = scalar_lea.vmem %s9, %s2346
      // Predicated region
      $region61: #{pointnetfeat_forward.3} parent=55 // pred_check
        %p2348 = pneg %p258
      $region62: #{pointnetfeat_forward.3} parent=55 // pred_check_branch
        %2350 = sbr.rel (%p2348) target = $region64
      $region63: #{pointnetfeat_forward.3} parent=55 // pred_region
        _
      $region64: #{pointnetfeat_forward.3} parent=55 // pred_fallthru
        _
    $region56: #{pointnetfeat_forward.3} parent=5 // pred_fallthru
      _
    %p2351 = scmp.le.s32.totalorder 2, %s15
    // Predicated region
    $region65: #{pointnetfeat_forward.3} parent=5 // pred_check
      %p2352 = pneg %p2351
    $region66: #{pointnetfeat_forward.3} parent=5 // pred_check_branch
      %2354 = sbr.rel (%p2352) target = $region68
    $region67: #{pointnetfeat_forward.3} parent=5 // pred_region
      %s2355 = ssub.s32 %s15, 2
      // Predicated region
      $region69: #{pointnetfeat_forward.3} parent=67 // pred_check
        %p2356 = pneg %p264
      $region70: #{pointnetfeat_forward.3} parent=67 // pred_check_branch
        %2358 = sbr.rel (%p2356) target = $region72
      $region71: #{pointnetfeat_forward.3} parent=67 // pred_region
        %p2359 = scmp.lt.s32.totalorder %s26, 1
        %s2360 = scalar_select %p2359, %s26, 1
        %s2361 = smul.addr %s2360, 8
        %s2362 = scalar_lea.vmem %s9, %s2361
      $region72: #{pointnetfeat_forward.3} parent=67 // pred_fallthru
        _
    $region68: #{pointnetfeat_forward.3} parent=5 // pred_fallthru
      _
  $region6: #{pointnetfeat_forward.3} parent=0 // loop_footer
    %s19 = sadd.s32 1, %s15
  $region7: #{pointnetfeat_forward.3} parent=0 // loop_footer_branch
    %14 = sbr.rel target = $region3
  $region8: #{pointnetfeat_forward.3} parent=0 // loop_exit
    _

// kernel: pointnetfeat_forward.2
$region0: #{pointnetfeat_forward.2}
  #allocation0 [shape = 'u32[]', space=smem, size = 0x4, offset = 0x4, fixed_abs, tag = 'smem constant byte address 0x4 - core index']
  #allocation1 [shape = 'u32[144,128]{1,0:T(1,128)}', space=vmem, size = 0x12000, scoped, tag = 'internal scratch']
  %s0 = inlined_call_operand.vmem [shape: bf16[2,384,4], index: 0, kind: input, shape index: {}]
  %s1 = inlined_call_operand.hbm [shape: bf16[1,4,64], index: 1, kind: input, shape index: {}]
  %s2 = inlined_call_operand.hbm [shape: f32[1,64], index: 2, kind: input, shape index: {}]
  %s3 = inlined_call_operand.hbm [shape: bf16[64,128], index: 3, kind: input, shape index: {}]
  %s4 = inlined_call_operand.hbm [shape: f32[1,128], index: 4, kind: input, shape index: {}]
  %s5 = inlined_call_operand.hbm [shape: bf16[128,1024], index: 5, kind: input, shape index: {}]
  %s6 = inlined_call_operand.hbm [shape: f32[1,1024], index: 6, kind: input, shape index: {}]
  %s7 = inlined_call_operand.vmem [shape: f32[2,1,1024], index: 7, kind: output, shape index: {}]
  %s8 = sld [smem:[#allocation0]]
  $region89: #{pointnetfeat_forward.2} parent=0
    _
  %s10 = ssub.s32 1, %s8
  %s11 = scalar_select 0, %s10, %s8
  $region1: #{pointnetfeat_forward.2} parent=0
    #allocation2 [shape = 'u8[1024]{0}', space=vmem, size = 0x400, scoped, tag = 'input window, operand 1, single buffered']
    #allocation3 [shape = 's32[2]{0}', space=sflag, size = 0x8, scoped, tag = 'scoped memory for pointnetfeat_forward.2']
    #allocation4 [shape = 'u8[512]{0}', space=vmem, size = 0x400, scoped, tag = 'input window, operand 2, single buffered']
    #allocation5 [shape = 's32[1]{0}', space=sflag, size = 0x4, scoped, tag = 'scoped memory for pointnetfeat_forward.2']
    #allocation6 [shape = 'u8[16384]{0}', space=vmem, size = 0x4000, scoped, tag = 'input window, operand 3, single buffered']
    #allocation7 [shape = 'u8[512]{0}', space=vmem, size = 0x400, scoped, tag = 'input window, operand 4, single buffered']
    #allocation8 [shape = 's32[1]{0}', space=sflag, size = 0x4, scoped, tag = 'scoped memory for pointnetfeat_forward.2']
    #allocation9 [shape = 'u8[262144]{0}', space=vmem, size = 0x40000, scoped, tag = 'input window, operand 5, single buffered']
    #allocation10 [shape = 'u8[4096]{0}', space=vmem, size = 0x1000, scoped, tag = 'input window, operand 6, single buffered']
    #allocation11 [shape = 's32[1]{0}', space=sflag, size = 0x4, scoped, tag = 'scoped memory for pointnetfeat_forward.2']
    %12 = vsyncpa [#allocation3], 0
    %13 = vsyncpa [#allocation5], 0
    %14 = vsyncpa [#allocation8], 0
    %15 = vsyncpa [#allocation11], 0
    loop: start=0, step=1, limit=8
    $region2: #{pointnetfeat_forward.2} parent=1 // loop_pre_header
      _
    $region3: #{pointnetfeat_forward.2} parent=1 // loop_header
      %s17 = sphi 0, %s21
      %p18 = scmp.ge.s32.totalorder %s17, 8
      %s24 = sphi 0, %s36
      %s25 = sphi 0, %s32
      %s26 = sphi 0, %s24
      %s27 = sphi 0, %s25
      %s28 = sphi 0, %s26
      %s29 = sphi 0, %s27
      %s41 = sphi 0, %s43
      %s44 = sphi 0, %s41
      %s45 = sphi 0, %s44
      %s61 = sphi 0, %s45
      %s65 = sphi 0, %s65
      %s67 = sphi 0, %s65
      %s68 = sphi 0, %s67
      %s82 = sphi 0, %s68
      %s86 = sphi 0, %s86
      %s88 = sphi 0, %s86
      %s89 = sphi 0, %s88
      %s103 = sphi 0, %s89
      %s107 = sphi 0, %s107
      %s109 = sphi 0, %s107
      %s110 = sphi 0, %s109
      %s124 = sphi 0, %s110
      %s128 = sphi 0, %s128
      %s130 = sphi 0, %s128
      %s131 = sphi 0, %s130
      %s145 = sphi 0, %s131
      %s149 = sphi 0, %s149
      %s151 = sphi 0, %s149
      %s152 = sphi 0, %s151
      %s166 = sphi 0, %s152
      %s170 = sphi 0, %s170
      %s172 = sphi 0, %s170
      %s173 = sphi 0, %s172
      %s187 = sphi 0, %s173
      %s193 = sphi 0, %s195
      %s196 = sphi 0, %s193
      %s197 = sphi 0, %s196
      %s213 = sphi 0, %s197
    $region4: #{pointnetfeat_forward.2} parent=1 // loop_header_branch
      %20 = sbr.rel (%p18) target = $region8
    $region5: #{pointnetfeat_forward.2} parent=1 // loop_body
      %s22 = ssub.s32 %s17, 1
      %s23 = ssub.s32 %s17, 2
      %s30 = sadd.s32 1, %s25
      %p31 = scmp.ge.s32.totalorder %s30, 3
      %s32 = scalar_select %p31, 0, %s30
      %s33 = sadd.s32 1, %s24
      %s34 = scalar_select %p31, %s33, %s24
      %p35 = scmp.ge.s32.totalorder %s34, 2
      %s36 = scalar_select %p35, 0, %s34
      %s37 = ssub.s32 %s24, %s36
      %s38 = ssub.s32 %s25, %s32
      %s39 = sor.u32 %s37, %s38
      %p40 = scmp.eq.s32.totalorder %s39, 0
      %s42 = sadd.s32 %s41, 1
      %s43 = scalar_select %p40, %s41, %s42
      %p46 = pneg %p40
      %p47 = scmp.eq.s32.totalorder %s17, 5
      %p48 = por %p46, %p47
      %p49 = scmp.ne.s32.totalorder %s41, %s44
      %p50 = scmp.eq.s32.totalorder %s17, 0
      %p51 = por %p49, %p50
      %p52 = scmp.ne.s32.totalorder %s41, %s44
      %p53 = scmp.eq.s32.totalorder %s22, 5
      %p54 = por %p52, %p53
      %p55 = scmp.ne.s32.totalorder %s44, %s45
      %p56 = scmp.eq.s32.totalorder %s22, 0
      %p57 = por %p55, %p56
      %p58 = scmp.ne.s32.totalorder %s44, %s45
      %p59 = scmp.eq.s32.totalorder %s23, 5
      %p60 = por %p58, %p59
      %p62 = scmp.ne.s32.totalorder %s45, %s61
      %p63 = scmp.eq.s32.totalorder %s23, 0
      %p64 = por %p62, %p63
      %s66 = sadd.s32 %s65, 1
      %p69 = scmp.eq.s32.totalorder %s17, 5
      %p70 = scmp.ne.s32.totalorder %s65, %s67
      %p71 = scmp.eq.s32.totalorder %s17, 0
      %p72 = por %p70, %p71
      %p73 = scmp.ne.s32.totalorder %s65, %s67
      %p74 = scmp.eq.s32.totalorder %s22, 5
      %p75 = por %p73, %p74
      %p76 = scmp.ne.s32.totalorder %s67, %s68
      %p77 = scmp.eq.s32.totalorder %s22, 0
      %p78 = por %p76, %p77
      %p79 = scmp.ne.s32.totalorder %s67, %s68
      %p80 = scmp.eq.s32.totalorder %s23, 5
      %p81 = por %p79, %p80
      %p83 = scmp.ne.s32.totalorder %s68, %s82
      %p84 = scmp.eq.s32.totalorder %s23, 0
      %p85 = por %p83, %p84
      %s87 = sadd.s32 %s86, 1
      %p90 = scmp.eq.s32.totalorder %s17, 5
      %p91 = scmp.ne.s32.totalorder %s86, %s88
      %p92 = scmp.eq.s32.totalorder %s17, 0
      %p93 = por %p91, %p92
      %p94 = scmp.ne.s32.totalorder %s86, %s88
      %p95 = scmp.eq.s32.totalorder %s22, 5
      %p96 = por %p94, %p95
      %p97 = scmp.ne.s32.totalorder %s88, %s89
      %p98 = scmp.eq.s32.totalorder %s22, 0
      %p99 = por %p97, %p98
      %p100 = scmp.ne.s32.totalorder %s88, %s89
      %p101 = scmp.eq.s32.totalorder %s23, 5
      %p102 = por %p100, %p101
      %p104 = scmp.ne.s32.totalorder %s89, %s103
      %p105 = scmp.eq.s32.totalorder %s23, 0
      %p106 = por %p104, %p105
      %s108 = sadd.s32 %s107, 1
      %p111 = scmp.eq.s32.totalorder %s17, 5
      %p112 = scmp.ne.s32.totalorder %s107, %s109
      %p113 = scmp.eq.s32.totalorder %s17, 0
      %p114 = por %p112, %p113
      %p115 = scmp.ne.s32.totalorder %s107, %s109
      %p116 = scmp.eq.s32.totalorder %s22, 5
      %p117 = por %p115, %p116
      %p118 = scmp.ne.s32.totalorder %s109, %s110
      %p119 = scmp.eq.s32.totalorder %s22, 0
      %p120 = por %p118, %p119
      %p121 = scmp.ne.s32.totalorder %s109, %s110
      %p122 = scmp.eq.s32.totalorder %s23, 5
      %p123 = por %p121, %p122
      %p125 = scmp.ne.s32.totalorder %s110, %s124
      %p126 = scmp.eq.s32.totalorder %s23, 0
      %p127 = por %p125, %p126
      %s129 = sadd.s32 %s128, 1
      %p132 = scmp.eq.s32.totalorder %s17, 5
      %p133 = scmp.ne.s32.totalorder %s128, %s130
      %p134 = scmp.eq.s32.totalorder %s17, 0
      %p135 = por %p133, %p134
      %p136 = scmp.ne.s32.totalorder %s128, %s130
      %p137 = scmp.eq.s32.totalorder %s22, 5
      %p138 = por %p136, %p137
      %p139 = scmp.ne.s32.totalorder %s130, %s131
      %p140 = scmp.eq.s32.totalorder %s22, 0
      %p141 = por %p139, %p140
      %p142 = scmp.ne.s32.totalorder %s130, %s131
      %p143 = scmp.eq.s32.totalorder %s23, 5
      %p144 = por %p142, %p143
      %p146 = scmp.ne.s32.totalorder %s131, %s145
      %p147 = scmp.eq.s32.totalorder %s23, 0
      %p148 = por %p146, %p147
      %s150 = sadd.s32 %s149, 1
      %p153 = scmp.eq.s32.totalorder %s17, 5
      %p154 = scmp.ne.s32.totalorder %s149, %s151
      %p155 = scmp.eq.s32.totalorder %s17, 0
      %p156 = por %p154, %p155
      %p157 = scmp.ne.s32.totalorder %s149, %s151
      %p158 = scmp.eq.s32.totalorder %s22, 5
      %p159 = por %p157, %p158
      %p160 = scmp.ne.s32.totalorder %s151, %s152
      %p161 = scmp.eq.s32.totalorder %s22, 0
      %p162 = por %p160, %p161
      %p163 = scmp.ne.s32.totalorder %s151, %s152
      %p164 = scmp.eq.s32.totalorder %s23, 5
      %p165 = por %p163, %p164
      %p167 = scmp.ne.s32.totalorder %s152, %s166
      %p168 = scmp.eq.s32.totalorder %s23, 0
      %p169 = por %p167, %p168
      %s171 = sadd.s32 %s170, 1
      %p174 = scmp.eq.s32.totalorder %s17, 5
      %p175 = scmp.ne.s32.totalorder %s170, %s172
      %p176 = scmp.eq.s32.totalorder %s17, 0
      %p177 = por %p175, %p176
      %p178 = scmp.ne.s32.totalorder %s170, %s172
      %p179 = scmp.eq.s32.totalorder %s22, 5
      %p180 = por %p178, %p179
      %p181 = scmp.ne.s32.totalorder %s172, %s173
      %p182 = scmp.eq.s32.totalorder %s22, 0
      %p183 = por %p181, %p182
      %p184 = scmp.ne.s32.totalorder %s172, %s173
      %p185 = scmp.eq.s32.totalorder %s23, 5
      %p186 = por %p184, %p185
      %p188 = scmp.ne.s32.totalorder %s173, %s187
      %p189 = scmp.eq.s32.totalorder %s23, 0
      %p190 = por %p188, %p189
      %s191 = ssub.s32 %s24, %s36
      %p192 = scmp.eq.s32.totalorder %s191, 0
      %s194 = sadd.s32 %s193, 1
      %s195 = scalar_select %p192, %s193, %s194
      %p198 = pneg %p192
      %p199 = scmp.eq.s32.totalorder %s17, 5
      %p200 = por %p198, %p199
      %p201 = scmp.ne.s32.totalorder %s193, %s196
      %p202 = scmp.eq.s32.totalorder %s17, 0
      %p203 = por %p201, %p202
      %p204 = scmp.ne.s32.totalorder %s193, %s196
      %p205 = scmp.eq.s32.totalorder %s22, 5
      %p206 = por %p204, %p205
      %p207 = scmp.ne.s32.totalorder %s196, %s197
      %p208 = scmp.eq.s32.totalorder %s22, 0
      %p209 = por %p207, %p208
      %p210 = scmp.ne.s32.totalorder %s196, %s197
      %p211 = scmp.eq.s32.totalorder %s23, 5
      %p212 = por %p210, %p211
      %p214 = scmp.ne.s32.totalorder %s197, %s213
      %p215 = scmp.eq.s32.totalorder %s23, 0
      %p216 = por %p214, %p215
      %p217 = scmp.le.s32.totalorder 1, %s17
      %p218 = scmp.lt.s32.totalorder %s17, 7
      %p219 = pnand %p217, %p218
      %p220 = pneg %p219
      // Predicated region
      $region9: #{pointnetfeat_forward.2} parent=5 // pred_check
        _
      $region10: #{pointnetfeat_forward.2} parent=5 // pred_check_branch
        %222 = sbr.rel (%p219) target = $region12
      $region11: #{pointnetfeat_forward.2} parent=5 // pred_region
        %s223 = ssub.s32 %s17, 1
        // Predicated region
        $region13: #{pointnetfeat_forward.2} parent=11 // pred_check
          %p224 = pneg %p78
        $region14: #{pointnetfeat_forward.2} parent=11 // pred_check_branch
          %226 = sbr.rel (%p224) target = $region16
        $region15: #{pointnetfeat_forward.2} parent=11 // pred_region
          %s228 = ssub.s32 32, 32
          %229 = vsyncadd [#allocation3], %s228
          %s231 = sshll.u32 [#allocation2], 4
          %s232 = int_to_ptr.vmem [resolvable:$true] %s231
          %234 = dma.hbm_to_vmem [thread:$0]  %s1, 32, %s232, [#allocation3]
        $region16: #{pointnetfeat_forward.2} parent=11 // pred_fallthru
          _
        // Predicated region
        $region17: #{pointnetfeat_forward.2} parent=11 // pred_check
          %p235 = pneg %p99
        $region18: #{pointnetfeat_forward.2} parent=11 // pred_check_branch
          %237 = sbr.rel (%p235) target = $region20
        $region19: #{pointnetfeat_forward.2} parent=11 // pred_region
          %s239 = ssub.s32 16, 16
          %240 = vsyncadd [#allocation5], %s239
          %s242 = sshll.u32 [#allocation4], 4
          %s243 = int_to_ptr.vmem [resolvable:$true] %s242
          %245 = dma.hbm_to_vmem [thread:$0]  %s2, 16, %s243, [#allocation5]
        $region20: #{pointnetfeat_forward.2} parent=11 // pred_fallthru
          _
        // Predicated region
        $region21: #{pointnetfeat_forward.2} parent=11 // pred_check
          %p246 = pneg %p120
        $region22: #{pointnetfeat_forward.2} parent=11 // pred_check_branch
          %248 = sbr.rel (%p246) target = $region24
        $region23: #{pointnetfeat_forward.2} parent=11 // pred_region
          %s250 = ssub.s32 512, 512
          %251 = vsyncadd [#allocation5], %s250
          %s252 = sshll.u32 [#allocation6], 4
          %s253 = int_to_ptr.vmem [resolvable:$true] %s252
          %258 = dma.hbm_to_vmem [thread:$0]  %s3, 512, %s253, [#allocation5], 64, 64, 4
        $region24: #{pointnetfeat_forward.2} parent=11 // pred_fallthru
          _
        // Predicated region
        $region25: #{pointnetfeat_forward.2} parent=11 // pred_check
          %p259 = pneg %p141
        $region26: #{pointnetfeat_forward.2} parent=11 // pred_check_branch
          %261 = sbr.rel (%p259) target = $region28
        $region27: #{pointnetfeat_forward.2} parent=11 // pred_region
          %s263 = ssub.s32 16, 16
          %264 = vsyncadd [#allocation8], %s263
          %s266 = sshll.u32 [#allocation7], 4
          %s267 = int_to_ptr.vmem [resolvable:$true] %s266
          %269 = dma.hbm_to_vmem [thread:$0]  %s4, 16, %s267, [#allocation8]
        $region28: #{pointnetfeat_forward.2} parent=11 // pred_fallthru
          _
        // Predicated region
        $region29: #{pointnetfeat_forward.2} parent=11 // pred_check
          %p270 = pneg %p162
        $region30: #{pointnetfeat_forward.2} parent=11 // pred_check_branch
          %272 = sbr.rel (%p270) target = $region32
        $region31: #{pointnetfeat_forward.2} parent=11 // pred_region
          %s274 = ssub.s32 8192, 8192
          %275 = vsyncadd [#allocation8], %s274
          %s276 = sshll.u32 [#allocation9], 4
          %s277 = int_to_ptr.vmem [resolvable:$true] %s276
          %282 = dma.hbm_to_vmem [thread:$0]  %s5, 8192, %s277, [#allocation8], 512, 512, 32
        $region32: #{pointnetfeat_forward.2} parent=11 // pred_fallthru
          _
        // Predicated region
        $region33: #{pointnetfeat_forward.2} parent=11 // pred_check
          %p283 = pneg %p183
        $region34: #{pointnetfeat_forward.2} parent=11 // pred_check_branch
          %285 = sbr.rel (%p283) target = $region36
        $region35: #{pointnetfeat_forward.2} parent=11 // pred_region
          %s287 = ssub.s32 128, 128
          %288 = vsyncadd [#allocation11], %s287
          %s290 = sshll.u32 [#allocation10], 4
          %s291 = int_to_ptr.vmem [resolvable:$true] %s290
          %293 = dma.hbm_to_vmem [thread:$0]  %s6, 128, %s291, [#allocation11]
        $region36: #{pointnetfeat_forward.2} parent=11 // pred_fallthru
          _
      $region12: #{pointnetfeat_forward.2} parent=5 // pred_fallthru
        _
      %p294 = scmp.lt.s32.totalorder %s17, 6
      // Predicated region
      $region37: #{pointnetfeat_forward.2} parent=5 // pred_check
        %p295 = pneg %p294
      $region38: #{pointnetfeat_forward.2} parent=5 // pred_check_branch
        %297 = sbr.rel (%p295) target = $region40
      $region39: #{pointnetfeat_forward.2} parent=5 // pred_region
        // Predicated region
        $region41: #{pointnetfeat_forward.2} parent=39 // pred_check
          %p298 = pneg %p51
        $region42: #{pointnetfeat_forward.2} parent=39 // pred_check_branch
          %300 = sbr.rel (%p298) target = $region44
        $region43: #{pointnetfeat_forward.2} parent=39 // pred_region
          %s301 = smul.u32 16, %s25
          %p302 = scmp.lt.s32.totalorder %s24, 1
          %s303 = scalar_select %p302, %s24, 1
          %p304 = scmp.lt.s32.totalorder %s301, 47
          %s305 = scalar_select %p304, %s301, 47
          %s306 = smul.addr %s303, 48
          %s307 = sadd.s32 %s305, %s306
          %s308 = smul.addr %s307, 4
          %s309 = scalar_lea.vmem %s0, %s308
          %s310 = smul.u32 16, %s25
        $region44: #{pointnetfeat_forward.2} parent=39 // pred_fallthru
          _
      $region40: #{pointnetfeat_forward.2} parent=5 // pred_fallthru
        _
      %p311 = scmp.le.s32.totalorder 1, %s17
      %p312 = scmp.lt.s32.totalorder %s17, 7
      %p313 = pnand %p311, %p312
      %p314 = pneg %p313
      // Predicated region
      $region45: #{pointnetfeat_forward.2} parent=5 // pred_check
        _
      $region46: #{pointnetfeat_forward.2} parent=5 // pred_check_branch
        %316 = sbr.rel (%p313) target = $region48
      $region47: #{pointnetfeat_forward.2} parent=5 // pred_region
        %s317 = ssub.s32 %s17, 1
        // Predicated region
        $region49: #{pointnetfeat_forward.2} parent=47 // pred_check
          %p318 = pneg %p78
        $region50: #{pointnetfeat_forward.2} parent=47 // pred_check_branch
          %320 = sbr.rel (%p318) target = $region52
        $region51: #{pointnetfeat_forward.2} parent=47 // pred_region
          %321 = dma.done [#allocation3], 32
        $region52: #{pointnetfeat_forward.2} parent=47 // pred_fallthru
          _
        // Predicated region
        $region53: #{pointnetfeat_forward.2} parent=47 // pred_check
          %p322 = pneg %p99
        $region54: #{pointnetfeat_forward.2} parent=47 // pred_check_branch
          %324 = sbr.rel (%p322) target = $region56
        $region55: #{pointnetfeat_forward.2} parent=47 // pred_region
          %325 = dma.done [#allocation5], 16
        $region56: #{pointnetfeat_forward.2} parent=47 // pred_fallthru
          _
        // Predicated region
        $region57: #{pointnetfeat_forward.2} parent=47 // pred_check
          %p326 = pneg %p120
        $region58: #{pointnetfeat_forward.2} parent=47 // pred_check_branch
          %328 = sbr.rel (%p326) target = $region60
        $region59: #{pointnetfeat_forward.2} parent=47 // pred_region
          %329 = dma.done [#allocation5], 512
        $region60: #{pointnetfeat_forward.2} parent=47 // pred_fallthru
          _
        // Predicated region
        $region61: #{pointnetfeat_forward.2} parent=47 // pred_check
          %p330 = pneg %p141
        $region62: #{pointnetfeat_forward.2} parent=47 // pred_check_branch
          %332 = sbr.rel (%p330) target = $region64
        $region63: #{pointnetfeat_forward.2} parent=47 // pred_region
          %333 = dma.done [#allocation8], 16
        $region64: #{pointnetfeat_forward.2} parent=47 // pred_fallthru
          _
        // Predicated region
        $region65: #{pointnetfeat_forward.2} parent=47 // pred_check
          %p334 = pneg %p162
        $region66: #{pointnetfeat_forward.2} parent=47 // pred_check_branch
          %336 = sbr.rel (%p334) target = $region68
        $region67: #{pointnetfeat_forward.2} parent=47 // pred_region
          %337 = dma.done [#allocation8], 8192
        $region68: #{pointnetfeat_forward.2} parent=47 // pred_fallthru
          _
        // Predicated region
        $region69: #{pointnetfeat_forward.2} parent=47 // pred_check
          %p338 = pneg %p183
        $region70: #{pointnetfeat_forward.2} parent=47 // pred_check_branch
          %340 = sbr.rel (%p338) target = $region72
        $region71: #{pointnetfeat_forward.2} parent=47 // pred_region
          %341 = dma.done [#allocation11], 128
        $region72: #{pointnetfeat_forward.2} parent=47 // pred_fallthru
          _
        %s342 = smul.u32 16, %s27
        %p343 = scmp.lt.s32.totalorder %s26, 1
        %s344 = scalar_select %p343, %s26, 1
        %p345 = scmp.lt.s32.totalorder %s342, 47
        %s346 = scalar_select %p345, %s342, 47
        %s347 = smul.addr %s344, 48
        %s348 = sadd.s32 %s346, %s347
        %s349 = smul.addr %s348, 4
        %s350 = scalar_lea.vmem %s0, %s349
        %p351 = pneg %p57
        %p352 = pneg %p54
        %p353 = pneg %p78
        %p354 = pneg %p75
        %p355 = pneg %p99
        %p356 = pneg %p96
        %p357 = pneg %p120
        %p358 = pneg %p117
        %p359 = pneg %p141
        %p360 = pneg %p138
        %p361 = pneg %p162
        %p362 = pneg %p159
        %p363 = pneg %p183
        %p364 = pneg %p180
        %p365 = pneg %p209
        %p366 = pneg %p206
        %p367 = scmp.lt.s32.totalorder %s26, 1
        %s368 = scalar_select %p367, %s26, 1
        %s369 = smul.addr %s368, 8
        %s370 = scalar_lea.vmem %s7, %s369
        %s371 = smul.u32 16, %s27
        %p372 = scmp.lt.s32.totalorder %s26, 1
        %s373 = scalar_select %p372, %s26, 1
        %p374 = scmp.lt.s32.totalorder %s371, 47
        %s375 = scalar_select %p374, %s371, 47
        %s376 = smul.addr %s373, 48
        %s377 = sadd.s32 %s375, %s376
        %s378 = smul.addr %s377, 4
        %s379 = scalar_lea.vmem %s0, %s378
        %s380 = smul.u32 16, %s27
        %p381 = scmp.lt.s32.totalorder %s26, 1
        %s382 = scalar_select %p381, %s26, 1
        %s383 = smul.addr %s382, 8
        %s384 = scalar_lea.vmem %s7, %s383
        %p386 = scmp.eq.s32.totalorder %s27, 0
        // Predicated region
        $region73: #{pointnetfeat_forward.2} parent=47 // pred_check
          %p387 = pneg %p386
        $region74: #{pointnetfeat_forward.2} parent=47 // pred_check_branch
          %389 = sbr.rel (%p387) target = $region76
        $region75: #{pointnetfeat_forward.2} parent=47 // pred_region
          %390 = vst [vmem:[%s384] sm:$0xff] -inf
        $region76: #{pointnetfeat_forward.2} parent=47 // pred_fallthru
          _
        %v391 = vld [vmem:[%s379] sm:$0xf]
        %v392 = vld [vmem:[%s379 + $0x4] sm:$0xf]
        %v393 = vld [vmem:[%s379 + $0x8] sm:$0xf]
        %v394 = vld [vmem:[%s379 + $0xc] sm:$0xf]
        %v395 = vld [vmem:[%s379 + $0x10] sm:$0xf]
        %v396 = vld [vmem:[%s379 + $0x14] sm:$0xf]
        %v397 = vld [vmem:[%s379 + $0x18] sm:$0xf]
        %v398 = vld [vmem:[%s379 + $0x1c] sm:$0xf]
        %v399 = vld [vmem:[%s379 + $0x20] sm:$0xf]
        %v400 = vld [vmem:[%s379 + $0x24] sm:$0xf]
        %v401 = vld [vmem:[%s379 + $0x28] sm:$0xf]
        %v402 = vld [vmem:[%s379 + $0x2c] sm:$0xf]
        %v403 = vld [vmem:[%s379 + $0x30] sm:$0xf]
        %v404 = vld [vmem:[%s379 + $0x34] sm:$0xf]
        %v405 = vld [vmem:[%s379 + $0x38] sm:$0xf]
        %v406 = vld [vmem:[%s379 + $0x3c] sm:$0xf]
        %v407 = vld [vmem:[#allocation2] sm:$0x3]
        %v408 = vld [vmem:[#allocation4] sm:$0x1]
        %v410 = vlaneseq
        %v411 = vshrl.u32 %v410, 7
        %v412 = vsub.s32 0, %v411
        %v413 = vrot.slane %v408, %v412
        %v431 = vunpack.c.l.b16 %v391
        %v432 = vunpack.c.l.b16 %v392
        %v433 = vunpack.c.l.b16 %v393
        %v434 = vunpack.c.l.b16 %v394
        %v435 = vunpack.c.l.b16 %v395
        %v436 = vunpack.c.l.b16 %v396
        %v437 = vunpack.c.l.b16 %v397
        %v438 = vunpack.c.l.b16 %v398
        %v439 = vunpack.c.l.b16 %v399
        %v440 = vunpack.c.l.b16 %v400
        %v441 = vunpack.c.l.b16 %v401
        %v442 = vunpack.c.l.b16 %v402
        %v443 = vunpack.c.l.b16 %v403
        %v444 = vunpack.c.l.b16 %v404
        %v445 = vunpack.c.l.b16 %v405
        %v446 = vunpack.c.l.b16 %v406
        %v447 = vpack.c.b16 %v432, %v431
        %v448 = vpack.c.b16 %v434, %v433
        %v449 = vpack.c.b16 %v436, %v435
        %v450 = vpack.c.b16 %v438, %v437
        %v451 = vpack.c.b16 %v440, %v439
        %v452 = vpack.c.b16 %v442, %v441
        %v453 = vpack.c.b16 %v444, %v443
        %v454 = vpack.c.b16 %v446, %v445
        %vm455 = vcmask 31744
        %v457 = vsel %vm455, %v447, 0
        %v460 = vsel %vm455, %v448, 0
        %v463 = vsel %vm455, %v449, 0
        %v466 = vsel %vm455, %v450, 0
        %v469 = vsel %vm455, %v451, 0
        %v472 = vsel %vm455, %v452, 0
        %v475 = vsel %vm455, %v453, 0
        %v478 = vsel %vm455, %v454, 0
        %vm480 = vcmask 1041408
        %v482 = vsel %vm480, %v407, 0
        %484 = vmatprep.subr.bf16.mxu0 0
        %485 = vmatpush1.bf16.msra.mxu0 %v482
        %486 = vmatprep.subr.bf16.mxu0 0
        %487 = vmatpush1.bf16.msra.mxu0 0
        %488 = vmatprep.subr.bf16.mxu0 0
        %489 = vmatpush1.bf16.msra.mxu0 0
        %490 = vmatprep.subr.bf16.mxu0 0
        %491 = vmatpush1.bf16.msra.mxu0 0
        %492 = vmatprep.subr.bf16.mxu0 0
        %493 = vmatpush1.bf16.msra.mxu0 0
        %494 = vmatprep.subr.bf16.mxu0 0
        %495 = vmatpush1.bf16.msra.mxu0 0
        %496 = vmatprep.subr.bf16.mxu0 0
        %497 = vmatpush1.bf16.msra.mxu0 0
        %498 = vmatprep.subr.bf16.mxu0 0
        %499 = vmatpush1.bf16.msra.mxu0 0
        %500 = vmatprep.subr.bf16.mxu0 0
        %501 = vmatpush1.bf16.msra.mxu0 0
        %502 = vmatprep.subr.bf16.mxu0 0
        %503 = vmatpush1.bf16.msra.mxu0 0
        %504 = vmatprep.subr.bf16.mxu0 0
        %505 = vmatpush1.bf16.msra.mxu0 0
        %506 = vmatprep.subr.bf16.mxu0 0
        %507 = vmatpush1.bf16.msra.mxu0 0
        %508 = vmatprep.subr.bf16.mxu0 0
        %509 = vmatpush1.bf16.msra.mxu0 0
        %510 = vmatprep.subr.bf16.mxu0 0
        %511 = vmatpush1.bf16.msra.mxu0 0
        %512 = vmatprep.subr.bf16.mxu0 0
        %513 = vmatpush1.bf16.msra.mxu0 0
        %514 = vmatprep.subr.bf16.mxu0 0
        %515 = vmatpush1.bf16.msra.mxu0 0
        %516 = vmatprep.mubr.bf16.mxu0 0
        %517 = vmatmul.mubr.bf16.gmra.mrb[0].mxu0 %v457
        %v518 = vpop.f32.mrb[0].mxu0
        %v519 = vadd.f32 %v413, %v518
        %v520 = vpop.f32.mrb[0].mxu0
        %v521 = vpop.f32.mrb[0].mxu0
        %v522 = vadd.f32 %v413, %v521
        %v523 = vpop.f32.mrb[0].mxu0
        %524 = vmatprep.mubr.bf16.mxu0 0
        %525 = vmatmul.mubr.bf16.gmra.mrb[0].mxu0 %v460
        %v526 = vpop.f32.mrb[0].mxu0
        %v527 = vadd.f32 %v413, %v526
        %v528 = vpop.f32.mrb[0].mxu0
        %v529 = vpop.f32.mrb[0].mxu0
        %v530 = vadd.f32 %v413, %v529
        %v531 = vpop.f32.mrb[0].mxu0
        %532 = vmatprep.mubr.bf16.mxu0 0
        %533 = vmatmul.mubr.bf16.gmra.mrb[0].mxu0 %v463
        %v534 = vpop.f32.mrb[0].mxu0
        %v535 = vadd.f32 %v413, %v534
        %v536 = vpop.f32.mrb[0].mxu0
        %v537 = vpop.f32.mrb[0].mxu0
        %v538 = vadd.f32 %v413, %v537
        %v539 = vpop.f32.mrb[0].mxu0
        %540 = vmatprep.mubr.bf16.mxu0 0
        %541 = vmatmul.mubr.bf16.gmra.mrb[0].mxu0 %v466
        %v542 = vpop.f32.mrb[0].mxu0
        %v543 = vadd.f32 %v413, %v542
        %v544 = vpop.f32.mrb[0].mxu0
        %v545 = vpop.f32.mrb[0].mxu0
        %v546 = vadd.f32 %v413, %v545
        %v547 = vpop.f32.mrb[0].mxu0
        %548 = vmatprep.mubr.bf16.mxu0 0
        %549 = vmatmul.mubr.bf16.gmra.mrb[0].mxu0 %v469
        %v550 = vpop.f32.mrb[0].mxu0
        %v551 = vadd.f32 %v413, %v550
        %v552 = vpop.f32.mrb[0].mxu0
        %v553 = vpop.f32.mrb[0].mxu0
        %v554 = vadd.f32 %v413, %v553
        %v555 = vpop.f32.mrb[0].mxu0
        %556 = vmatprep.mubr.bf16.mxu0 0
        %557 = vmatmul.mubr.bf16.gmra.mrb[0].mxu0 %v472
        %v558 = vpop.f32.mrb[0].mxu0
        %v559 = vadd.f32 %v413, %v558
        %v560 = vpop.f32.mrb[0].mxu0
        %v561 = vpop.f32.mrb[0].mxu0
        %v562 = vadd.f32 %v413, %v561
        %v563 = vpop.f32.mrb[0].mxu0
        %564 = vmatprep.mubr.bf16.mxu0 0
        %565 = vmatmul.mubr.bf16.gmra.mrb[0].mxu0 %v475
        %v566 = vpop.f32.mrb[0].mxu0
        %v567 = vadd.f32 %v413, %v566
        %v568 = vpop.f32.mrb[0].mxu0
        %v569 = vpop.f32.mrb[0].mxu0
        %v570 = vadd.f32 %v413, %v569
        %v571 = vpop.f32.mrb[0].mxu0
        %572 = vmatprep.mubr.bf16.mxu0 0
        %573 = vmatmul.mubr.bf16.gmra.mrb[0].mxu0 %v478
        %v574 = vpop.f32.mrb[0].mxu0
        %v575 = vadd.f32 %v413, %v574
        %v576 = vpop.f32.mrb[0].mxu0
        %v577 = vpop.f32.mrb[0].mxu0
        %v578 = vadd.f32 %v413, %v577
        %v579 = vpop.f32.mrb[0].mxu0
        %580 = vdwg.mxu0
        %v581 = vmax.f32 %v519, 0.0
        %v582 = vmax.f32 %v522, 0.0
        %v583 = vmax.f32 %v527, 0.0
        %v584 = vmax.f32 %v530, 0.0
        %v585 = vmax.f32 %v535, 0.0
        %v586 = vmax.f32 %v538, 0.0
        %v587 = vmax.f32 %v543, 0.0
        %v588 = vmax.f32 %v546, 0.0
        %v589 = vmax.f32 %v551, 0.0
        %v590 = vmax.f32 %v554, 0.0
        %v591 = vmax.f32 %v559, 0.0
        %v592 = vmax.f32 %v562, 0.0
        %v593 = vmax.f32 %v567, 0.0
        %v594 = vmax.f32 %v570, 0.0
        %v595 = vmax.f32 %v575, 0.0
        %v596 = vmax.f32 %v578, 0.0
        %v597 = vpack.c.bf16 %v582, %v581
        %v598 = vpack.c.bf16 %v584, %v583
        %v599 = vpack.c.bf16 %v586, %v585
        %v600 = vpack.c.bf16 %v588, %v587
        %v601 = vpack.c.bf16 %v590, %v589
        %v602 = vpack.c.bf16 %v592, %v591
        %v603 = vpack.c.bf16 %v594, %v593
        %v604 = vpack.c.bf16 %v596, %v595
        %v605 = vld [vmem:[#allocation6] sm:$0xf]
        %v606 = vld [vmem:[#allocation6 + $0x4] sm:$0xf]
        %v607 = vld [vmem:[#allocation6 + $0x8] sm:$0xf]
        %v608 = vld [vmem:[#allocation6 + $0xc] sm:$0xf]
        %v609 = vld [vmem:[#allocation6 + $0x10] sm:$0xf]
        %v610 = vld [vmem:[#allocation6 + $0x14] sm:$0xf]
        %v611 = vld [vmem:[#allocation6 + $0x18] sm:$0xf]
        %v612 = vld [vmem:[#allocation6 + $0x1c] sm:$0xf]
        %v613 = vld [vmem:[#allocation7] sm:$0x1]
        %v615 = vlaneseq
        %v616 = vshrl.u32 %v615, 7
        %v617 = vsub.s32 0, %v616
        %v618 = vrot.slane %v613, %v617
        %v628 = vunpack.c.l.b16 %v605
        %v629 = vunpack.c.l.b16 %v606
        %v630 = vunpack.c.l.b16 %v607
        %v631 = vunpack.c.l.b16 %v608
        %v632 = vunpack.c.l.b16 %v609
        %v633 = vunpack.c.l.b16 %v610
        %v634 = vunpack.c.l.b16 %v611
        %v635 = vunpack.c.l.b16 %v612
        %v636 = vpack.c.b16 %v629, %v628
        %v637 = vpack.c.b16 %v631, %v630
        %v638 = vpack.c.b16 %v633, %v632
        %v639 = vpack.c.b16 %v635, %v634
        %vm644 = vcmask 523264
        %v646 = vsel %vm644, %v597, 0
        %v649 = vsel %vm644, %v598, 0
        %v652 = vsel %vm644, %v599, 0
        %v655 = vsel %vm644, %v600, 0
        %v658 = vsel %vm644, %v601, 0
        %v661 = vsel %vm644, %v602, 0
        %v664 = vsel %vm644, %v603, 0
        %v667 = vsel %vm644, %v604, 0
        %669 = vmatprep.subr.bf16.mxu0 0
        %670 = vmatpush1.bf16.msra.mxu0 %v636
        %671 = vmatprep.subr.bf16.mxu0 0
        %672 = vmatpush1.bf16.msra.mxu0 %v637
        %673 = vmatprep.subr.bf16.mxu0 0
        %674 = vmatpush1.bf16.msra.mxu0 %v638
        %675 = vmatprep.subr.bf16.mxu0 0
        %676 = vmatpush1.bf16.msra.mxu0 %v639
        %677 = vmatprep.subr.bf16.mxu0 0
        %678 = vmatpush1.bf16.msra.mxu0 0
        %679 = vmatprep.subr.bf16.mxu0 0
        %680 = vmatpush1.bf16.msra.mxu0 0
        %681 = vmatprep.subr.bf16.mxu0 0
        %682 = vmatpush1.bf16.msra.mxu0 0
        %683 = vmatprep.subr.bf16.mxu0 0
        %684 = vmatpush1.bf16.msra.mxu0 0
        %685 = vmatprep.subr.bf16.mxu0 0
        %686 = vmatpush1.bf16.msra.mxu0 0
        %687 = vmatprep.subr.bf16.mxu0 0
        %688 = vmatpush1.bf16.msra.mxu0 0
        %689 = vmatprep.subr.bf16.mxu0 0
        %690 = vmatpush1.bf16.msra.mxu0 0
        %691 = vmatprep.subr.bf16.mxu0 0
        %692 = vmatpush1.bf16.msra.mxu0 0
        %693 = vmatprep.subr.bf16.mxu0 0
        %694 = vmatpush1.bf16.msra.mxu0 0
        %695 = vmatprep.subr.bf16.mxu0 0
        %696 = vmatpush1.bf16.msra.mxu0 0
        %697 = vmatprep.subr.bf16.mxu0 0
        %698 = vmatpush1.bf16.msra.mxu0 0
        %699 = vmatprep.subr.bf16.mxu0 0
        %700 = vmatpush1.bf16.msra.mxu0 0
        %701 = vmatprep.mubr.bf16.mxu0 0
        %702 = vmatmul.mubr.bf16.gmra.mrb[0].mxu0 %v646
        %v703 = vpop.f32.mrb[0].mxu0
        %v704 = vadd.f32 %v618, %v703
        %v705 = vpop.f32.mrb[0].mxu0
        %v706 = vpop.f32.mrb[0].mxu0
        %v707 = vadd.f32 %v618, %v706
        %v708 = vpop.f32.mrb[0].mxu0
        %709 = vmatprep.mubr.bf16.mxu0 0
        %710 = vmatmul.mubr.bf16.gmra.mrb[0].mxu0 %v649
        %v711 = vpop.f32.mrb[0].mxu0
        %v712 = vadd.f32 %v618, %v711
        %v713 = vpop.f32.mrb[0].mxu0
        %v714 = vpop.f32.mrb[0].mxu0
        %v715 = vadd.f32 %v618, %v714
        %v716 = vpop.f32.mrb[0].mxu0
        %717 = vmatprep.mubr.bf16.mxu0 0
        %718 = vmatmul.mubr.bf16.gmra.mrb[0].mxu0 %v652
        %v719 = vpop.f32.mrb[0].mxu0
        %v720 = vadd.f32 %v618, %v719
        %v721 = vpop.f32.mrb[0].mxu0
        %v722 = vpop.f32.mrb[0].mxu0
        %v723 = vadd.f32 %v618, %v722
        %v724 = vpop.f32.mrb[0].mxu0
        %725 = vmatprep.mubr.bf16.mxu0 0
        %726 = vmatmul.mubr.bf16.gmra.mrb[0].mxu0 %v655
        %v727 = vpop.f32.mrb[0].mxu0
        %v728 = vadd.f32 %v618, %v727
        %v729 = vpop.f32.mrb[0].mxu0
        %v730 = vpop.f32.mrb[0].mxu0
        %v731 = vadd.f32 %v618, %v730
        %v732 = vpop.f32.mrb[0].mxu0
        %733 = vmatprep.mubr.bf16.mxu0 0
        %734 = vmatmul.mubr.bf16.gmra.mrb[0].mxu0 %v658
        %v735 = vpop.f32.mrb[0].mxu0
        %v736 = vadd.f32 %v618, %v735
        %v737 = vpop.f32.mrb[0].mxu0
        %v738 = vpop.f32.mrb[0].mxu0
        %v739 = vadd.f32 %v618, %v738
        %v740 = vpop.f32.mrb[0].mxu0
        %741 = vmatprep.mubr.bf16.mxu0 0
        %742 = vmatmul.mubr.bf16.gmra.mrb[0].mxu0 %v661
        %v743 = vpop.f32.mrb[0].mxu0
        %v744 = vadd.f32 %v618, %v743
        %v745 = vpop.f32.mrb[0].mxu0
        %v746 = vpop.f32.mrb[0].mxu0
        %v747 = vadd.f32 %v618, %v746
        %v748 = vpop.f32.mrb[0].mxu0
        %749 = vmatprep.mubr.bf16.mxu0 0
        %750 = vmatmul.mubr.bf16.gmra.mrb[0].mxu0 %v664
        %v751 = vpop.f32.mrb[0].mxu0
        %v752 = vadd.f32 %v618, %v751
        %v753 = vpop.f32.mrb[0].mxu0
        %v754 = vpop.f32.mrb[0].mxu0
        %v755 = vadd.f32 %v618, %v754
        %v756 = vpop.f32.mrb[0].mxu0
        %757 = vmatprep.mubr.bf16.mxu0 0
        %758 = vmatmul.mubr.bf16.gmra.mrb[0].mxu0 %v667
        %v759 = vpop.f32.mrb[0].mxu0
        %v760 = vadd.f32 %v618, %v759
        %v761 = vpop.f32.mrb[0].mxu0
        %v762 = vpop.f32.mrb[0].mxu0
        %v763 = vadd.f32 %v618, %v762
        %v764 = vpop.f32.mrb[0].mxu0
        %765 = vdwg.mxu0
        %v766 = vmax.f32 %v704, 0.0
        %v767 = vmax.f32 %v707, 0.0
        %v768 = vmax.f32 %v712, 0.0
        %v769 = vmax.f32 %v715, 0.0
        %v770 = vmax.f32 %v720, 0.0
        %v771 = vmax.f32 %v723, 0.0
        %v772 = vmax.f32 %v728, 0.0
        %v773 = vmax.f32 %v731, 0.0
        %v774 = vmax.f32 %v736, 0.0
        %v775 = vmax.f32 %v739, 0.0
        %v776 = vmax.f32 %v744, 0.0
        %v777 = vmax.f32 %v747, 0.0
        %v778 = vmax.f32 %v752, 0.0
        %v779 = vmax.f32 %v755, 0.0
        %v780 = vmax.f32 %v760, 0.0
        %v781 = vmax.f32 %v763, 0.0
        %v782 = vpack.c.bf16 %v767, %v766
        %v783 = vpack.c.bf16 %v769, %v768
        %v784 = vpack.c.bf16 %v771, %v770
        %v785 = vpack.c.bf16 %v773, %v772
        %v786 = vpack.c.bf16 %v775, %v774
        %v787 = vpack.c.bf16 %v777, %v776
        %v788 = vpack.c.bf16 %v779, %v778
        %v789 = vpack.c.bf16 %v781, %v780
        %v790 = vld [vmem:[#allocation9] sm:$0xff]
        %v791 = vld [vmem:[#allocation9 + $0x8] sm:$0xff]
        %v792 = vld [vmem:[#allocation9 + $0x10] sm:$0xff]
        %v793 = vld [vmem:[#allocation9 + $0x18] sm:$0xff]
        %v794 = vld [vmem:[#allocation9 + $0x20] sm:$0xff]
        %v795 = vld [vmem:[#allocation9 + $0x28] sm:$0xff]
        %v796 = vld [vmem:[#allocation9 + $0x30] sm:$0xff]
        %v797 = vld [vmem:[#allocation9 + $0x38] sm:$0xff]
        %v798 = vld [vmem:[#allocation9 + $0x40] sm:$0xff]
        %v799 = vld [vmem:[#allocation9 + $0x48] sm:$0xff]
        %v800 = vld [vmem:[#allocation9 + $0x50] sm:$0xff]
        %v801 = vld [vmem:[#allocation9 + $0x58] sm:$0xff]
        %v802 = vld [vmem:[#allocation9 + $0x60] sm:$0xff]
        %v803 = vld [vmem:[#allocation9 + $0x68] sm:$0xff]
        %v804 = vld [vmem:[#allocation9 + $0x70] sm:$0xff]
        %v805 = vld [vmem:[#allocation9 + $0x78] sm:$0xff]
        %v806 = vld [vmem:[#allocation9 + $0x80] sm:$0xff]
        %v807 = vld [vmem:[#allocation9 + $0x88] sm:$0xff]
        %v808 = vld [vmem:[#allocation9 + $0x90] sm:$0xff]
        %v809 = vld [vmem:[#allocation9 + $0x98] sm:$0xff]
        %v810 = vld [vmem:[#allocation9 + $0xa0] sm:$0xff]
        %v811 = vld [vmem:[#allocation9 + $0xa8] sm:$0xff]
        %v812 = vld [vmem:[#allocation9 + $0xb0] sm:$0xff]
        %v813 = vld [vmem:[#allocation9 + $0xb8] sm:$0xff]
        %v814 = vld [vmem:[#allocation9 + $0xc0] sm:$0xff]
        %v815 = vld [vmem:[#allocation9 + $0xc8] sm:$0xff]
        %v816 = vld [vmem:[#allocation9 + $0xd0] sm:$0xff]
        %v817 = vld [vmem:[#allocation9 + $0xd8] sm:$0xff]
        %v818 = vld [vmem:[#allocation9 + $0xe0] sm:$0xff]
        %v819 = vld [vmem:[#allocation9 + $0xe8] sm:$0xff]
        %v820 = vld [vmem:[#allocation9 + $0xf0] sm:$0xff]
        %v821 = vld [vmem:[#allocation9 + $0xf8] sm:$0xff]
        %v822 = vld [vmem:[#allocation9 + $0x100] sm:$0xff]
        %v823 = vld [vmem:[#allocation9 + $0x108] sm:$0xff]
        %v824 = vld [vmem:[#allocation9 + $0x110] sm:$0xff]
        %v825 = vld [vmem:[#allocation9 + $0x118] sm:$0xff]
        %v826 = vld [vmem:[#allocation9 + $0x120] sm:$0xff]
        %v827 = vld [vmem:[#allocation9 + $0x128] sm:$0xff]
        %v828 = vld [vmem:[#allocation9 + $0x130] sm:$0xff]
        %v829 = vld [vmem:[#allocation9 + $0x138] sm:$0xff]
        %v830 = vld [vmem:[#allocation9 + $0x140] sm:$0xff]
        %v831 = vld [vmem:[#allocation9 + $0x148] sm:$0xff]
        %v832 = vld [vmem:[#allocation9 + $0x150] sm:$0xff]
        %v833 = vld [vmem:[#allocation9 + $0x158] sm:$0xff]
        %v834 = vld [vmem:[#allocation9 + $0x160] sm:$0xff]
        %v835 = vld [vmem:[#allocation9 + $0x168] sm:$0xff]
        %v836 = vld [vmem:[#allocation9 + $0x170] sm:$0xff]
        %v837 = vld [vmem:[#allocation9 + $0x178] sm:$0xff]
        %v838 = vld [vmem:[#allocation9 + $0x180] sm:$0xff]
        %v839 = vld [vmem:[#allocation9 + $0x188] sm:$0xff]
        %v840 = vld [vmem:[#allocation9 + $0x190] sm:$0xff]
        %v841 = vld [vmem:[#allocation9 + $0x198] sm:$0xff]
        %v842 = vld [vmem:[#allocation9 + $0x1a0] sm:$0xff]
        %v843 = vld [vmem:[#allocation9 + $0x1a8] sm:$0xff]
        %v844 = vld [vmem:[#allocation9 + $0x1b0] sm:$0xff]
        %v845 = vld [vmem:[#allocation9 + $0x1b8] sm:$0xff]
        %v846 = vld [vmem:[#allocation9 + $0x1c0] sm:$0xff]
        %v847 = vld [vmem:[#allocation9 + $0x1c8] sm:$0xff]
        %v848 = vld [vmem:[#allocation9 + $0x1d0] sm:$0xff]
        %v849 = vld [vmem:[#allocation9 + $0x1d8] sm:$0xff]
        %v850 = vld [vmem:[#allocation9 + $0x1e0] sm:$0xff]
        %v851 = vld [vmem:[#allocation9 + $0x1e8] sm:$0xff]
        %v852 = vld [vmem:[#allocation9 + $0x1f0] sm:$0xff]
        %v853 = vld [vmem:[#allocation9 + $0x1f8] sm:$0xff]
        %v854 = vld [vmem:[#allocation10] sm:$0xff]
        %v856 = vlaneseq
        %v857 = vshrl.u32 %v856, 7
        %v858 = vsub.s32 0, %v857
        %v859 = vrot.slane %v854, %v858
        %v860 = vlaneseq
        %v861 = vshrl.u32 %v860, 7
        %v862 = vsub.s32 1, %v861
        %v863 = vrot.slane %v854, %v862
        %v864 = vlaneseq
        %v865 = vshrl.u32 %v864, 7
        %v866 = vsub.s32 2, %v865
        %v867 = vrot.slane %v854, %v866
        %v868 = vlaneseq
        %v869 = vshrl.u32 %v868, 7
        %v870 = vsub.s32 3, %v869
        %v871 = vrot.slane %v854, %v870
        %v872 = vlaneseq
        %v873 = vshrl.u32 %v872, 7
        %v874 = vsub.s32 4, %v873
        %v875 = vrot.slane %v854, %v874
        %v876 = vlaneseq
        %v877 = vshrl.u32 %v876, 7
        %v878 = vsub.s32 5, %v877
        %v879 = vrot.slane %v854, %v878
        %v880 = vlaneseq
        %v881 = vshrl.u32 %v880, 7
        %v882 = vsub.s32 6, %v881
        %v883 = vrot.slane %v854, %v882
        %v884 = vlaneseq
        %v885 = vshrl.u32 %v884, 7
        %v886 = vsub.s32 7, %v885
        %v887 = vrot.slane %v854, %v886
        %v960 = vunpack.c.l.b16 %v790
        %v961 = vunpack.c.h.b16 %v790
        %v962 = vunpack.c.l.b16 %v791
        %v963 = vunpack.c.h.b16 %v791
        %v964 = vunpack.c.l.b16 %v792
        %v965 = vunpack.c.h.b16 %v792
        %v966 = vunpack.c.l.b16 %v793
        %v967 = vunpack.c.h.b16 %v793
        %v968 = vunpack.c.l.b16 %v794
        %v969 = vunpack.c.h.b16 %v794
        %v970 = vunpack.c.l.b16 %v795
        %v971 = vunpack.c.h.b16 %v795
        %v972 = vunpack.c.l.b16 %v796
        %v973 = vunpack.c.h.b16 %v796
        %v974 = vunpack.c.l.b16 %v797
        %v975 = vunpack.c.h.b16 %v797
        %v976 = vunpack.c.l.b16 %v798
        %v977 = vunpack.c.h.b16 %v798
        %v978 = vunpack.c.l.b16 %v799
        %v979 = vunpack.c.h.b16 %v799
        %v980 = vunpack.c.l.b16 %v800
        %v981 = vunpack.c.h.b16 %v800
        %v982 = vunpack.c.l.b16 %v801
        %v983 = vunpack.c.h.b16 %v801
        %v984 = vunpack.c.l.b16 %v802
        %v985 = vunpack.c.h.b16 %v802
        %v986 = vunpack.c.l.b16 %v803
        %v987 = vunpack.c.h.b16 %v803
        %v988 = vunpack.c.l.b16 %v804
        %v989 = vunpack.c.h.b16 %v804
        %v990 = vunpack.c.l.b16 %v805
        %v991 = vunpack.c.h.b16 %v805
        %v992 = vunpack.c.l.b16 %v806
        %v993 = vunpack.c.h.b16 %v806
        %v994 = vunpack.c.l.b16 %v807
        %v995 = vunpack.c.h.b16 %v807
        %v996 = vunpack.c.l.b16 %v808
        %v997 = vunpack.c.h.b16 %v808
        %v998 = vunpack.c.l.b16 %v809
        %v999 = vunpack.c.h.b16 %v809
        %v1000 = vunpack.c.l.b16 %v810
        %v1001 = vunpack.c.h.b16 %v810
        %v1002 = vunpack.c.l.b16 %v811
        %v1003 = vunpack.c.h.b16 %v811
        %v1004 = vunpack.c.l.b16 %v812
        %v1005 = vunpack.c.h.b16 %v812
        %v1006 = vunpack.c.l.b16 %v813
        %v1007 = vunpack.c.h.b16 %v813
        %v1008 = vunpack.c.l.b16 %v814
        %v1009 = vunpack.c.h.b16 %v814
        %v1010 = vunpack.c.l.b16 %v815
        %v1011 = vunpack.c.h.b16 %v815
        %v1012 = vunpack.c.l.b16 %v816
        %v1013 = vunpack.c.h.b16 %v816
        %v1014 = vunpack.c.l.b16 %v817
        %v1015 = vunpack.c.h.b16 %v817
        %v1016 = vunpack.c.l.b16 %v818
        %v1017 = vunpack.c.h.b16 %v818
        %v1018 = vunpack.c.l.b16 %v819
        %v1019 = vunpack.c.h.b16 %v819
        %v1020 = vunpack.c.l.b16 %v820
        %v1021 = vunpack.c.h.b16 %v820
        %v1022 = vunpack.c.l.b16 %v821
        %v1023 = vunpack.c.h.b16 %v821
        %v1024 = vunpack.c.l.b16 %v822
        %v1025 = vunpack.c.h.b16 %v822
        %v1026 = vunpack.c.l.b16 %v823
        %v1027 = vunpack.c.h.b16 %v823
        %v1028 = vunpack.c.l.b16 %v824
        %v1029 = vunpack.c.h.b16 %v824
        %v1030 = vunpack.c.l.b16 %v825
        %v1031 = vunpack.c.h.b16 %v825
        %v1032 = vunpack.c.l.b16 %v826
        %v1033 = vunpack.c.h.b16 %v826
        %v1034 = vunpack.c.l.b16 %v827
        %v1035 = vunpack.c.h.b16 %v827
        %v1036 = vunpack.c.l.b16 %v828
        %v1037 = vunpack.c.h.b16 %v828
        %v1038 = vunpack.c.l.b16 %v829
        %v1039 = vunpack.c.h.b16 %v829
        %v1040 = vunpack.c.l.b16 %v830
        %v1041 = vunpack.c.h.b16 %v830
        %v1042 = vunpack.c.l.b16 %v831
        %v1043 = vunpack.c.h.b16 %v831
        %v1044 = vunpack.c.l.b16 %v832
        %v1045 = vunpack.c.h.b16 %v832
        %v1046 = vunpack.c.l.b16 %v833
        %v1047 = vunpack.c.h.b16 %v833
        %v1048 = vunpack.c.l.b16 %v834
        %v1049 = vunpack.c.h.b16 %v834
        %v1050 = vunpack.c.l.b16 %v835
        %v1051 = vunpack.c.h.b16 %v835
        %v1052 = vunpack.c.l.b16 %v836
        %v1053 = vunpack.c.h.b16 %v836
        %v1054 = vunpack.c.l.b16 %v837
        %v1055 = vunpack.c.h.b16 %v837
        %v1056 = vunpack.c.l.b16 %v838
        %v1057 = vunpack.c.h.b16 %v838
        %v1058 = vunpack.c.l.b16 %v839
        %v1059 = vunpack.c.h.b16 %v839
        %v1060 = vunpack.c.l.b16 %v840
        %v1061 = vunpack.c.h.b16 %v840
        %v1062 = vunpack.c.l.b16 %v841
        %v1063 = vunpack.c.h.b16 %v841
        %v1064 = vunpack.c.l.b16 %v842
        %v1065 = vunpack.c.h.b16 %v842
        %v1066 = vunpack.c.l.b16 %v843
        %v1067 = vunpack.c.h.b16 %v843
        %v1068 = vunpack.c.l.b16 %v844
        %v1069 = vunpack.c.h.b16 %v844
        %v1070 = vunpack.c.l.b16 %v845
        %v1071 = vunpack.c.h.b16 %v845
        %v1072 = vunpack.c.l.b16 %v846
        %v1073 = vunpack.c.h.b16 %v846
        %v1074 = vunpack.c.l.b16 %v847
        %v1075 = vunpack.c.h.b16 %v847
        %v1076 = vunpack.c.l.b16 %v848
        %v1077 = vunpack.c.h.b16 %v848
        %v1078 = vunpack.c.l.b16 %v849
        %v1079 = vunpack.c.h.b16 %v849
        %v1080 = vunpack.c.l.b16 %v850
        %v1081 = vunpack.c.h.b16 %v850
        %v1082 = vunpack.c.l.b16 %v851
        %v1083 = vunpack.c.h.b16 %v851
        %v1084 = vunpack.c.l.b16 %v852
        %v1085 = vunpack.c.h.b16 %v852
        %v1086 = vunpack.c.l.b16 %v853
        %v1087 = vunpack.c.h.b16 %v853
        %v1088 = vpack.c.b16 %v968, %v960
        %v1089 = vpack.c.b16 %v969, %v961
        %v1090 = vpack.c.b16 %v970, %v962
        %v1091 = vpack.c.b16 %v971, %v963
        %v1092 = vpack.c.b16 %v972, %v964
        %v1093 = vpack.c.b16 %v973, %v965
        %v1094 = vpack.c.b16 %v974, %v966
        %v1095 = vpack.c.b16 %v975, %v967
        %v1096 = vpack.c.b16 %v984, %v976
        %v1097 = vpack.c.b16 %v985, %v977
        %v1098 = vpack.c.b16 %v986, %v978
        %v1099 = vpack.c.b16 %v987, %v979
        %v1100 = vpack.c.b16 %v988, %v980
        %v1101 = vpack.c.b16 %v989, %v981
        %v1102 = vpack.c.b16 %v990, %v982
        %v1103 = vpack.c.b16 %v991, %v983
        %v1104 = vpack.c.b16 %v1000, %v992
        %v1105 = vpack.c.b16 %v1001, %v993
        %v1106 = vpack.c.b16 %v1002, %v994
        %v1107 = vpack.c.b16 %v1003, %v995
        %v1108 = vpack.c.b16 %v1004, %v996
        %v1109 = vpack.c.b16 %v1005, %v997
        %v1110 = vpack.c.b16 %v1006, %v998
        %v1111 = vpack.c.b16 %v1007, %v999
        %v1112 = vpack.c.b16 %v1016, %v1008
        %v1113 = vpack.c.b16 %v1017, %v1009
        %v1114 = vpack.c.b16 %v1018, %v1010
        %v1115 = vpack.c.b16 %v1019, %v1011
        %v1116 = vpack.c.b16 %v1020, %v1012
        %v1117 = vpack.c.b16 %v1021, %v1013
        %v1118 = vpack.c.b16 %v1022, %v1014
        %v1119 = vpack.c.b16 %v1023, %v1015
        %v1120 = vpack.c.b16 %v1032, %v1024
        %v1121 = vpack.c.b16 %v1033, %v1025
        %v1122 = vpack.c.b16 %v1034, %v1026
        %v1123 = vpack.c.b16 %v1035, %v1027
        %v1124 = vpack.c.b16 %v1036, %v1028
        %v1125 = vpack.c.b16 %v1037, %v1029
        %v1126 = vpack.c.b16 %v1038, %v1030
        %v1127 = vpack.c.b16 %v1039, %v1031
        %v1128 = vpack.c.b16 %v1048, %v1040
        %v1129 = vpack.c.b16 %v1049, %v1041
        %v1130 = vpack.c.b16 %v1050, %v1042
        %v1131 = vpack.c.b16 %v1051, %v1043
        %v1132 = vpack.c.b16 %v1052, %v1044
        %v1133 = vpack.c.b16 %v1053, %v1045
        %v1134 = vpack.c.b16 %v1054, %v1046
        %v1135 = vpack.c.b16 %v1055, %v1047
        %v1136 = vpack.c.b16 %v1064, %v1056
        %v1137 = vpack.c.b16 %v1065, %v1057
        %v1138 = vpack.c.b16 %v1066, %v1058
        %v1139 = vpack.c.b16 %v1067, %v1059
        %v1140 = vpack.c.b16 %v1068, %v1060
        %v1141 = vpack.c.b16 %v1069, %v1061
        %v1142 = vpack.c.b16 %v1070, %v1062
        %v1143 = vpack.c.b16 %v1071, %v1063
        %v1144 = vpack.c.b16 %v1080, %v1072
        %v1145 = vpack.c.b16 %v1081, %v1073
        %v1146 = vpack.c.b16 %v1082, %v1074
        %v1147 = vpack.c.b16 %v1083, %v1075
        %v1148 = vpack.c.b16 %v1084, %v1076
        %v1149 = vpack.c.b16 %v1085, %v1077
        %v1150 = vpack.c.b16 %v1086, %v1078
        %v1151 = vpack.c.b16 %v1087, %v1079
        %1216 = vmatprep.subr.bf16.mxu0 %v1089
        %1217 = vmatpush1.bf16.msra.mxu0 %v1088
        %1218 = vmatprep.subr.bf16.mxu0 %v1097
        %1219 = vmatpush1.bf16.msra.mxu0 %v1096
        %1220 = vmatprep.subr.bf16.mxu0 %v1105
        %1221 = vmatpush1.bf16.msra.mxu0 %v1104
        %1222 = vmatprep.subr.bf16.mxu0 %v1113
        %1223 = vmatpush1.bf16.msra.mxu0 %v1112
        %1224 = vmatprep.subr.bf16.mxu0 %v1121
        %1225 = vmatpush1.bf16.msra.mxu0 %v1120
        %1226 = vmatprep.subr.bf16.mxu0 %v1129
        %1227 = vmatpush1.bf16.msra.mxu0 %v1128
        %1228 = vmatprep.subr.bf16.mxu0 %v1137
        %1229 = vmatpush1.bf16.msra.mxu0 %v1136
        %1230 = vmatprep.subr.bf16.mxu0 %v1145
        %1231 = vmatpush1.bf16.msra.mxu0 %v1144
        %1232 = vmatprep.subr.bf16.mxu0 0
        %1233 = vmatpush1.bf16.msra.mxu0 0
        %1234 = vmatprep.subr.bf16.mxu0 0
        %1235 = vmatpush1.bf16.msra.mxu0 0
        %1236 = vmatprep.subr.bf16.mxu0 0
        %1237 = vmatpush1.bf16.msra.mxu0 0
        %1238 = vmatprep.subr.bf16.mxu0 0
        %1239 = vmatpush1.bf16.msra.mxu0 0
        %1240 = vmatprep.subr.bf16.mxu0 0
        %1241 = vmatpush1.bf16.msra.mxu0 0
        %1242 = vmatprep.subr.bf16.mxu0 0
        %1243 = vmatpush1.bf16.msra.mxu0 0
        %1244 = vmatprep.subr.bf16.mxu0 0
        %1245 = vmatpush1.bf16.msra.mxu0 0
        %1246 = vmatprep.subr.bf16.mxu0 0
        %1247 = vmatpush1.bf16.msra.mxu0 0
        %1248 = vmatprep.mubr.bf16.mxu0 0
        %1249 = vmatmul.mubr.bf16.gmra.mrb[0].mxu0 %v782
        %v1250 = vpop.f32.mrb[0].mxu0
        %v1251 = vadd.f32 %v859, %v1250
        %v1252 = vpop.f32.mrb[0].mxu0
        %v1253 = vadd.f32 %v863, %v1252
        %v1254 = vpop.f32.mrb[0].mxu0
        %v1255 = vadd.f32 %v859, %v1254
        %v1256 = vpop.f32.mrb[0].mxu0
        %v1257 = vadd.f32 %v863, %v1256
        %1258 = vmatprep.mubr.bf16.mxu0 0
        %1259 = vmatmul.mubr.bf16.gmra.mrb[0].mxu0 %v783
        %v1260 = vpop.f32.mrb[0].mxu0
        %v1261 = vadd.f32 %v859, %v1260
        %v1262 = vpop.f32.mrb[0].mxu0
        %v1263 = vadd.f32 %v863, %v1262
        %v1264 = vpop.f32.mrb[0].mxu0
        %v1265 = vadd.f32 %v859, %v1264
        %v1266 = vpop.f32.mrb[0].mxu0
        %v1267 = vadd.f32 %v863, %v1266
        %1268 = vmatprep.mubr.bf16.mxu0 0
        %1269 = vmatmul.mubr.bf16.gmra.mrb[0].mxu0 %v784
        %v1270 = vpop.f32.mrb[0].mxu0
        %v1271 = vadd.f32 %v859, %v1270
        %v1272 = vpop.f32.mrb[0].mxu0
        %v1273 = vadd.f32 %v863, %v1272
        %v1274 = vpop.f32.mrb[0].mxu0
        %v1275 = vadd.f32 %v859, %v1274
        %v1276 = vpop.f32.mrb[0].mxu0
        %v1277 = vadd.f32 %v863, %v1276
        %1278 = vmatprep.mubr.bf16.mxu0 0
        %1279 = vmatmul.mubr.bf16.gmra.mrb[0].mxu0 %v785
        %v1280 = vpop.f32.mrb[0].mxu0
        %v1281 = vadd.f32 %v859, %v1280
        %v1282 = vpop.f32.mrb[0].mxu0
        %v1283 = vadd.f32 %v863, %v1282
        %v1284 = vpop.f32.mrb[0].mxu0
        %v1285 = vadd.f32 %v859, %v1284
        %v1286 = vpop.f32.mrb[0].mxu0
        %v1287 = vadd.f32 %v863, %v1286
        %1288 = vmatprep.mubr.bf16.mxu0 0
        %1289 = vmatmul.mubr.bf16.gmra.mrb[0].mxu0 %v786
        %v1290 = vpop.f32.mrb[0].mxu0
        %v1291 = vadd.f32 %v859, %v1290
        %v1292 = vpop.f32.mrb[0].mxu0
        %v1293 = vadd.f32 %v863, %v1292
        %v1294 = vpop.f32.mrb[0].mxu0
        %v1295 = vadd.f32 %v859, %v1294
        %v1296 = vpop.f32.mrb[0].mxu0
        %v1297 = vadd.f32 %v863, %v1296
        %1298 = vmatprep.mubr.bf16.mxu0 0
        %1299 = vmatmul.mubr.bf16.gmra.mrb[0].mxu0 %v787
        %v1300 = vpop.f32.mrb[0].mxu0
        %v1301 = vadd.f32 %v859, %v1300
        %v1302 = vpop.f32.mrb[0].mxu0
        %v1303 = vadd.f32 %v863, %v1302
        %v1304 = vpop.f32.mrb[0].mxu0
        %v1305 = vadd.f32 %v859, %v1304
        %v1306 = vpop.f32.mrb[0].mxu0
        %v1307 = vadd.f32 %v863, %v1306
        %1308 = vmatprep.mubr.bf16.mxu0 0
        %1309 = vmatmul.mubr.bf16.gmra.mrb[0].mxu0 %v788
        %v1310 = vpop.f32.mrb[0].mxu0
        %v1311 = vadd.f32 %v859, %v1310
        %v1312 = vpop.f32.mrb[0].mxu0
        %v1313 = vadd.f32 %v863, %v1312
        %v1314 = vpop.f32.mrb[0].mxu0
        %v1315 = vadd.f32 %v859, %v1314
        %v1316 = vpop.f32.mrb[0].mxu0
        %v1317 = vadd.f32 %v863, %v1316
        %1318 = vmatprep.mubr.bf16.mxu0 0
        %1319 = vmatmul.mubr.bf16.gmra.mrb[0].mxu0 %v789
        %v1320 = vpop.f32.mrb[0].mxu0
        %v1321 = vadd.f32 %v859, %v1320
        %v1322 = vpop.f32.mrb[0].mxu0
        %v1323 = vadd.f32 %v863, %v1322
        %v1324 = vpop.f32.mrb[0].mxu0
        %v1325 = vadd.f32 %v859, %v1324
        %v1326 = vpop.f32.mrb[0].mxu0
        %v1327 = vadd.f32 %v863, %v1326
        %1328 = vdwg.mxu0
        %1329 = vmatprep.subr.bf16.mxu0 %v1091
        %1330 = vmatpush1.bf16.msra.mxu0 %v1090
        %1331 = vmatprep.subr.bf16.mxu0 %v1099
        %1332 = vmatpush1.bf16.msra.mxu0 %v1098
        %1333 = vmatprep.subr.bf16.mxu0 %v1107
        %1334 = vmatpush1.bf16.msra.mxu0 %v1106
        %1335 = vmatprep.subr.bf16.mxu0 %v1115
        %1336 = vmatpush1.bf16.msra.mxu0 %v1114
        %1337 = vmatprep.subr.bf16.mxu0 %v1123
        %1338 = vmatpush1.bf16.msra.mxu0 %v1122
        %1339 = vmatprep.subr.bf16.mxu0 %v1131
        %1340 = vmatpush1.bf16.msra.mxu0 %v1130
        %1341 = vmatprep.subr.bf16.mxu0 %v1139
        %1342 = vmatpush1.bf16.msra.mxu0 %v1138
        %1343 = vmatprep.subr.bf16.mxu0 %v1147
        %1344 = vmatpush1.bf16.msra.mxu0 %v1146
        %1345 = vmatprep.subr.bf16.mxu0 0
        %1346 = vmatpush1.bf16.msra.mxu0 0
        %1347 = vmatprep.subr.bf16.mxu0 0
        %1348 = vmatpush1.bf16.msra.mxu0 0
        %1349 = vmatprep.subr.bf16.mxu0 0
        %1350 = vmatpush1.bf16.msra.mxu0 0
        %1351 = vmatprep.subr.bf16.mxu0 0
        %1352 = vmatpush1.bf16.msra.mxu0 0
        %1353 = vmatprep.subr.bf16.mxu0 0
        %1354 = vmatpush1.bf16.msra.mxu0 0
        %1355 = vmatprep.subr.bf16.mxu0 0
        %1356 = vmatpush1.bf16.msra.mxu0 0
        %1357 = vmatprep.subr.bf16.mxu0 0
        %1358 = vmatpush1.bf16.msra.mxu0 0
        %1359 = vmatprep.subr.bf16.mxu0 0
        %1360 = vmatpush1.bf16.msra.mxu0 0
        %1361 = vmatprep.mubr.bf16.mxu0 0
        %1362 = vmatmul.mubr.bf16.gmra.mrb[0].mxu0 %v782
        %v1363 = vpop.f32.mrb[0].mxu0
        %v1364 = vadd.f32 %v867, %v1363
        %v1365 = vpop.f32.mrb[0].mxu0
        %v1366 = vadd.f32 %v871, %v1365
        %v1367 = vpop.f32.mrb[0].mxu0
        %v1368 = vadd.f32 %v867, %v1367
        %v1369 = vpop.f32.mrb[0].mxu0
        %v1370 = vadd.f32 %v871, %v1369
        %1371 = vmatprep.mubr.bf16.mxu0 0
        %1372 = vmatmul.mubr.bf16.gmra.mrb[0].mxu0 %v783
        %v1373 = vpop.f32.mrb[0].mxu0
        %v1374 = vadd.f32 %v867, %v1373
        %v1375 = vpop.f32.mrb[0].mxu0
        %v1376 = vadd.f32 %v871, %v1375
        %v1377 = vpop.f32.mrb[0].mxu0
        %v1378 = vadd.f32 %v867, %v1377
        %v1379 = vpop.f32.mrb[0].mxu0
        %v1380 = vadd.f32 %v871, %v1379
        %1381 = vmatprep.mubr.bf16.mxu0 0
        %1382 = vmatmul.mubr.bf16.gmra.mrb[0].mxu0 %v784
        %v1383 = vpop.f32.mrb[0].mxu0
        %v1384 = vadd.f32 %v867, %v1383
        %v1385 = vpop.f32.mrb[0].mxu0
        %v1386 = vadd.f32 %v871, %v1385
        %v1387 = vpop.f32.mrb[0].mxu0
        %v1388 = vadd.f32 %v867, %v1387
        %v1389 = vpop.f32.mrb[0].mxu0
        %v1390 = vadd.f32 %v871, %v1389
        %1391 = vmatprep.mubr.bf16.mxu0 0
        %1392 = vmatmul.mubr.bf16.gmra.mrb[0].mxu0 %v785
        %v1393 = vpop.f32.mrb[0].mxu0
        %v1394 = vadd.f32 %v867, %v1393
        %v1395 = vpop.f32.mrb[0].mxu0
        %v1396 = vadd.f32 %v871, %v1395
        %v1397 = vpop.f32.mrb[0].mxu0
        %v1398 = vadd.f32 %v867, %v1397
        %v1399 = vpop.f32.mrb[0].mxu0
        %v1400 = vadd.f32 %v871, %v1399
        %1401 = vmatprep.mubr.bf16.mxu0 0
        %1402 = vmatmul.mubr.bf16.gmra.mrb[0].mxu0 %v786
        %v1403 = vpop.f32.mrb[0].mxu0
        %v1404 = vadd.f32 %v867, %v1403
        %v1405 = vpop.f32.mrb[0].mxu0
        %v1406 = vadd.f32 %v871, %v1405
        %v1407 = vpop.f32.mrb[0].mxu0
        %v1408 = vadd.f32 %v867, %v1407
        %v1409 = vpop.f32.mrb[0].mxu0
        %v1410 = vadd.f32 %v871, %v1409
        %1411 = vmatprep.mubr.bf16.mxu0 0
        %1412 = vmatmul.mubr.bf16.gmra.mrb[0].mxu0 %v787
        %v1413 = vpop.f32.mrb[0].mxu0
        %v1414 = vadd.f32 %v867, %v1413
        %v1415 = vpop.f32.mrb[0].mxu0
        %v1416 = vadd.f32 %v871, %v1415
        %v1417 = vpop.f32.mrb[0].mxu0
        %v1418 = vadd.f32 %v867, %v1417
        %v1419 = vpop.f32.mrb[0].mxu0
        %v1420 = vadd.f32 %v871, %v1419
        %1421 = vmatprep.mubr.bf16.mxu0 0
        %1422 = vmatmul.mubr.bf16.gmra.mrb[0].mxu0 %v788
        %v1423 = vpop.f32.mrb[0].mxu0
        %v1424 = vadd.f32 %v867, %v1423
        %v1425 = vpop.f32.mrb[0].mxu0
        %v1426 = vadd.f32 %v871, %v1425
        %v1427 = vpop.f32.mrb[0].mxu0
        %v1428 = vadd.f32 %v867, %v1427
        %v1429 = vpop.f32.mrb[0].mxu0
        %v1430 = vadd.f32 %v871, %v1429
        %1431 = vmatprep.mubr.bf16.mxu0 0
        %1432 = vmatmul.mubr.bf16.gmra.mrb[0].mxu0 %v789
        %v1433 = vpop.f32.mrb[0].mxu0
        %v1434 = vadd.f32 %v867, %v1433
        %v1435 = vpop.f32.mrb[0].mxu0
        %v1436 = vadd.f32 %v871, %v1435
        %v1437 = vpop.f32.mrb[0].mxu0
        %v1438 = vadd.f32 %v867, %v1437
        %v1439 = vpop.f32.mrb[0].mxu0
        %v1440 = vadd.f32 %v871, %v1439
        %1441 = vdwg.mxu0
        %1442 = vmatprep.subr.bf16.mxu0 %v1093
        %1443 = vmatpush1.bf16.msra.mxu0 %v1092
        %1444 = vmatprep.subr.bf16.mxu0 %v1101
        %1445 = vmatpush1.bf16.msra.mxu0 %v1100
        %1446 = vmatprep.subr.bf16.mxu0 %v1109
        %1447 = vmatpush1.bf16.msra.mxu0 %v1108
        %1448 = vmatprep.subr.bf16.mxu0 %v1117
        %1449 = vmatpush1.bf16.msra.mxu0 %v1116
        %1450 = vmatprep.subr.bf16.mxu0 %v1125
        %1451 = vmatpush1.bf16.msra.mxu0 %v1124
        %1452 = vmatprep.subr.bf16.mxu0 %v1133
        %1453 = vmatpush1.bf16.msra.mxu0 %v1132
        %1454 = vmatprep.subr.bf16.mxu0 %v1141
        %1455 = vmatpush1.bf16.msra.mxu0 %v1140
        %1456 = vmatprep.subr.bf16.mxu0 %v1149
        %1457 = vmatpush1.bf16.msra.mxu0 %v1148
        %1458 = vmatprep.subr.bf16.mxu0 0
        %1459 = vmatpush1.bf16.msra.mxu0 0
        %1460 = vmatprep.subr.bf16.mxu0 0
        %1461 = vmatpush1.bf16.msra.mxu0 0
        %1462 = vmatprep.subr.bf16.mxu0 0
        %1463 = vmatpush1.bf16.msra.mxu0 0
        %1464 = vmatprep.subr.bf16.mxu0 0
        %1465 = vmatpush1.bf16.msra.mxu0 0
        %1466 = vmatprep.subr.bf16.mxu0 0
        %1467 = vmatpush1.bf16.msra.mxu0 0
        %1468 = vmatprep.subr.bf16.mxu0 0
        %1469 = vmatpush1.bf16.msra.mxu0 0
        %1470 = vmatprep.subr.bf16.mxu0 0
        %1471 = vmatpush1.bf16.msra.mxu0 0
        %1472 = vmatprep.subr.bf16.mxu0 0
        %1473 = vmatpush1.bf16.msra.mxu0 0
        %1474 = vmatprep.mubr.bf16.mxu0 0
        %1475 = vmatmul.mubr.bf16.gmra.mrb[0].mxu0 %v782
        %v1476 = vpop.f32.mrb[0].mxu0
        %v1477 = vadd.f32 %v875, %v1476
        %v1478 = vpop.f32.mrb[0].mxu0
        %v1479 = vadd.f32 %v879, %v1478
        %v1480 = vpop.f32.mrb[0].mxu0
        %v1481 = vadd.f32 %v875, %v1480
        %v1482 = vpop.f32.mrb[0].mxu0
        %v1483 = vadd.f32 %v879, %v1482
        %1484 = vmatprep.mubr.bf16.mxu0 0
        %1485 = vmatmul.mubr.bf16.gmra.mrb[0].mxu0 %v783
        %v1486 = vpop.f32.mrb[0].mxu0
        %v1487 = vadd.f32 %v875, %v1486
        %v1488 = vpop.f32.mrb[0].mxu0
        %v1489 = vadd.f32 %v879, %v1488
        %v1490 = vpop.f32.mrb[0].mxu0
        %v1491 = vadd.f32 %v875, %v1490
        %v1492 = vpop.f32.mrb[0].mxu0
        %v1493 = vadd.f32 %v879, %v1492
        %1494 = vmatprep.mubr.bf16.mxu0 0
        %1495 = vmatmul.mubr.bf16.gmra.mrb[0].mxu0 %v784
        %v1496 = vpop.f32.mrb[0].mxu0
        %v1497 = vadd.f32 %v875, %v1496
        %v1498 = vpop.f32.mrb[0].mxu0
        %v1499 = vadd.f32 %v879, %v1498
        %v1500 = vpop.f32.mrb[0].mxu0
        %v1501 = vadd.f32 %v875, %v1500
        %v1502 = vpop.f32.mrb[0].mxu0
        %v1503 = vadd.f32 %v879, %v1502
        %1504 = vmatprep.mubr.bf16.mxu0 0
        %1505 = vmatmul.mubr.bf16.gmra.mrb[0].mxu0 %v785
        %v1506 = vpop.f32.mrb[0].mxu0
        %v1507 = vadd.f32 %v875, %v1506
        %v1508 = vpop.f32.mrb[0].mxu0
        %v1509 = vadd.f32 %v879, %v1508
        %v1510 = vpop.f32.mrb[0].mxu0
        %v1511 = vadd.f32 %v875, %v1510
        %v1512 = vpop.f32.mrb[0].mxu0
        %v1513 = vadd.f32 %v879, %v1512
        %1514 = vmatprep.mubr.bf16.mxu0 0
        %1515 = vmatmul.mubr.bf16.gmra.mrb[0].mxu0 %v786
        %v1516 = vpop.f32.mrb[0].mxu0
        %v1517 = vadd.f32 %v875, %v1516
        %v1518 = vpop.f32.mrb[0].mxu0
        %v1519 = vadd.f32 %v879, %v1518
        %v1520 = vpop.f32.mrb[0].mxu0
        %v1521 = vadd.f32 %v875, %v1520
        %v1522 = vpop.f32.mrb[0].mxu0
        %v1523 = vadd.f32 %v879, %v1522
        %1524 = vmatprep.mubr.bf16.mxu0 0
        %1525 = vmatmul.mubr.bf16.gmra.mrb[0].mxu0 %v787
        %v1526 = vpop.f32.mrb[0].mxu0
        %v1527 = vadd.f32 %v875, %v1526
        %v1528 = vpop.f32.mrb[0].mxu0
        %v1529 = vadd.f32 %v879, %v1528
        %v1530 = vpop.f32.mrb[0].mxu0
        %v1531 = vadd.f32 %v875, %v1530
        %v1532 = vpop.f32.mrb[0].mxu0
        %v1533 = vadd.f32 %v879, %v1532
        %1534 = vmatprep.mubr.bf16.mxu0 0
        %1535 = vmatmul.mubr.bf16.gmra.mrb[0].mxu0 %v788
        %v1536 = vpop.f32.mrb[0].mxu0
        %v1537 = vadd.f32 %v875, %v1536
        %v1538 = vpop.f32.mrb[0].mxu0
        %v1539 = vadd.f32 %v879, %v1538
        %v1540 = vpop.f32.mrb[0].mxu0
        %v1541 = vadd.f32 %v875, %v1540
        %v1542 = vpop.f32.mrb[0].mxu0
        %v1543 = vadd.f32 %v879, %v1542
        %1544 = vmatprep.mubr.bf16.mxu0 0
        %1545 = vmatmul.mubr.bf16.gmra.mrb[0].mxu0 %v789
        %v1546 = vpop.f32.mrb[0].mxu0
        %v1547 = vadd.f32 %v875, %v1546
        %v1548 = vpop.f32.mrb[0].mxu0
        %v1549 = vadd.f32 %v879, %v1548
        %v1550 = vpop.f32.mrb[0].mxu0
        %v1551 = vadd.f32 %v875, %v1550
        %v1552 = vpop.f32.mrb[0].mxu0
        %v1553 = vadd.f32 %v879, %v1552
        %1554 = vdwg.mxu0
        %1555 = vmatprep.subr.bf16.mxu0 %v1095
        %1556 = vmatpush1.bf16.msra.mxu0 %v1094
        %1557 = vmatprep.subr.bf16.mxu0 %v1103
        %1558 = vmatpush1.bf16.msra.mxu0 %v1102
        %1559 = vmatprep.subr.bf16.mxu0 %v1111
        %1560 = vmatpush1.bf16.msra.mxu0 %v1110
        %1561 = vmatprep.subr.bf16.mxu0 %v1119
        %1562 = vmatpush1.bf16.msra.mxu0 %v1118
        %1563 = vmatprep.subr.bf16.mxu0 %v1127
        %1564 = vmatpush1.bf16.msra.mxu0 %v1126
        %1565 = vmatprep.subr.bf16.mxu0 %v1135
        %1566 = vmatpush1.bf16.msra.mxu0 %v1134
        %1567 = vmatprep.subr.bf16.mxu0 %v1143
        %1568 = vmatpush1.bf16.msra.mxu0 %v1142
        %1569 = vmatprep.subr.bf16.mxu0 %v1151
        %1570 = vmatpush1.bf16.msra.mxu0 %v1150
        %1571 = vmatprep.subr.bf16.mxu0 0
        %1572 = vmatpush1.bf16.msra.mxu0 0
        %1573 = vmatprep.subr.bf16.mxu0 0
        %1574 = vmatpush1.bf16.msra.mxu0 0
        %1575 = vmatprep.subr.bf16.mxu0 0
        %1576 = vmatpush1.bf16.msra.mxu0 0
        %1577 = vmatprep.subr.bf16.mxu0 0
        %1578 = vmatpush1.bf16.msra.mxu0 0
        %1579 = vmatprep.subr.bf16.mxu0 0
        %1580 = vmatpush1.bf16.msra.mxu0 0
        %1581 = vmatprep.subr.bf16.mxu0 0
        %1582 = vmatpush1.bf16.msra.mxu0 0
        %1583 = vmatprep.subr.bf16.mxu0 0
        %1584 = vmatpush1.bf16.msra.mxu0 0
        %1585 = vmatprep.subr.bf16.mxu0 0
        %1586 = vmatpush1.bf16.msra.mxu0 0
        %1587 = vmatprep.mubr.bf16.mxu0 0
        %1588 = vmatmul.mubr.bf16.gmra.mrb[0].mxu0 %v782
        %v1589 = vpop.f32.mrb[0].mxu0
        %v1590 = vadd.f32 %v883, %v1589
        %v1591 = vpop.f32.mrb[0].mxu0
        %v1592 = vadd.f32 %v887, %v1591
        %v1593 = vpop.f32.mrb[0].mxu0
        %v1594 = vadd.f32 %v883, %v1593
        %v1595 = vpop.f32.mrb[0].mxu0
        %v1596 = vadd.f32 %v887, %v1595
        %1597 = vmatprep.mubr.bf16.mxu0 0
        %1598 = vmatmul.mubr.bf16.gmra.mrb[0].mxu0 %v783
        %v1599 = vpop.f32.mrb[0].mxu0
        %v1600 = vadd.f32 %v883, %v1599
        %v1601 = vpop.f32.mrb[0].mxu0
        %v1602 = vadd.f32 %v887, %v1601
        %v1603 = vpop.f32.mrb[0].mxu0
        %v1604 = vadd.f32 %v883, %v1603
        %v1605 = vpop.f32.mrb[0].mxu0
        %v1606 = vadd.f32 %v887, %v1605
        %1607 = vmatprep.mubr.bf16.mxu0 0
        %1608 = vmatmul.mubr.bf16.gmra.mrb[0].mxu0 %v784
        %v1609 = vpop.f32.mrb[0].mxu0
        %v1610 = vadd.f32 %v883, %v1609
        %v1611 = vpop.f32.mrb[0].mxu0
        %v1612 = vadd.f32 %v887, %v1611
        %v1613 = vpop.f32.mrb[0].mxu0
        %v1614 = vadd.f32 %v883, %v1613
        %v1615 = vpop.f32.mrb[0].mxu0
        %v1616 = vadd.f32 %v887, %v1615
        %1617 = vmatprep.mubr.bf16.mxu0 0
        %1618 = vmatmul.mubr.bf16.gmra.mrb[0].mxu0 %v785
        %v1619 = vpop.f32.mrb[0].mxu0
        %v1620 = vadd.f32 %v883, %v1619
        %v1621 = vpop.f32.mrb[0].mxu0
        %v1622 = vadd.f32 %v887, %v1621
        %v1623 = vpop.f32.mrb[0].mxu0
        %v1624 = vadd.f32 %v883, %v1623
        %v1625 = vpop.f32.mrb[0].mxu0
        %v1626 = vadd.f32 %v887, %v1625
        %1627 = vmatprep.mubr.bf16.mxu0 0
        %1628 = vmatmul.mubr.bf16.gmra.mrb[0].mxu0 %v786
        %v1629 = vpop.f32.mrb[0].mxu0
        %v1630 = vadd.f32 %v883, %v1629
        %v1631 = vpop.f32.mrb[0].mxu0
        %v1632 = vadd.f32 %v887, %v1631
        %v1633 = vpop.f32.mrb[0].mxu0
        %v1634 = vadd.f32 %v883, %v1633
        %v1635 = vpop.f32.mrb[0].mxu0
        %v1636 = vadd.f32 %v887, %v1635
        %1637 = vmatprep.mubr.bf16.mxu0 0
        %1638 = vmatmul.mubr.bf16.gmra.mrb[0].mxu0 %v787
        %v1639 = vpop.f32.mrb[0].mxu0
        %v1640 = vadd.f32 %v883, %v1639
        %v1641 = vpop.f32.mrb[0].mxu0
        %v1642 = vadd.f32 %v887, %v1641
        %v1643 = vpop.f32.mrb[0].mxu0
        %v1644 = vadd.f32 %v883, %v1643
        %v1645 = vpop.f32.mrb[0].mxu0
        %v1646 = vadd.f32 %v887, %v1645
        %1647 = vmatprep.mubr.bf16.mxu0 0
        %1648 = vmatmul.mubr.bf16.gmra.mrb[0].mxu0 %v788
        %v1649 = vpop.f32.mrb[0].mxu0
        %v1650 = vadd.f32 %v883, %v1649
        %v1651 = vpop.f32.mrb[0].mxu0
        %v1652 = vadd.f32 %v887, %v1651
        %v1653 = vpop.f32.mrb[0].mxu0
        %v1654 = vadd.f32 %v883, %v1653
        %v1655 = vpop.f32.mrb[0].mxu0
        %v1656 = vadd.f32 %v887, %v1655
        %1657 = vmatprep.mubr.bf16.mxu0 0
        %1658 = vmatmul.mubr.bf16.gmra.mrb[0].mxu0 %v789
        %v1659 = vpop.f32.mrb[0].mxu0
        %v1660 = vadd.f32 %v883, %v1659
        %v1661 = vpop.f32.mrb[0].mxu0
        %v1662 = vadd.f32 %v887, %v1661
        %v1663 = vpop.f32.mrb[0].mxu0
        %v1664 = vadd.f32 %v883, %v1663
        %v1665 = vpop.f32.mrb[0].mxu0
        %v1666 = vadd.f32 %v887, %v1665
        %1667 = vdwg.mxu0
        %v1668 = vmax.f32 %v1251, 0.0
        %v1669 = vmax.f32 %v1253, 0.0
        %v1670 = vmax.f32 %v1364, 0.0
        %v1671 = vmax.f32 %v1366, 0.0
        %v1672 = vmax.f32 %v1477, 0.0
        %v1673 = vmax.f32 %v1479, 0.0
        %v1674 = vmax.f32 %v1590, 0.0
        %v1675 = vmax.f32 %v1592, 0.0
        %v1676 = vmax.f32 %v1255, 0.0
        %v1677 = vmax.f32 %v1257, 0.0
        %v1678 = vmax.f32 %v1368, 0.0
        %v1679 = vmax.f32 %v1370, 0.0
        %v1680 = vmax.f32 %v1481, 0.0
        %v1681 = vmax.f32 %v1483, 0.0
        %v1682 = vmax.f32 %v1594, 0.0
        %v1683 = vmax.f32 %v1596, 0.0
        %v1684 = vmax.f32 %v1261, 0.0
        %v1685 = vmax.f32 %v1263, 0.0
        %v1686 = vmax.f32 %v1374, 0.0
        %v1687 = vmax.f32 %v1376, 0.0
        %v1688 = vmax.f32 %v1487, 0.0
        %v1689 = vmax.f32 %v1489, 0.0
        %v1690 = vmax.f32 %v1600, 0.0
        %v1691 = vmax.f32 %v1602, 0.0
        %v1692 = vmax.f32 %v1265, 0.0
        %v1693 = vmax.f32 %v1267, 0.0
        %v1694 = vmax.f32 %v1378, 0.0
        %v1695 = vmax.f32 %v1380, 0.0
        %v1696 = vmax.f32 %v1491, 0.0
        %v1697 = vmax.f32 %v1493, 0.0
        %v1698 = vmax.f32 %v1604, 0.0
        %v1699 = vmax.f32 %v1606, 0.0
        %v1700 = vmax.f32 %v1271, 0.0
        %v1701 = vmax.f32 %v1273, 0.0
        %v1702 = vmax.f32 %v1384, 0.0
        %v1703 = vmax.f32 %v1386, 0.0
        %v1704 = vmax.f32 %v1497, 0.0
        %v1705 = vmax.f32 %v1499, 0.0
        %v1706 = vmax.f32 %v1610, 0.0
        %v1707 = vmax.f32 %v1612, 0.0
        %v1708 = vmax.f32 %v1275, 0.0
        %v1709 = vmax.f32 %v1277, 0.0
        %v1710 = vmax.f32 %v1388, 0.0
        %v1711 = vmax.f32 %v1390, 0.0
        %v1712 = vmax.f32 %v1501, 0.0
        %v1713 = vmax.f32 %v1503, 0.0
        %v1714 = vmax.f32 %v1614, 0.0
        %v1715 = vmax.f32 %v1616, 0.0
        %v1716 = vmax.f32 %v1281, 0.0
        %v1717 = vmax.f32 %v1283, 0.0
        %v1718 = vmax.f32 %v1394, 0.0
        %v1719 = vmax.f32 %v1396, 0.0
        %v1720 = vmax.f32 %v1507, 0.0
        %v1721 = vmax.f32 %v1509, 0.0
        %v1722 = vmax.f32 %v1620, 0.0
        %v1723 = vmax.f32 %v1622, 0.0
        %v1724 = vmax.f32 %v1285, 0.0
        %v1725 = vmax.f32 %v1287, 0.0
        %v1726 = vmax.f32 %v1398, 0.0
        %v1727 = vmax.f32 %v1400, 0.0
        %v1728 = vmax.f32 %v1511, 0.0
        %v1729 = vmax.f32 %v1513, 0.0
        %v1730 = vmax.f32 %v1624, 0.0
        %v1731 = vmax.f32 %v1626, 0.0
        %v1732 = vmax.f32 %v1291, 0.0
        %v1733 = vmax.f32 %v1293, 0.0
        %v1734 = vmax.f32 %v1404, 0.0
        %v1735 = vmax.f32 %v1406, 0.0
        %v1736 = vmax.f32 %v1517, 0.0
        %v1737 = vmax.f32 %v1519, 0.0
        %v1738 = vmax.f32 %v1630, 0.0
        %v1739 = vmax.f32 %v1632, 0.0
        %v1740 = vmax.f32 %v1295, 0.0
        %v1741 = vmax.f32 %v1297, 0.0
        %v1742 = vmax.f32 %v1408, 0.0
        %v1743 = vmax.f32 %v1410, 0.0
        %v1744 = vmax.f32 %v1521, 0.0
        %v1745 = vmax.f32 %v1523, 0.0
        %v1746 = vmax.f32 %v1634, 0.0
        %v1747 = vmax.f32 %v1636, 0.0
        %v1748 = vmax.f32 %v1301, 0.0
        %v1749 = vmax.f32 %v1303, 0.0
        %v1750 = vmax.f32 %v1414, 0.0
        %v1751 = vmax.f32 %v1416, 0.0
        %v1752 = vmax.f32 %v1527, 0.0
        %v1753 = vmax.f32 %v1529, 0.0
        %v1754 = vmax.f32 %v1640, 0.0
        %v1755 = vmax.f32 %v1642, 0.0
        %v1756 = vmax.f32 %v1305, 0.0
        %v1757 = vmax.f32 %v1307, 0.0
        %v1758 = vmax.f32 %v1418, 0.0
        %v1759 = vmax.f32 %v1420, 0.0
        %v1760 = vmax.f32 %v1531, 0.0
        %v1761 = vmax.f32 %v1533, 0.0
        %v1762 = vmax.f32 %v1644, 0.0
        %v1763 = vmax.f32 %v1646, 0.0
        %v1764 = vmax.f32 %v1311, 0.0
        %v1765 = vmax.f32 %v1313, 0.0
        %v1766 = vmax.f32 %v1424, 0.0
        %v1767 = vmax.f32 %v1426, 0.0
        %v1768 = vmax.f32 %v1537, 0.0
        %v1769 = vmax.f32 %v1539, 0.0
        %v1770 = vmax.f32 %v1650, 0.0
        %v1771 = vmax.f32 %v1652, 0.0
        %v1772 = vmax.f32 %v1315, 0.0
        %v1773 = vmax.f32 %v1317, 0.0
        %v1774 = vmax.f32 %v1428, 0.0
        %v1775 = vmax.f32 %v1430, 0.0
        %v1776 = vmax.f32 %v1541, 0.0
        %v1777 = vmax.f32 %v1543, 0.0
        %v1778 = vmax.f32 %v1654, 0.0
        %v1779 = vmax.f32 %v1656, 0.0
        %v1780 = vmax.f32 %v1321, 0.0
        %v1781 = vmax.f32 %v1323, 0.0
        %v1782 = vmax.f32 %v1434, 0.0
        %v1783 = vmax.f32 %v1436, 0.0
        %v1784 = vmax.f32 %v1547, 0.0
        %v1785 = vmax.f32 %v1549, 0.0
        %v1786 = vmax.f32 %v1660, 0.0
        %v1787 = vmax.f32 %v1662, 0.0
        %v1788 = vmax.f32 %v1325, 0.0
        %v1789 = vmax.f32 %v1327, 0.0
        %v1790 = vmax.f32 %v1438, 0.0
        %v1791 = vmax.f32 %v1440, 0.0
        %v1792 = vmax.f32 %v1551, 0.0
        %v1793 = vmax.f32 %v1553, 0.0
        %v1794 = vmax.f32 %v1664, 0.0
        %v1795 = vmax.f32 %v1666, 0.0
        %v1796 = vlaneseq
        %v1797 = vshrl.u32 %v1796, 7
        %v1798 = vadd.s32 %v1797, 8
        %v1799 = vadd.s32 %v1797, 16
        %v1800 = vadd.s32 %v1797, 24
        %v1801 = vadd.s32 %v1797, 32
        %v1802 = vadd.s32 %v1797, 40
        %v1803 = vadd.s32 %v1797, 48
        %v1804 = vadd.s32 %v1797, 56
        %v1805 = vadd.s32 %v1797, 64
        %v1806 = vadd.s32 %v1797, 72
        %v1807 = vadd.s32 %v1797, 80
        %v1808 = vadd.s32 %v1797, 88
        %v1809 = vadd.s32 %v1797, 96
        %v1810 = vadd.s32 %v1797, 104
        %v1811 = vadd.s32 %v1797, 112
        %v1812 = vadd.s32 %v1797, 120
        %s1813 = smul.u32 %s27, 128
        %v1814 = vstv %s1813
        %v1815 = vadd.s32 %v1814, %v1797
        %v1816 = vadd.s32 %v1814, %v1798
        %v1817 = vadd.s32 %v1814, %v1799
        %v1818 = vadd.s32 %v1814, %v1800
        %v1819 = vadd.s32 %v1814, %v1801
        %v1820 = vadd.s32 %v1814, %v1802
        %v1821 = vadd.s32 %v1814, %v1803
        %v1822 = vadd.s32 %v1814, %v1804
        %v1823 = vadd.s32 %v1814, %v1805
        %v1824 = vadd.s32 %v1814, %v1806
        %v1825 = vadd.s32 %v1814, %v1807
        %v1826 = vadd.s32 %v1814, %v1808
        %v1827 = vadd.s32 %v1814, %v1809
        %v1828 = vadd.s32 %v1814, %v1810
        %v1829 = vadd.s32 %v1814, %v1811
        %v1830 = vadd.s32 %v1814, %v1812
        %vm1831 = vcmp.lt.s32.totalorder %v1815, 300
        %vm1832 = vcmp.lt.s32.totalorder %v1816, 300
        %vm1833 = vcmp.lt.s32.totalorder %v1817, 300
        %vm1834 = vcmp.lt.s32.totalorder %v1818, 300
        %vm1835 = vcmp.lt.s32.totalorder %v1819, 300
        %vm1836 = vcmp.lt.s32.totalorder %v1820, 300
        %vm1837 = vcmp.lt.s32.totalorder %v1821, 300
        %vm1838 = vcmp.lt.s32.totalorder %v1822, 300
        %vm1839 = vcmp.lt.s32.totalorder %v1823, 300
        %vm1840 = vcmp.lt.s32.totalorder %v1824, 300
        %vm1841 = vcmp.lt.s32.totalorder %v1825, 300
        %vm1842 = vcmp.lt.s32.totalorder %v1826, 300
        %vm1843 = vcmp.lt.s32.totalorder %v1827, 300
        %vm1844 = vcmp.lt.s32.totalorder %v1828, 300
        %vm1845 = vcmp.lt.s32.totalorder %v1829, 300
        %vm1846 = vcmp.lt.s32.totalorder %v1830, 300
        %v1847 = vsel %vm1831, 1, 0
        %v1848 = vsel %vm1832, 1, 0
        %v1849 = vsel %vm1833, 1, 0
        %v1850 = vsel %vm1834, 1, 0
        %v1851 = vsel %vm1835, 1, 0
        %v1852 = vsel %vm1836, 1, 0
        %v1853 = vsel %vm1837, 1, 0
        %v1854 = vsel %vm1838, 1, 0
        %v1855 = vsel %vm1839, 1, 0
        %v1856 = vsel %vm1840, 1, 0
        %v1857 = vsel %vm1841, 1, 0
        %v1858 = vsel %vm1842, 1, 0
        %v1859 = vsel %vm1843, 1, 0
        %v1860 = vsel %vm1844, 1, 0
        %v1861 = vsel %vm1845, 1, 0
        %v1862 = vsel %vm1846, 1, 0
        %vm1863 = vcmp.eq.s32.totalorder %v1847, 1
        %vm1864 = vcmp.eq.s32.totalorder %v1848, 1
        %vm1865 = vcmp.eq.s32.totalorder %v1849, 1
        %vm1866 = vcmp.eq.s32.totalorder %v1850, 1
        %vm1867 = vcmp.eq.s32.totalorder %v1851, 1
        %vm1868 = vcmp.eq.s32.totalorder %v1852, 1
        %vm1869 = vcmp.eq.s32.totalorder %v1853, 1
        %vm1870 = vcmp.eq.s32.totalorder %v1854, 1
        %vm1871 = vcmp.eq.s32.totalorder %v1855, 1
        %vm1872 = vcmp.eq.s32.totalorder %v1856, 1
        %vm1873 = vcmp.eq.s32.totalorder %v1857, 1
        %vm1874 = vcmp.eq.s32.totalorder %v1858, 1
        %vm1875 = vcmp.eq.s32.totalorder %v1859, 1
        %vm1876 = vcmp.eq.s32.totalorder %v1860, 1
        %vm1877 = vcmp.eq.s32.totalorder %v1861, 1
        %vm1878 = vcmp.eq.s32.totalorder %v1862, 1
        %v1879 = vsel %vm1863, %v1668, -inf
        %v1880 = vsel %vm1863, %v1669, -inf
        %v1881 = vsel %vm1863, %v1670, -inf
        %v1882 = vsel %vm1863, %v1671, -inf
        %v1883 = vsel %vm1863, %v1672, -inf
        %v1884 = vsel %vm1863, %v1673, -inf
        %v1885 = vsel %vm1863, %v1674, -inf
        %v1886 = vsel %vm1863, %v1675, -inf
        %v1887 = vsel %vm1864, %v1676, -inf
        %v1888 = vsel %vm1864, %v1677, -inf
        %v1889 = vsel %vm1864, %v1678, -inf
        %v1890 = vsel %vm1864, %v1679, -inf
        %v1891 = vsel %vm1864, %v1680, -inf
        %v1892 = vsel %vm1864, %v1681, -inf
        %v1893 = vsel %vm1864, %v1682, -inf
        %v1894 = vsel %vm1864, %v1683, -inf
        %v1895 = vsel %vm1865, %v1684, -inf
        %v1896 = vsel %vm1865, %v1685, -inf
        %v1897 = vsel %vm1865, %v1686, -inf
        %v1898 = vsel %vm1865, %v1687, -inf
        %v1899 = vsel %vm1865, %v1688, -inf
        %v1900 = vsel %vm1865, %v1689, -inf
        %v1901 = vsel %vm1865, %v1690, -inf
        %v1902 = vsel %vm1865, %v1691, -inf
        %v1903 = vsel %vm1866, %v1692, -inf
        %v1904 = vsel %vm1866, %v1693, -inf
        %v1905 = vsel %vm1866, %v1694, -inf
        %v1906 = vsel %vm1866, %v1695, -inf
        %v1907 = vsel %vm1866, %v1696, -inf
        %v1908 = vsel %vm1866, %v1697, -inf
        %v1909 = vsel %vm1866, %v1698, -inf
        %v1910 = vsel %vm1866, %v1699, -inf
        %v1911 = vsel %vm1867, %v1700, -inf
        %v1912 = vsel %vm1867, %v1701, -inf
        %v1913 = vsel %vm1867, %v1702, -inf
        %v1914 = vsel %vm1867, %v1703, -inf
        %v1915 = vsel %vm1867, %v1704, -inf
        %v1916 = vsel %vm1867, %v1705, -inf
        %v1917 = vsel %vm1867, %v1706, -inf
        %v1918 = vsel %vm1867, %v1707, -inf
        %v1919 = vsel %vm1868, %v1708, -inf
        %v1920 = vsel %vm1868, %v1709, -inf
        %v1921 = vsel %vm1868, %v1710, -inf
        %v1922 = vsel %vm1868, %v1711, -inf
        %v1923 = vsel %vm1868, %v1712, -inf
        %v1924 = vsel %vm1868, %v1713, -inf
        %v1925 = vsel %vm1868, %v1714, -inf
        %v1926 = vsel %vm1868, %v1715, -inf
        %v1927 = vsel %vm1869, %v1716, -inf
        %v1928 = vsel %vm1869, %v1717, -inf
        %v1929 = vsel %vm1869, %v1718, -inf
        %v1930 = vsel %vm1869, %v1719, -inf
        %v1931 = vsel %vm1869, %v1720, -inf
        %v1932 = vsel %vm1869, %v1721, -inf
        %v1933 = vsel %vm1869, %v1722, -inf
        %v1934 = vsel %vm1869, %v1723, -inf
        %v1935 = vsel %vm1870, %v1724, -inf
        %v1936 = vsel %vm1870, %v1725, -inf
        %v1937 = vsel %vm1870, %v1726, -inf
        %v1938 = vsel %vm1870, %v1727, -inf
        %v1939 = vsel %vm1870, %v1728, -inf
        %v1940 = vsel %vm1870, %v1729, -inf
        %v1941 = vsel %vm1870, %v1730, -inf
        %v1942 = vsel %vm1870, %v1731, -inf
        %v1943 = vsel %vm1871, %v1732, -inf
        %v1944 = vsel %vm1871, %v1733, -inf
        %v1945 = vsel %vm1871, %v1734, -inf
        %v1946 = vsel %vm1871, %v1735, -inf
        %v1947 = vsel %vm1871, %v1736, -inf
        %v1948 = vsel %vm1871, %v1737, -inf
        %v1949 = vsel %vm1871, %v1738, -inf
        %v1950 = vsel %vm1871, %v1739, -inf
        %v1951 = vsel %vm1872, %v1740, -inf
        %v1952 = vsel %vm1872, %v1741, -inf
        %v1953 = vsel %vm1872, %v1742, -inf
        %v1954 = vsel %vm1872, %v1743, -inf
        %v1955 = vsel %vm1872, %v1744, -inf
        %v1956 = vsel %vm1872, %v1745, -inf
        %v1957 = vsel %vm1872, %v1746, -inf
        %v1958 = vsel %vm1872, %v1747, -inf
        %v1959 = vsel %vm1873, %v1748, -inf
        %v1960 = vsel %vm1873, %v1749, -inf
        %v1961 = vsel %vm1873, %v1750, -inf
        %v1962 = vsel %vm1873, %v1751, -inf
        %v1963 = vsel %vm1873, %v1752, -inf
        %v1964 = vsel %vm1873, %v1753, -inf
        %v1965 = vsel %vm1873, %v1754, -inf
        %v1966 = vsel %vm1873, %v1755, -inf
        %v1967 = vsel %vm1874, %v1756, -inf
        %v1968 = vsel %vm1874, %v1757, -inf
        %v1969 = vsel %vm1874, %v1758, -inf
        %v1970 = vsel %vm1874, %v1759, -inf
        %v1971 = vsel %vm1874, %v1760, -inf
        %v1972 = vsel %vm1874, %v1761, -inf
        %v1973 = vsel %vm1874, %v1762, -inf
        %v1974 = vsel %vm1874, %v1763, -inf
        %v1975 = vsel %vm1875, %v1764, -inf
        %v1976 = vsel %vm1875, %v1765, -inf
        %v1977 = vsel %vm1875, %v1766, -inf
        %v1978 = vsel %vm1875, %v1767, -inf
        %v1979 = vsel %vm1875, %v1768, -inf
        %v1980 = vsel %vm1875, %v1769, -inf
        %v1981 = vsel %vm1875, %v1770, -inf
        %v1982 = vsel %vm1875, %v1771, -inf
        %v1983 = vsel %vm1876, %v1772, -inf
        %v1984 = vsel %vm1876, %v1773, -inf
        %v1985 = vsel %vm1876, %v1774, -inf
        %v1986 = vsel %vm1876, %v1775, -inf
        %v1987 = vsel %vm1876, %v1776, -inf
        %v1988 = vsel %vm1876, %v1777, -inf
        %v1989 = vsel %vm1876, %v1778, -inf
        %v1990 = vsel %vm1876, %v1779, -inf
        %v1991 = vsel %vm1877, %v1780, -inf
        %v1992 = vsel %vm1877, %v1781, -inf
        %v1993 = vsel %vm1877, %v1782, -inf
        %v1994 = vsel %vm1877, %v1783, -inf
        %v1995 = vsel %vm1877, %v1784, -inf
        %v1996 = vsel %vm1877, %v1785, -inf
        %v1997 = vsel %vm1877, %v1786, -inf
        %v1998 = vsel %vm1877, %v1787, -inf
        %v1999 = vsel %vm1878, %v1788, -inf
        %v2000 = vsel %vm1878, %v1789, -inf
        %v2001 = vsel %vm1878, %v1790, -inf
        %v2002 = vsel %vm1878, %v1791, -inf
        %v2003 = vsel %vm1878, %v1792, -inf
        %v2004 = vsel %vm1878, %v1793, -inf
        %v2005 = vsel %vm1878, %v1794, -inf
        %v2006 = vsel %vm1878, %v1795, -inf
        %v2007 = vld [vmem:[%s384] sm:$0xff]
        %v2008 = vmax.f32 %v1879, %v1887
        %v2009 = vmax.f32 %v2008, %v1895
        %v2010 = vmax.f32 %v2009, %v1903
        %v2011 = vmax.f32 %v2010, %v1911
        %v2012 = vmax.f32 %v2011, %v1919
        %v2013 = vmax.f32 %v2012, %v1927
        %v2014 = vmax.f32 %v2013, %v1935
        %v2015 = vmax.f32 %v2014, %v1943
        %v2016 = vmax.f32 %v2015, %v1951
        %v2017 = vmax.f32 %v2016, %v1959
        %v2018 = vmax.f32 %v2017, %v1967
        %v2019 = vmax.f32 %v2018, %v1975
        %v2020 = vmax.f32 %v2019, %v1983
        %v2021 = vmax.f32 %v2020, %v1991
        %v2022 = vmax.f32 %v2021, %v1999
        %v2023 = vrot.slane %v2022, 4
        %v2024 = vmax.f32 %v2022, %v2023
        %v2025 = vrot.slane %v2024, 2
        %v2026 = vmax.f32 %v2024, %v2025
        %v2027 = vrot.slane %v2026, 1
        %v2028 = vmax.f32 %v2026, %v2027
        %v2029 = vmax.f32 %v1880, %v1888
        %v2030 = vmax.f32 %v2029, %v1896
        %v2031 = vmax.f32 %v2030, %v1904
        %v2032 = vmax.f32 %v2031, %v1912
        %v2033 = vmax.f32 %v2032, %v1920
        %v2034 = vmax.f32 %v2033, %v1928
        %v2035 = vmax.f32 %v2034, %v1936
        %v2036 = vmax.f32 %v2035, %v1944
        %v2037 = vmax.f32 %v2036, %v1952
        %v2038 = vmax.f32 %v2037, %v1960
        %v2039 = vmax.f32 %v2038, %v1968
        %v2040 = vmax.f32 %v2039, %v1976
        %v2041 = vmax.f32 %v2040, %v1984
        %v2042 = vmax.f32 %v2041, %v1992
        %v2043 = vmax.f32 %v2042, %v2000
        %v2044 = vrot.slane %v2043, 4
        %v2045 = vmax.f32 %v2043, %v2044
        %v2046 = vrot.slane %v2045, 2
        %v2047 = vmax.f32 %v2045, %v2046
        %v2048 = vrot.slane %v2047, 1
        %v2049 = vmax.f32 %v2047, %v2048
        %v2050 = vmax.f32 %v1881, %v1889
        %v2051 = vmax.f32 %v2050, %v1897
        %v2052 = vmax.f32 %v2051, %v1905
        %v2053 = vmax.f32 %v2052, %v1913
        %v2054 = vmax.f32 %v2053, %v1921
        %v2055 = vmax.f32 %v2054, %v1929
        %v2056 = vmax.f32 %v2055, %v1937
        %v2057 = vmax.f32 %v2056, %v1945
        %v2058 = vmax.f32 %v2057, %v1953
        %v2059 = vmax.f32 %v2058, %v1961
        %v2060 = vmax.f32 %v2059, %v1969
        %v2061 = vmax.f32 %v2060, %v1977
        %v2062 = vmax.f32 %v2061, %v1985
        %v2063 = vmax.f32 %v2062, %v1993
        %v2064 = vmax.f32 %v2063, %v2001
        %v2065 = vrot.slane %v2064, 4
        %v2066 = vmax.f32 %v2064, %v2065
        %v2067 = vrot.slane %v2066, 2
        %v2068 = vmax.f32 %v2066, %v2067
        %v2069 = vrot.slane %v2068, 1
        %v2070 = vmax.f32 %v2068, %v2069
        %v2071 = vmax.f32 %v1882, %v1890
        %v2072 = vmax.f32 %v2071, %v1898
        %v2073 = vmax.f32 %v2072, %v1906
        %v2074 = vmax.f32 %v2073, %v1914
        %v2075 = vmax.f32 %v2074, %v1922
        %v2076 = vmax.f32 %v2075, %v1930
        %v2077 = vmax.f32 %v2076, %v1938
        %v2078 = vmax.f32 %v2077, %v1946
        %v2079 = vmax.f32 %v2078, %v1954
        %v2080 = vmax.f32 %v2079, %v1962
        %v2081 = vmax.f32 %v2080, %v1970
        %v2082 = vmax.f32 %v2081, %v1978
        %v2083 = vmax.f32 %v2082, %v1986
        %v2084 = vmax.f32 %v2083, %v1994
        %v2085 = vmax.f32 %v2084, %v2002
        %v2086 = vrot.slane %v2085, 4
        %v2087 = vmax.f32 %v2085, %v2086
        %v2088 = vrot.slane %v2087, 2
        %v2089 = vmax.f32 %v2087, %v2088
        %v2090 = vrot.slane %v2089, 1
        %v2091 = vmax.f32 %v2089, %v2090
        %v2092 = vmax.f32 %v1883, %v1891
        %v2093 = vmax.f32 %v2092, %v1899
        %v2094 = vmax.f32 %v2093, %v1907
        %v2095 = vmax.f32 %v2094, %v1915
        %v2096 = vmax.f32 %v2095, %v1923
        %v2097 = vmax.f32 %v2096, %v1931
        %v2098 = vmax.f32 %v2097, %v1939
        %v2099 = vmax.f32 %v2098, %v1947
        %v2100 = vmax.f32 %v2099, %v1955
        %v2101 = vmax.f32 %v2100, %v1963
        %v2102 = vmax.f32 %v2101, %v1971
        %v2103 = vmax.f32 %v2102, %v1979
        %v2104 = vmax.f32 %v2103, %v1987
        %v2105 = vmax.f32 %v2104, %v1995
        %v2106 = vmax.f32 %v2105, %v2003
        %v2107 = vrot.slane %v2106, 4
        %v2108 = vmax.f32 %v2106, %v2107
        %v2109 = vrot.slane %v2108, 2
        %v2110 = vmax.f32 %v2108, %v2109
        %v2111 = vrot.slane %v2110, 1
        %v2112 = vmax.f32 %v2110, %v2111
        %v2113 = vmax.f32 %v1884, %v1892
        %v2114 = vmax.f32 %v2113, %v1900
        %v2115 = vmax.f32 %v2114, %v1908
        %v2116 = vmax.f32 %v2115, %v1916
        %v2117 = vmax.f32 %v2116, %v1924
        %v2118 = vmax.f32 %v2117, %v1932
        %v2119 = vmax.f32 %v2118, %v1940
        %v2120 = vmax.f32 %v2119, %v1948
        %v2121 = vmax.f32 %v2120, %v1956
        %v2122 = vmax.f32 %v2121, %v1964
        %v2123 = vmax.f32 %v2122, %v1972
        %v2124 = vmax.f32 %v2123, %v1980
        %v2125 = vmax.f32 %v2124, %v1988
        %v2126 = vmax.f32 %v2125, %v1996
        %v2127 = vmax.f32 %v2126, %v2004
        %v2128 = vrot.slane %v2127, 4
        %v2129 = vmax.f32 %v2127, %v2128
        %v2130 = vrot.slane %v2129, 2
        %v2131 = vmax.f32 %v2129, %v2130
        %v2132 = vrot.slane %v2131, 1
        %v2133 = vmax.f32 %v2131, %v2132
        %v2134 = vmax.f32 %v1885, %v1893
        %v2135 = vmax.f32 %v2134, %v1901
        %v2136 = vmax.f32 %v2135, %v1909
        %v2137 = vmax.f32 %v2136, %v1917
        %v2138 = vmax.f32 %v2137, %v1925
        %v2139 = vmax.f32 %v2138, %v1933
        %v2140 = vmax.f32 %v2139, %v1941
        %v2141 = vmax.f32 %v2140, %v1949
        %v2142 = vmax.f32 %v2141, %v1957
        %v2143 = vmax.f32 %v2142, %v1965
        %v2144 = vmax.f32 %v2143, %v1973
        %v2145 = vmax.f32 %v2144, %v1981
        %v2146 = vmax.f32 %v2145, %v1989
        %v2147 = vmax.f32 %v2146, %v1997
        %v2148 = vmax.f32 %v2147, %v2005
        %v2149 = vrot.slane %v2148, 4
        %v2150 = vmax.f32 %v2148, %v2149
        %v2151 = vrot.slane %v2150, 2
        %v2152 = vmax.f32 %v2150, %v2151
        %v2153 = vrot.slane %v2152, 1
        %v2154 = vmax.f32 %v2152, %v2153
        %v2155 = vmax.f32 %v1886, %v1894
        %v2156 = vmax.f32 %v2155, %v1902
        %v2157 = vmax.f32 %v2156, %v1910
        %v2158 = vmax.f32 %v2157, %v1918
        %v2159 = vmax.f32 %v2158, %v1926
        %v2160 = vmax.f32 %v2159, %v1934
        %v2161 = vmax.f32 %v2160, %v1942
        %v2162 = vmax.f32 %v2161, %v1950
        %v2163 = vmax.f32 %v2162, %v1958
        %v2164 = vmax.f32 %v2163, %v1966
        %v2165 = vmax.f32 %v2164, %v1974
        %v2166 = vmax.f32 %v2165, %v1982
        %v2167 = vmax.f32 %v2166, %v1990
        %v2168 = vmax.f32 %v2167, %v1998
        %v2169 = vmax.f32 %v2168, %v2006
        %v2170 = vrot.slane %v2169, 4
        %v2171 = vmax.f32 %v2169, %v2170
        %v2172 = vrot.slane %v2171, 2
        %v2173 = vmax.f32 %v2171, %v2172
        %v2174 = vrot.slane %v2173, 1
        %v2175 = vmax.f32 %v2173, %v2174
        %v2184 = vcombine.low %v2028, %v2049
        %v2185 = vcombine.low %v2070, %v2091
        %v2186 = vcombine.low %v2112, %v2133
        %v2187 = vcombine.low %v2154, %v2175
        %v2189 = vunpack.c.l.s4 1966171168
        %v2190 = vunpack.c.0.s8 %v2189
        %v2191 = vlaneseq
        %v2192 = vshrl.u32 %v2191, 7
        %v2193 = vsub.s32 %v2190, %v2192
        %v2194 = vrot.slane %v2184, %v2193
        %v2196 = vunpack.c.l.s4 1966171168
        %v2197 = vunpack.c.0.s8 %v2196
        %v2198 = vlaneseq
        %v2199 = vshrl.u32 %v2198, 7
        %v2200 = vsub.s32 %v2197, %v2199
        %v2201 = vrot.slane %v2185, %v2200
        %v2203 = vunpack.c.l.s4 1966171168
        %v2204 = vunpack.c.0.s8 %v2203
        %v2205 = vlaneseq
        %v2206 = vshrl.u32 %v2205, 7
        %v2207 = vsub.s32 %v2204, %v2206
        %v2208 = vrot.slane %v2186, %v2207
        %v2210 = vunpack.c.l.s4 1966171168
        %v2211 = vunpack.c.0.s8 %v2210
        %v2212 = vlaneseq
        %v2213 = vshrl.u32 %v2212, 7
        %v2214 = vsub.s32 %v2211, %v2213
        %v2215 = vrot.slane %v2187, %v2214
        %v2216 = vcombine.low %v2194, %v2201
        %v2217 = vcombine.low %v2208, %v2215
        %v2219 = vunpack.c.l.s4 1966171168
        %v2220 = vunpack.c.0.s8 %v2219
        %v2221 = vlaneseq
        %v2222 = vshrl.u32 %v2221, 7
        %v2223 = vsub.s32 %v2220, %v2222
        %v2224 = vrot.slane %v2216, %v2223
        %v2226 = vunpack.c.l.s4 1966171168
        %v2227 = vunpack.c.0.s8 %v2226
        %v2228 = vlaneseq
        %v2229 = vshrl.u32 %v2228, 7
        %v2230 = vsub.s32 %v2227, %v2229
        %v2231 = vrot.slane %v2217, %v2230
        %v2232 = vcombine.low %v2224, %v2231
        %v2234 = vmax.f32 %v2007, %v2232
        %2235 = vst [vmem:[%s384] sm:$0xff] %v2234
        %p2236 = scmp.lt.s32.totalorder %s26, 1
        %s2237 = scalar_select %p2236, %s26, 1
        %s2238 = smul.addr %s2237, 8
        %s2239 = scalar_lea.vmem %s7, %s2238
        // Predicated region
        $region77: #{pointnetfeat_forward.2} parent=47 // pred_check
          %p2240 = pneg %p206
        $region78: #{pointnetfeat_forward.2} parent=47 // pred_check_branch
          %2242 = sbr.rel (%p2240) target = $region80
        $region79: #{pointnetfeat_forward.2} parent=47 // pred_region
          _
        $region80: #{pointnetfeat_forward.2} parent=47 // pred_fallthru
          _
      $region48: #{pointnetfeat_forward.2} parent=5 // pred_fallthru
        _
      %p2243 = scmp.le.s32.totalorder 2, %s17
      // Predicated region
      $region81: #{pointnetfeat_forward.2} parent=5 // pred_check
        %p2244 = pneg %p2243
      $region82: #{pointnetfeat_forward.2} parent=5 // pred_check_branch
        %2246 = sbr.rel (%p2244) target = $region84
      $region83: #{pointnetfeat_forward.2} parent=5 // pred_region
        %s2247 = ssub.s32 %s17, 2
        // Predicated region
        $region85: #{pointnetfeat_forward.2} parent=83 // pred_check
          %p2248 = pneg %p212
        $region86: #{pointnetfeat_forward.2} parent=83 // pred_check_branch
          %2250 = sbr.rel (%p2248) target = $region88
        $region87: #{pointnetfeat_forward.2} parent=83 // pred_region
          %p2251 = scmp.lt.s32.totalorder %s28, 1
          %s2252 = scalar_select %p2251, %s28, 1
          %s2253 = smul.addr %s2252, 8
          %s2254 = scalar_lea.vmem %s7, %s2253
        $region88: #{pointnetfeat_forward.2} parent=83 // pred_fallthru
          _
      $region84: #{pointnetfeat_forward.2} parent=5 // pred_fallthru
        _
    $region6: #{pointnetfeat_forward.2} parent=1 // loop_footer
      %s21 = sadd.s32 1, %s17
    $region7: #{pointnetfeat_forward.2} parent=1 // loop_footer_branch
      %16 = sbr.rel target = $region3
    $region8: #{pointnetfeat_forward.2} parent=1 // loop_exit
      _
    %2255 = vsyncpa [#allocation3], 1
    %s2256 = scalar_lea.sflag [#allocation3], 1
    %2257 = vsyncpa %s2256, 1
    %2258 = vsyncpa [#allocation5], 1
    %2259 = vsyncpa [#allocation8], 1
    %2260 = vsyncpa [#allocation11], 1

</llo_original>
